<compile_context>
chip_gen: v5e
topology: v5e:2x2
jax: 0.10.0
libtpu: 0.0.40
codegen_flags: <defaults>
</compile_context>

<pallas_src>
import jax
import jax.numpy as jnp
from jax.experimental import pallas as pl
from jax.experimental.pallas import tpu as pltpu

FFN_DIM = 2048
LN_EPS = 1e-5
NUM_TASKS = 3


def _gelu_exact(x):
    # PyTorch F.gelu default: exact erf-based gelu.
    return 0.5 * x * (1.0 + jax.lax.erf(x * 0.7071067811865476))


def _layernorm(x, gamma, beta, eps):
    mu = jnp.mean(x, axis=-1, keepdims=True)
    var = jnp.mean((x - mu) * (x - mu), axis=-1, keepdims=True)
    xhat = (x - mu) * jax.lax.rsqrt(var + eps)
    return xhat * gamma + beta


def multitask_kernel(
    x_ref,        # (B, in)               f32  VMEM
    w_first_ref,  # (3, in, hidden)       bf16 VMEM
    wU_ref,       # (3, hidden, FFN)      bf16 VMEM
    wV_ref,       # (3, hidden, FFN)      bf16 VMEM (PyTorch (out,in), lane-dense)
    bU_ref,       # (3, FFN)              f32  VMEM
    rows_ref,     # (3, 7, hidden)        f32  VMEM packed row params
    b_out_ref,    # (3, 1)                f32  SMEM
    out_ref,      # (3, B)                f32  VMEM
):
    # Shared across all tasks: compute sigmoid(x) exactly once.
    x = jax.nn.sigmoid(x_ref[...])
    x_bf = x.astype(jnp.bfloat16)

    logits = []
    for t in range(NUM_TASKS):  # short static unroll; params already VMEM-resident
        rows = rows_ref[t]      # (7, hidden) — single slab load
        b_first, ln1_g, ln1_b = rows[0:1], rows[1:2], rows[2:3]
        bV, ln2_g, ln2_b, w_out = rows[3:4], rows[4:5], rows[5:6], rows[6:7]

        # SingleMLP.first_map — bf16 operands, f32 accumulation (native MXU path).
        h = jnp.dot(x_bf, w_first_ref[t], preferred_element_type=jnp.float32) + b_first
        temp = h

        # LinearLayer._ffn
        h = _layernorm(h, ln1_g, ln1_b, LN_EPS)
        skip = h
        u = (
            jnp.dot(h.astype(jnp.bfloat16), wU_ref[t],
                    preferred_element_type=jnp.float32)
            + bU_ref[t]
        )
        u = _gelu_exact(u)
        # wV is stored lane-dense as (hidden, FFN); contract both last dims ("NT" MXU matmul).
        v = (
            jax.lax.dot_general(
                u.astype(jnp.bfloat16), wV_ref[t],
                dimension_numbers=(((1,), (1,)), ((), ())),
                preferred_element_type=jnp.float32,
            )
            + bV
        )
        v = _layernorm(v, ln2_g, ln2_b, LN_EPS)
        v = _gelu_exact(v)
        ffn_out = (skip + v) * 0.5

        # save = (layer2(x) + temp) / 2
        save = (ffn_out + temp) * 0.5

        # output_logit_map (hidden -> 1): VPU multiply + lane reduce; b_out from SMEM.
        logits.append(jnp.sum(save * w_out, axis=-1) + b_out_ref[t, 0])

    # One lane-contiguous (3, B) store for all three heads.
    out_ref[...] = jnp.stack(logits, axis=0)


@jax.jit
def multitask_mlp_forward(x, packed):
    """x: (batch, in) f32.  packed: dict of task-stacked kernel inputs."""
    batch, in_dim = x.shape
    hidden = packed["w_first"].shape[-1]

    inputs = (
        x,
        packed["w_first"],
        packed["wU"],
        packed["wV"],
        packed["bU"],
        packed["rows"],
        packed["b_out"],
    )

    flops = 2 * NUM_TASKS * batch * (in_dim * hidden + 2 * hidden * FFN_DIM)
    transcendentals = batch * in_dim + NUM_TASKS * batch * (FFN_DIM + 2 * hidden)
    bytes_accessed = (
        sum(int(a.size) * a.dtype.itemsize for a in inputs)
        + NUM_TASKS * batch * 4
    )

    vmem = pltpu.MemorySpace.VMEM
    smem = pltpu.MemorySpace.SMEM

    out = pl.pallas_call(
        multitask_kernel,
        out_shape=jax.ShapeDtypeStruct((NUM_TASKS, batch), jnp.float32),
        in_specs=[
            pl.BlockSpec(memory_space=vmem),   # x
            pl.BlockSpec(memory_space=vmem),   # w_first
            pl.BlockSpec(memory_space=vmem),   # wU
            pl.BlockSpec(memory_space=vmem),   # wV
            pl.BlockSpec(memory_space=vmem),   # bU
            pl.BlockSpec(memory_space=vmem),   # rows (packed small params)
            pl.BlockSpec(memory_space=smem),   # b_out scalars
        ],
        out_specs=pl.BlockSpec(memory_space=vmem),
        cost_estimate=pl.CostEstimate(
            flops=flops,
            transcendentals=transcendentals,
            bytes_accessed=bytes_accessed,
        ),
    )(*inputs)

    # Match the PyTorch module's three (batch, 1) outputs.
    return out[0][:, None], out[1][:, None], out[2][:, None]


def init_task_params(key, input_size, hidden_size):
    """Deterministic init matching the PyTorch module's __init__ (normal(0, 0.01))."""
    ks = jax.random.split(key, 8)
    std = 0.01

    def nrm(k, shape):
        return jax.random.normal(k, shape, dtype=jnp.float32) * std

    return {
        # first_map: Linear(input_size, hidden) — stored (in, out), bf16 for the MXU.
        "w_first": nrm(ks[0], (input_size, hidden_size)).astype(jnp.bfloat16),
        "b_first": nrm(ks[1], (hidden_size,)),
        # layernorm1 (affine)
        "ln1_g": jnp.ones((hidden_size,), jnp.float32),
        "ln1_b": jnp.zeros((hidden_size,), jnp.float32),
        # U_map: Linear(hidden, 2048) — stored (in, out) bf16.
        "wU": nrm(ks[2], (hidden_size, FFN_DIM)).astype(jnp.bfloat16),
        "bU": nrm(ks[3], (FFN_DIM,)),
        # V_map: Linear(2048, hidden) — kept in PyTorch (out, in) layout = lane-dense.
        "wV": nrm(ks[4], (hidden_size, FFN_DIM)).astype(jnp.bfloat16),
        "bV": nrm(ks[5], (hidden_size,)),
        # layernorm2 (affine)
        "ln2_g": jnp.ones((hidden_size,), jnp.float32),
        "ln2_b": jnp.zeros((hidden_size,), jnp.float32),
        # output_logit_mapK: Linear(hidden, 1) — weight as a (hidden,) row + scalar bias.
        "w_out": nrm(ks[6], (hidden_size,)),
        "b_out": nrm(ks[7], (1,)),
    }


def pack_params(task_params):
    """Stack per-task params over a leading axis and pack small rows into one slab."""
    stack = lambda name: jnp.stack([p[name] for p in task_params], axis=0)
    rows = jnp.stack(
        [
            jnp.stack(
                [p["b_first"], p["ln1_g"], p["ln1_b"], p["bV"],
                 p["ln2_g"], p["ln2_b"], p["w_out"]],
                axis=0,
            )
            for p in task_params
        ],
        axis=0,
    )  # (3, 7, hidden) f32
    return {
        "w_first": stack("w_first"),   # (3, in, hidden)  bf16
        "wU": stack("wU"),             # (3, hidden, FFN) bf16
        "wV": stack("wV"),             # (3, hidden, FFN) bf16
        "bU": stack("bU"),             # (3, FFN)         f32
        "rows": rows,                  # (3, 7, hidden)   f32
        "b_out": stack("b_out"),       # (3, 1)           f32 (SMEM)
    }


if __name__ == "__main__":
    batch_size = 8
    input_size = 32
    hidden_size = 32

    root = jax.random.PRNGKey(0)
    kx, k1, k2, k3 = jax.random.split(root, 4)

    x = jax.random.normal(kx, (batch_size, input_size), dtype=jnp.float32)
    packed = pack_params(
        [init_task_params(k, input_size, hidden_size) for k in (k1, k2, k3)]
    )

    out1, out2, out3 = multitask_mlp_forward(x, packed)
    jax.block_until_ready((out1, out2, out3))

    assert out1.shape == (batch_size, 1)
    assert out2.shape == (batch_size, 1)
    assert out3.shape == (batch_size, 1)
    assert (
        jnp.all(jnp.isfinite(out1))
        and jnp.all(jnp.isfinite(out2))
        and jnp.all(jnp.isfinite(out3))
    )
    print("KERNEL_OK")
</pallas_src>

<mosaic_0001>
module attributes {stable_mosaic.version = 11 : i64} {
  func.func @multitask_kernel(%arg0: memref<8x32xf32, #tpu.memory_space<vmem>>, %arg1: memref<3x32x32xbf16, #tpu.memory_space<vmem>>, %arg2: memref<3x32x2048xbf16, #tpu.memory_space<vmem>>, %arg3: memref<3x32x2048xbf16, #tpu.memory_space<vmem>>, %arg4: memref<3x2048xf32, #tpu.memory_space<vmem>>, %arg5: memref<3x7x32xf32, #tpu.memory_space<vmem>>, %arg6: memref<3x1xf32, #tpu.memory_space<smem>>, %arg7: memref<3x8xf32, #tpu.memory_space<vmem>>) attributes {dimension_semantics = [], scalar_prefetch = 0 : i64, scratch_operands = 0 : i64, tpu.core_type = #tpu.core_type<tc>} {
    %c0 = arith.constant 0 : index
    %c0_0 = arith.constant 0 : index
    %0 = vector.load %arg0[%c0, %c0_0] : memref<8x32xf32, #tpu.memory_space<vmem>>, vector<8x32xf32>
    %1 = arith.negf %0 : vector<8x32xf32>
    %2 = math.exp %1 : vector<8x32xf32>
    %cst = arith.constant 1.000000e+00 : f32
    %3 = vector.broadcast %cst : f32 to vector<8x32xf32>
    %4 = arith.addf %3, %2 : vector<8x32xf32>
    %5 = arith.divf %3, %4 : vector<8x32xf32>
    %6 = arith.truncf %5 : vector<8x32xf32> to vector<8x32xbf16>
    %c0_1 = arith.constant 0 : index
    %c0_2 = arith.constant 0 : index
    %c0_3 = arith.constant 0 : index
    %7 = vector.load %arg5[%c0_1, %c0_2, %c0_3] : memref<3x7x32xf32, #tpu.memory_space<vmem>>, vector<1x7x32xf32>
    %8 = vector.shape_cast %7 : vector<1x7x32xf32> to vector<7x32xf32>
    %9 = vector.extract_strided_slice %8 {offsets = [0, 0], sizes = [1, 32], strides = [1, 1]} : vector<7x32xf32> to vector<1x32xf32>
    %10 = vector.extract_strided_slice %8 {offsets = [1, 0], sizes = [1, 32], strides = [1, 1]} : vector<7x32xf32> to vector<1x32xf32>
    %11 = vector.extract_strided_slice %8 {offsets = [2, 0], sizes = [1, 32], strides = [1, 1]} : vector<7x32xf32> to vector<1x32xf32>
    %12 = vector.extract_strided_slice %8 {offsets = [3, 0], sizes = [1, 32], strides = [1, 1]} : vector<7x32xf32> to vector<1x32xf32>
    %13 = vector.extract_strided_slice %8 {offsets = [4, 0], sizes = [1, 32], strides = [1, 1]} : vector<7x32xf32> to vector<1x32xf32>
    %14 = vector.extract_strided_slice %8 {offsets = [5, 0], sizes = [1, 32], strides = [1, 1]} : vector<7x32xf32> to vector<1x32xf32>
    %15 = vector.extract_strided_slice %8 {offsets = [6, 0], sizes = [1, 32], strides = [1, 1]} : vector<7x32xf32> to vector<1x32xf32>
    %c0_4 = arith.constant 0 : index
    %c0_5 = arith.constant 0 : index
    %c0_6 = arith.constant 0 : index
    %16 = vector.load %arg1[%c0_4, %c0_5, %c0_6] : memref<3x32x32xbf16, #tpu.memory_space<vmem>>, vector<1x32x32xbf16>
    %17 = vector.shape_cast %16 : vector<1x32x32xbf16> to vector<32x32xbf16>
    %cst_7 = arith.constant dense<0.000000e+00> : vector<8x32xf32>
    %18 = tpu.matmul %6, %17, %cst_7 {dimension_numbers = #tpu.dot_dimension_numbers<[1], [0], [0], [1], [0, 0, 1, 1], [], []>} : vector<8x32xbf16>, vector<32x32xbf16>, vector<8x32xf32> -> vector<8x32xf32>
    %19 = vector.broadcast %9 : vector<1x32xf32> to vector<8x32xf32>
    %20 = arith.addf %18, %19 : vector<8x32xf32>
    %cst_8 = arith.constant dense<0.000000e+00> : vector<8xf32>
    %21 = vector.multi_reduction <add>, %20, %cst_8 [1] : vector<8x32xf32> to vector<8xf32>
    %22 = vector.shape_cast %21 : vector<8xf32> to vector<8x1xf32>
    %cst_9 = arith.constant 3.200000e+01 : f32
    %23 = vector.broadcast %cst_9 : f32 to vector<8x1xf32>
    %24 = arith.divf %22, %23 : vector<8x1xf32>
    %25 = vector.broadcast %24 : vector<8x1xf32> to vector<8x32xf32>
    %26 = arith.subf %20, %25 : vector<8x32xf32>
    %27 = vector.broadcast %24 : vector<8x1xf32> to vector<8x32xf32>
    %28 = arith.subf %20, %27 : vector<8x32xf32>
    %29 = arith.mulf %26, %28 : vector<8x32xf32>
    %cst_10 = arith.constant dense<0.000000e+00> : vector<8xf32>
    %30 = vector.multi_reduction <add>, %29, %cst_10 [1] : vector<8x32xf32> to vector<8xf32>
    %31 = vector.shape_cast %30 : vector<8xf32> to vector<8x1xf32>
    %cst_11 = arith.constant 3.200000e+01 : f32
    %32 = vector.broadcast %cst_11 : f32 to vector<8x1xf32>
    %33 = arith.divf %31, %32 : vector<8x1xf32>
    %34 = vector.broadcast %24 : vector<8x1xf32> to vector<8x32xf32>
    %35 = arith.subf %20, %34 : vector<8x32xf32>
    %cst_12 = arith.constant 9.99999974E-6 : f32
    %36 = vector.broadcast %cst_12 : f32 to vector<8x1xf32>
    %37 = arith.addf %33, %36 : vector<8x1xf32>
    %38 = math.rsqrt %37 : vector<8x1xf32>
    %39 = vector.broadcast %38 : vector<8x1xf32> to vector<8x32xf32>
    %40 = arith.mulf %35, %39 : vector<8x32xf32>
    %41 = vector.broadcast %10 : vector<1x32xf32> to vector<8x32xf32>
    %42 = arith.mulf %40, %41 : vector<8x32xf32>
    %43 = vector.broadcast %11 : vector<1x32xf32> to vector<8x32xf32>
    %44 = arith.addf %42, %43 : vector<8x32xf32>
    %45 = arith.truncf %44 : vector<8x32xf32> to vector<8x32xbf16>
    %c0_13 = arith.constant 0 : index
    %c0_14 = arith.constant 0 : index
    %c0_15 = arith.constant 0 : index
    %46 = vector.load %arg2[%c0_13, %c0_14, %c0_15] : memref<3x32x2048xbf16, #tpu.memory_space<vmem>>, vector<1x32x2048xbf16>
    %47 = vector.shape_cast %46 : vector<1x32x2048xbf16> to vector<32x2048xbf16>
    %cst_16 = arith.constant dense<0.000000e+00> : vector<8x2048xf32>
    %48 = tpu.matmul %45, %47, %cst_16 {dimension_numbers = #tpu.dot_dimension_numbers<[1], [0], [0], [1], [0, 0, 1, 1], [], []>} : vector<8x32xbf16>, vector<32x2048xbf16>, vector<8x2048xf32> -> vector<8x2048xf32>
    %c0_17 = arith.constant 0 : index
    %c0_18 = arith.constant 0 : index
    %49 = vector.load %arg4[%c0_17, %c0_18] : memref<3x2048xf32, #tpu.memory_space<vmem>>, vector<1x2048xf32>
    %50 = vector.shape_cast %49 : vector<1x2048xf32> to vector<2048xf32>
    %51 = vector.shape_cast %50 : vector<2048xf32> to vector<1x2048xf32>
    %52 = vector.broadcast %51 : vector<1x2048xf32> to vector<8x2048xf32>
    %53 = arith.addf %48, %52 : vector<8x2048xf32>
    %cst_19 = arith.constant 5.000000e-01 : f32
    %54 = vector.broadcast %cst_19 : f32 to vector<8x2048xf32>
    %55 = arith.mulf %54, %53 : vector<8x2048xf32>
    %cst_20 = arith.constant 0.707106769 : f32
    %56 = vector.broadcast %cst_20 : f32 to vector<8x2048xf32>
    %57 = arith.mulf %53, %56 : vector<8x2048xf32>
    %58 = math.erf %57 : vector<8x2048xf32>
    %cst_21 = arith.constant 1.000000e+00 : f32
    %59 = vector.broadcast %cst_21 : f32 to vector<8x2048xf32>
    %60 = arith.addf %59, %58 : vector<8x2048xf32>
    %61 = arith.mulf %55, %60 : vector<8x2048xf32>
    %62 = arith.truncf %61 : vector<8x2048xf32> to vector<8x2048xbf16>
    %c0_22 = arith.constant 0 : index
    %c0_23 = arith.constant 0 : index
    %c0_24 = arith.constant 0 : index
    %63 = vector.load %arg3[%c0_22, %c0_23, %c0_24] : memref<3x32x2048xbf16, #tpu.memory_space<vmem>>, vector<1x32x2048xbf16>
    %64 = vector.shape_cast %63 : vector<1x32x2048xbf16> to vector<32x2048xbf16>
    %cst_25 = arith.constant dense<0.000000e+00> : vector<8x32xf32>
    %65 = tpu.matmul %62, %64, %cst_25 {dimension_numbers = #tpu.dot_dimension_numbers<[1], [1], [0], [0], [0, 0, 1, 0], [], []>} : vector<8x2048xbf16>, vector<32x2048xbf16>, vector<8x32xf32> -> vector<8x32xf32>
    %66 = vector.broadcast %12 : vector<1x32xf32> to vector<8x32xf32>
    %67 = arith.addf %65, %66 : vector<8x32xf32>
    %cst_26 = arith.constant dense<0.000000e+00> : vector<8xf32>
    %68 = vector.multi_reduction <add>, %67, %cst_26 [1] : vector<8x32xf32> to vector<8xf32>
    %69 = vector.shape_cast %68 : vector<8xf32> to vector<8x1xf32>
    %cst_27 = arith.constant 3.200000e+01 : f32
    %70 = vector.broadcast %cst_27 : f32 to vector<8x1xf32>
    %71 = arith.divf %69, %70 : vector<8x1xf32>
    %72 = vector.broadcast %71 : vector<8x1xf32> to vector<8x32xf32>
    %73 = arith.subf %67, %72 : vector<8x32xf32>
    %74 = vector.broadcast %71 : vector<8x1xf32> to vector<8x32xf32>
    %75 = arith.subf %67, %74 : vector<8x32xf32>
    %76 = arith.mulf %73, %75 : vector<8x32xf32>
    %cst_28 = arith.constant dense<0.000000e+00> : vector<8xf32>
    %77 = vector.multi_reduction <add>, %76, %cst_28 [1] : vector<8x32xf32> to vector<8xf32>
    %78 = vector.shape_cast %77 : vector<8xf32> to vector<8x1xf32>
    %cst_29 = arith.constant 3.200000e+01 : f32
    %79 = vector.broadcast %cst_29 : f32 to vector<8x1xf32>
    %80 = arith.divf %78, %79 : vector<8x1xf32>
    %81 = vector.broadcast %71 : vector<8x1xf32> to vector<8x32xf32>
    %82 = arith.subf %67, %81 : vector<8x32xf32>
    %cst_30 = arith.constant 9.99999974E-6 : f32
    %83 = vector.broadcast %cst_30 : f32 to vector<8x1xf32>
    %84 = arith.addf %80, %83 : vector<8x1xf32>
    %85 = math.rsqrt %84 : vector<8x1xf32>
    %86 = vector.broadcast %85 : vector<8x1xf32> to vector<8x32xf32>
    %87 = arith.mulf %82, %86 : vector<8x32xf32>
    %88 = vector.broadcast %13 : vector<1x32xf32> to vector<8x32xf32>
    %89 = arith.mulf %87, %88 : vector<8x32xf32>
    %90 = vector.broadcast %14 : vector<1x32xf32> to vector<8x32xf32>
    %91 = arith.addf %89, %90 : vector<8x32xf32>
    %cst_31 = arith.constant 5.000000e-01 : f32
    %92 = vector.broadcast %cst_31 : f32 to vector<8x32xf32>
    %93 = arith.mulf %92, %91 : vector<8x32xf32>
    %cst_32 = arith.constant 0.707106769 : f32
    %94 = vector.broadcast %cst_32 : f32 to vector<8x32xf32>
    %95 = arith.mulf %91, %94 : vector<8x32xf32>
    %96 = math.erf %95 : vector<8x32xf32>
    %cst_33 = arith.constant 1.000000e+00 : f32
    %97 = vector.broadcast %cst_33 : f32 to vector<8x32xf32>
    %98 = arith.addf %97, %96 : vector<8x32xf32>
    %99 = arith.mulf %93, %98 : vector<8x32xf32>
    %100 = arith.addf %44, %99 : vector<8x32xf32>
    %cst_34 = arith.constant 5.000000e-01 : f32
    %101 = vector.broadcast %cst_34 : f32 to vector<8x32xf32>
    %102 = arith.mulf %100, %101 : vector<8x32xf32>
    %103 = arith.addf %102, %20 : vector<8x32xf32>
    %cst_35 = arith.constant 5.000000e-01 : f32
    %104 = vector.broadcast %cst_35 : f32 to vector<8x32xf32>
    %105 = arith.mulf %103, %104 : vector<8x32xf32>
    %106 = vector.broadcast %15 : vector<1x32xf32> to vector<8x32xf32>
    %107 = arith.mulf %105, %106 : vector<8x32xf32>
    %cst_36 = arith.constant dense<0.000000e+00> : vector<8xf32>
    %108 = vector.multi_reduction <add>, %107, %cst_36 [1] : vector<8x32xf32> to vector<8xf32>
    %c0_37 = arith.constant 0 : index
    %c0_38 = arith.constant 0 : index
    %109 = memref.load %arg6[%c0_37, %c0_38] : memref<3x1xf32, #tpu.memory_space<smem>>
    %110 = vector.broadcast %109 : f32 to vector<8xf32>
    %111 = arith.addf %108, %110 : vector<8xf32>
    %c1 = arith.constant 1 : index
    %c0_39 = arith.constant 0 : index
    %c0_40 = arith.constant 0 : index
    %112 = vector.load %arg5[%c1, %c0_39, %c0_40] : memref<3x7x32xf32, #tpu.memory_space<vmem>>, vector<1x7x32xf32>
    %113 = vector.shape_cast %112 : vector<1x7x32xf32> to vector<7x32xf32>
    %114 = vector.extract_strided_slice %113 {offsets = [0, 0], sizes = [1, 32], strides = [1, 1]} : vector<7x32xf32> to vector<1x32xf32>
    %115 = vector.extract_strided_slice %113 {offsets = [1, 0], sizes = [1, 32], strides = [1, 1]} : vector<7x32xf32> to vector<1x32xf32>
    %116 = vector.extract_strided_slice %113 {offsets = [2, 0], sizes = [1, 32], strides = [1, 1]} : vector<7x32xf32> to vector<1x32xf32>
    %117 = vector.extract_strided_slice %113 {offsets = [3, 0], sizes = [1, 32], strides = [1, 1]} : vector<7x32xf32> to vector<1x32xf32>
    %118 = vector.extract_strided_slice %113 {offsets = [4, 0], sizes = [1, 32], strides = [1, 1]} : vector<7x32xf32> to vector<1x32xf32>
    %119 = vector.extract_strided_slice %113 {offsets = [5, 0], sizes = [1, 32], strides = [1, 1]} : vector<7x32xf32> to vector<1x32xf32>
    %120 = vector.extract_strided_slice %113 {offsets = [6, 0], sizes = [1, 32], strides = [1, 1]} : vector<7x32xf32> to vector<1x32xf32>
    %c1_41 = arith.constant 1 : index
    %c0_42 = arith.constant 0 : index
    %c0_43 = arith.constant 0 : index
    %121 = vector.load %arg1[%c1_41, %c0_42, %c0_43] : memref<3x32x32xbf16, #tpu.memory_space<vmem>>, vector<1x32x32xbf16>
    %122 = vector.shape_cast %121 : vector<1x32x32xbf16> to vector<32x32xbf16>
    %cst_44 = arith.constant dense<0.000000e+00> : vector<8x32xf32>
    %123 = tpu.matmul %6, %122, %cst_44 {dimension_numbers = #tpu.dot_dimension_numbers<[1], [0], [0], [1], [0, 0, 1, 1], [], []>} : vector<8x32xbf16>, vector<32x32xbf16>, vector<8x32xf32> -> vector<8x32xf32>
    %124 = vector.broadcast %114 : vector<1x32xf32> to vector<8x32xf32>
    %125 = arith.addf %123, %124 : vector<8x32xf32>
    %cst_45 = arith.constant dense<0.000000e+00> : vector<8xf32>
    %126 = vector.multi_reduction <add>, %125, %cst_45 [1] : vector<8x32xf32> to vector<8xf32>
    %127 = vector.shape_cast %126 : vector<8xf32> to vector<8x1xf32>
    %cst_46 = arith.constant 3.200000e+01 : f32
    %128 = vector.broadcast %cst_46 : f32 to vector<8x1xf32>
    %129 = arith.divf %127, %128 : vector<8x1xf32>
    %130 = vector.broadcast %129 : vector<8x1xf32> to vector<8x32xf32>
    %131 = arith.subf %125, %130 : vector<8x32xf32>
    %132 = vector.broadcast %129 : vector<8x1xf32> to vector<8x32xf32>
    %133 = arith.subf %125, %132 : vector<8x32xf32>
    %134 = arith.mulf %131, %133 : vector<8x32xf32>
    %cst_47 = arith.constant dense<0.000000e+00> : vector<8xf32>
    %135 = vector.multi_reduction <add>, %134, %cst_47 [1] : vector<8x32xf32> to vector<8xf32>
    %136 = vector.shape_cast %135 : vector<8xf32> to vector<8x1xf32>
    %cst_48 = arith.constant 3.200000e+01 : f32
    %137 = vector.broadcast %cst_48 : f32 to vector<8x1xf32>
    %138 = arith.divf %136, %137 : vector<8x1xf32>
    %139 = vector.broadcast %129 : vector<8x1xf32> to vector<8x32xf32>
    %140 = arith.subf %125, %139 : vector<8x32xf32>
    %cst_49 = arith.constant 9.99999974E-6 : f32
    %141 = vector.broadcast %cst_49 : f32 to vector<8x1xf32>
    %142 = arith.addf %138, %141 : vector<8x1xf32>
    %143 = math.rsqrt %142 : vector<8x1xf32>
    %144 = vector.broadcast %143 : vector<8x1xf32> to vector<8x32xf32>
    %145 = arith.mulf %140, %144 : vector<8x32xf32>
    %146 = vector.broadcast %115 : vector<1x32xf32> to vector<8x32xf32>
    %147 = arith.mulf %145, %146 : vector<8x32xf32>
    %148 = vector.broadcast %116 : vector<1x32xf32> to vector<8x32xf32>
    %149 = arith.addf %147, %148 : vector<8x32xf32>
    %150 = arith.truncf %149 : vector<8x32xf32> to vector<8x32xbf16>
    %c1_50 = arith.constant 1 : index
    %c0_51 = arith.constant 0 : index
    %c0_52 = arith.constant 0 : index
    %151 = vector.load %arg2[%c1_50, %c0_51, %c0_52] : memref<3x32x2048xbf16, #tpu.memory_space<vmem>>, vector<1x32x2048xbf16>
    %152 = vector.shape_cast %151 : vector<1x32x2048xbf16> to vector<32x2048xbf16>
    %cst_53 = arith.constant dense<0.000000e+00> : vector<8x2048xf32>
    %153 = tpu.matmul %150, %152, %cst_53 {dimension_numbers = #tpu.dot_dimension_numbers<[1], [0], [0], [1], [0, 0, 1, 1], [], []>} : vector<8x32xbf16>, vector<32x2048xbf16>, vector<8x2048xf32> -> vector<8x2048xf32>
    %c1_54 = arith.constant 1 : index
    %c0_55 = arith.constant 0 : index
    %154 = vector.load %arg4[%c1_54, %c0_55] : memref<3x2048xf32, #tpu.memory_space<vmem>>, vector<1x2048xf32>
    %155 = vector.shape_cast %154 : vector<1x2048xf32> to vector<2048xf32>
    %156 = vector.shape_cast %155 : vector<2048xf32> to vector<1x2048xf32>
    %157 = vector.broadcast %156 : vector<1x2048xf32> to vector<8x2048xf32>
    %158 = arith.addf %153, %157 : vector<8x2048xf32>
    %cst_56 = arith.constant 5.000000e-01 : f32
    %159 = vector.broadcast %cst_56 : f32 to vector<8x2048xf32>
    %160 = arith.mulf %159, %158 : vector<8x2048xf32>
    %cst_57 = arith.constant 0.707106769 : f32
    %161 = vector.broadcast %cst_57 : f32 to vector<8x2048xf32>
    %162 = arith.mulf %158, %161 : vector<8x2048xf32>
    %163 = math.erf %162 : vector<8x2048xf32>
    %cst_58 = arith.constant 1.000000e+00 : f32
    %164 = vector.broadcast %cst_58 : f32 to vector<8x2048xf32>
    %165 = arith.addf %164, %163 : vector<8x2048xf32>
    %166 = arith.mulf %160, %165 : vector<8x2048xf32>
    %167 = arith.truncf %166 : vector<8x2048xf32> to vector<8x2048xbf16>
    %c1_59 = arith.constant 1 : index
    %c0_60 = arith.constant 0 : index
    %c0_61 = arith.constant 0 : index
    %168 = vector.load %arg3[%c1_59, %c0_60, %c0_61] : memref<3x32x2048xbf16, #tpu.memory_space<vmem>>, vector<1x32x2048xbf16>
    %169 = vector.shape_cast %168 : vector<1x32x2048xbf16> to vector<32x2048xbf16>
    %cst_62 = arith.constant dense<0.000000e+00> : vector<8x32xf32>
    %170 = tpu.matmul %167, %169, %cst_62 {dimension_numbers = #tpu.dot_dimension_numbers<[1], [1], [0], [0], [0, 0, 1, 0], [], []>} : vector<8x2048xbf16>, vector<32x2048xbf16>, vector<8x32xf32> -> vector<8x32xf32>
    %171 = vector.broadcast %117 : vector<1x32xf32> to vector<8x32xf32>
    %172 = arith.addf %170, %171 : vector<8x32xf32>
    %cst_63 = arith.constant dense<0.000000e+00> : vector<8xf32>
    %173 = vector.multi_reduction <add>, %172, %cst_63 [1] : vector<8x32xf32> to vector<8xf32>
    %174 = vector.shape_cast %173 : vector<8xf32> to vector<8x1xf32>
    %cst_64 = arith.constant 3.200000e+01 : f32
    %175 = vector.broadcast %cst_64 : f32 to vector<8x1xf32>
    %176 = arith.divf %174, %175 : vector<8x1xf32>
    %177 = vector.broadcast %176 : vector<8x1xf32> to vector<8x32xf32>
    %178 = arith.subf %172, %177 : vector<8x32xf32>
    %179 = vector.broadcast %176 : vector<8x1xf32> to vector<8x32xf32>
    %180 = arith.subf %172, %179 : vector<8x32xf32>
    %181 = arith.mulf %178, %180 : vector<8x32xf32>
    %cst_65 = arith.constant dense<0.000000e+00> : vector<8xf32>
    %182 = vector.multi_reduction <add>, %181, %cst_65 [1] : vector<8x32xf32> to vector<8xf32>
    %183 = vector.shape_cast %182 : vector<8xf32> to vector<8x1xf32>
    %cst_66 = arith.constant 3.200000e+01 : f32
    %184 = vector.broadcast %cst_66 : f32 to vector<8x1xf32>
    %185 = arith.divf %183, %184 : vector<8x1xf32>
    %186 = vector.broadcast %176 : vector<8x1xf32> to vector<8x32xf32>
    %187 = arith.subf %172, %186 : vector<8x32xf32>
    %cst_67 = arith.constant 9.99999974E-6 : f32
    %188 = vector.broadcast %cst_67 : f32 to vector<8x1xf32>
    %189 = arith.addf %185, %188 : vector<8x1xf32>
    %190 = math.rsqrt %189 : vector<8x1xf32>
    %191 = vector.broadcast %190 : vector<8x1xf32> to vector<8x32xf32>
    %192 = arith.mulf %187, %191 : vector<8x32xf32>
    %193 = vector.broadcast %118 : vector<1x32xf32> to vector<8x32xf32>
    %194 = arith.mulf %192, %193 : vector<8x32xf32>
    %195 = vector.broadcast %119 : vector<1x32xf32> to vector<8x32xf32>
    %196 = arith.addf %194, %195 : vector<8x32xf32>
    %cst_68 = arith.constant 5.000000e-01 : f32
    %197 = vector.broadcast %cst_68 : f32 to vector<8x32xf32>
    %198 = arith.mulf %197, %196 : vector<8x32xf32>
    %cst_69 = arith.constant 0.707106769 : f32
    %199 = vector.broadcast %cst_69 : f32 to vector<8x32xf32>
    %200 = arith.mulf %196, %199 : vector<8x32xf32>
    %201 = math.erf %200 : vector<8x32xf32>
    %cst_70 = arith.constant 1.000000e+00 : f32
    %202 = vector.broadcast %cst_70 : f32 to vector<8x32xf32>
    %203 = arith.addf %202, %201 : vector<8x32xf32>
    %204 = arith.mulf %198, %203 : vector<8x32xf32>
    %205 = arith.addf %149, %204 : vector<8x32xf32>
    %cst_71 = arith.constant 5.000000e-01 : f32
    %206 = vector.broadcast %cst_71 : f32 to vector<8x32xf32>
    %207 = arith.mulf %205, %206 : vector<8x32xf32>
    %208 = arith.addf %207, %125 : vector<8x32xf32>
    %cst_72 = arith.constant 5.000000e-01 : f32
    %209 = vector.broadcast %cst_72 : f32 to vector<8x32xf32>
    %210 = arith.mulf %208, %209 : vector<8x32xf32>
    %211 = vector.broadcast %120 : vector<1x32xf32> to vector<8x32xf32>
    %212 = arith.mulf %210, %211 : vector<8x32xf32>
    %cst_73 = arith.constant dense<0.000000e+00> : vector<8xf32>
    %213 = vector.multi_reduction <add>, %212, %cst_73 [1] : vector<8x32xf32> to vector<8xf32>
    %c1_74 = arith.constant 1 : index
    %c0_75 = arith.constant 0 : index
    %214 = memref.load %arg6[%c1_74, %c0_75] : memref<3x1xf32, #tpu.memory_space<smem>>
    %215 = vector.broadcast %214 : f32 to vector<8xf32>
    %216 = arith.addf %213, %215 : vector<8xf32>
    %c2 = arith.constant 2 : index
    %c0_76 = arith.constant 0 : index
    %c0_77 = arith.constant 0 : index
    %217 = vector.load %arg5[%c2, %c0_76, %c0_77] : memref<3x7x32xf32, #tpu.memory_space<vmem>>, vector<1x7x32xf32>
    %218 = vector.shape_cast %217 : vector<1x7x32xf32> to vector<7x32xf32>
    %219 = vector.extract_strided_slice %218 {offsets = [0, 0], sizes = [1, 32], strides = [1, 1]} : vector<7x32xf32> to vector<1x32xf32>
    %220 = vector.extract_strided_slice %218 {offsets = [1, 0], sizes = [1, 32], strides = [1, 1]} : vector<7x32xf32> to vector<1x32xf32>
    %221 = vector.extract_strided_slice %218 {offsets = [2, 0], sizes = [1, 32], strides = [1, 1]} : vector<7x32xf32> to vector<1x32xf32>
    %222 = vector.extract_strided_slice %218 {offsets = [3, 0], sizes = [1, 32], strides = [1, 1]} : vector<7x32xf32> to vector<1x32xf32>
    %223 = vector.extract_strided_slice %218 {offsets = [4, 0], sizes = [1, 32], strides = [1, 1]} : vector<7x32xf32> to vector<1x32xf32>
    %224 = vector.extract_strided_slice %218 {offsets = [5, 0], sizes = [1, 32], strides = [1, 1]} : vector<7x32xf32> to vector<1x32xf32>
    %225 = vector.extract_strided_slice %218 {offsets = [6, 0], sizes = [1, 32], strides = [1, 1]} : vector<7x32xf32> to vector<1x32xf32>
    %c2_78 = arith.constant 2 : index
    %c0_79 = arith.constant 0 : index
    %c0_80 = arith.constant 0 : index
    %226 = vector.load %arg1[%c2_78, %c0_79, %c0_80] : memref<3x32x32xbf16, #tpu.memory_space<vmem>>, vector<1x32x32xbf16>
    %227 = vector.shape_cast %226 : vector<1x32x32xbf16> to vector<32x32xbf16>
    %cst_81 = arith.constant dense<0.000000e+00> : vector<8x32xf32>
    %228 = tpu.matmul %6, %227, %cst_81 {dimension_numbers = #tpu.dot_dimension_numbers<[1], [0], [0], [1], [0, 0, 1, 1], [], []>} : vector<8x32xbf16>, vector<32x32xbf16>, vector<8x32xf32> -> vector<8x32xf32>
    %229 = vector.broadcast %219 : vector<1x32xf32> to vector<8x32xf32>
    %230 = arith.addf %228, %229 : vector<8x32xf32>
    %cst_82 = arith.constant dense<0.000000e+00> : vector<8xf32>
    %231 = vector.multi_reduction <add>, %230, %cst_82 [1] : vector<8x32xf32> to vector<8xf32>
    %232 = vector.shape_cast %231 : vector<8xf32> to vector<8x1xf32>
    %cst_83 = arith.constant 3.200000e+01 : f32
    %233 = vector.broadcast %cst_83 : f32 to vector<8x1xf32>
    %234 = arith.divf %232, %233 : vector<8x1xf32>
    %235 = vector.broadcast %234 : vector<8x1xf32> to vector<8x32xf32>
    %236 = arith.subf %230, %235 : vector<8x32xf32>
    %237 = vector.broadcast %234 : vector<8x1xf32> to vector<8x32xf32>
    %238 = arith.subf %230, %237 : vector<8x32xf32>
    %239 = arith.mulf %236, %238 : vector<8x32xf32>
    %cst_84 = arith.constant dense<0.000000e+00> : vector<8xf32>
    %240 = vector.multi_reduction <add>, %239, %cst_84 [1] : vector<8x32xf32> to vector<8xf32>
    %241 = vector.shape_cast %240 : vector<8xf32> to vector<8x1xf32>
    %cst_85 = arith.constant 3.200000e+01 : f32
    %242 = vector.broadcast %cst_85 : f32 to vector<8x1xf32>
    %243 = arith.divf %241, %242 : vector<8x1xf32>
    %244 = vector.broadcast %234 : vector<8x1xf32> to vector<8x32xf32>
    %245 = arith.subf %230, %244 : vector<8x32xf32>
    %cst_86 = arith.constant 9.99999974E-6 : f32
    %246 = vector.broadcast %cst_86 : f32 to vector<8x1xf32>
    %247 = arith.addf %243, %246 : vector<8x1xf32>
    %248 = math.rsqrt %247 : vector<8x1xf32>
    %249 = vector.broadcast %248 : vector<8x1xf32> to vector<8x32xf32>
    %250 = arith.mulf %245, %249 : vector<8x32xf32>
    %251 = vector.broadcast %220 : vector<1x32xf32> to vector<8x32xf32>
    %252 = arith.mulf %250, %251 : vector<8x32xf32>
    %253 = vector.broadcast %221 : vector<1x32xf32> to vector<8x32xf32>
    %254 = arith.addf %252, %253 : vector<8x32xf32>
    %255 = arith.truncf %254 : vector<8x32xf32> to vector<8x32xbf16>
    %c2_87 = arith.constant 2 : index
    %c0_88 = arith.constant 0 : index
    %c0_89 = arith.constant 0 : index
    %256 = vector.load %arg2[%c2_87, %c0_88, %c0_89] : memref<3x32x2048xbf16, #tpu.memory_space<vmem>>, vector<1x32x2048xbf16>
    %257 = vector.shape_cast %256 : vector<1x32x2048xbf16> to vector<32x2048xbf16>
    %cst_90 = arith.constant dense<0.000000e+00> : vector<8x2048xf32>
    %258 = tpu.matmul %255, %257, %cst_90 {dimension_numbers = #tpu.dot_dimension_numbers<[1], [0], [0], [1], [0, 0, 1, 1], [], []>} : vector<8x32xbf16>, vector<32x2048xbf16>, vector<8x2048xf32> -> vector<8x2048xf32>
    %c2_91 = arith.constant 2 : index
    %c0_92 = arith.constant 0 : index
    %259 = vector.load %arg4[%c2_91, %c0_92] : memref<3x2048xf32, #tpu.memory_space<vmem>>, vector<1x2048xf32>
    %260 = vector.shape_cast %259 : vector<1x2048xf32> to vector<2048xf32>
    %261 = vector.shape_cast %260 : vector<2048xf32> to vector<1x2048xf32>
    %262 = vector.broadcast %261 : vector<1x2048xf32> to vector<8x2048xf32>
    %263 = arith.addf %258, %262 : vector<8x2048xf32>
    %cst_93 = arith.constant 5.000000e-01 : f32
    %264 = vector.broadcast %cst_93 : f32 to vector<8x2048xf32>
    %265 = arith.mulf %264, %263 : vector<8x2048xf32>
    %cst_94 = arith.constant 0.707106769 : f32
    %266 = vector.broadcast %cst_94 : f32 to vector<8x2048xf32>
    %267 = arith.mulf %263, %266 : vector<8x2048xf32>
    %268 = math.erf %267 : vector<8x2048xf32>
    %cst_95 = arith.constant 1.000000e+00 : f32
    %269 = vector.broadcast %cst_95 : f32 to vector<8x2048xf32>
    %270 = arith.addf %269, %268 : vector<8x2048xf32>
    %271 = arith.mulf %265, %270 : vector<8x2048xf32>
    %272 = arith.truncf %271 : vector<8x2048xf32> to vector<8x2048xbf16>
    %c2_96 = arith.constant 2 : index
    %c0_97 = arith.constant 0 : index
    %c0_98 = arith.constant 0 : index
    %273 = vector.load %arg3[%c2_96, %c0_97, %c0_98] : memref<3x32x2048xbf16, #tpu.memory_space<vmem>>, vector<1x32x2048xbf16>
    %274 = vector.shape_cast %273 : vector<1x32x2048xbf16> to vector<32x2048xbf16>
    %cst_99 = arith.constant dense<0.000000e+00> : vector<8x32xf32>
    %275 = tpu.matmul %272, %274, %cst_99 {dimension_numbers = #tpu.dot_dimension_numbers<[1], [1], [0], [0], [0, 0, 1, 0], [], []>} : vector<8x2048xbf16>, vector<32x2048xbf16>, vector<8x32xf32> -> vector<8x32xf32>
    %276 = vector.broadcast %222 : vector<1x32xf32> to vector<8x32xf32>
    %277 = arith.addf %275, %276 : vector<8x32xf32>
    %cst_100 = arith.constant dense<0.000000e+00> : vector<8xf32>
    %278 = vector.multi_reduction <add>, %277, %cst_100 [1] : vector<8x32xf32> to vector<8xf32>
    %279 = vector.shape_cast %278 : vector<8xf32> to vector<8x1xf32>
    %cst_101 = arith.constant 3.200000e+01 : f32
    %280 = vector.broadcast %cst_101 : f32 to vector<8x1xf32>
    %281 = arith.divf %279, %280 : vector<8x1xf32>
    %282 = vector.broadcast %281 : vector<8x1xf32> to vector<8x32xf32>
    %283 = arith.subf %277, %282 : vector<8x32xf32>
    %284 = vector.broadcast %281 : vector<8x1xf32> to vector<8x32xf32>
    %285 = arith.subf %277, %284 : vector<8x32xf32>
    %286 = arith.mulf %283, %285 : vector<8x32xf32>
    %cst_102 = arith.constant dense<0.000000e+00> : vector<8xf32>
    %287 = vector.multi_reduction <add>, %286, %cst_102 [1] : vector<8x32xf32> to vector<8xf32>
    %288 = vector.shape_cast %287 : vector<8xf32> to vector<8x1xf32>
    %cst_103 = arith.constant 3.200000e+01 : f32
    %289 = vector.broadcast %cst_103 : f32 to vector<8x1xf32>
    %290 = arith.divf %288, %289 : vector<8x1xf32>
    %291 = vector.broadcast %281 : vector<8x1xf32> to vector<8x32xf32>
    %292 = arith.subf %277, %291 : vector<8x32xf32>
    %cst_104 = arith.constant 9.99999974E-6 : f32
    %293 = vector.broadcast %cst_104 : f32 to vector<8x1xf32>
    %294 = arith.addf %290, %293 : vector<8x1xf32>
    %295 = math.rsqrt %294 : vector<8x1xf32>
    %296 = vector.broadcast %295 : vector<8x1xf32> to vector<8x32xf32>
    %297 = arith.mulf %292, %296 : vector<8x32xf32>
    %298 = vector.broadcast %223 : vector<1x32xf32> to vector<8x32xf32>
    %299 = arith.mulf %297, %298 : vector<8x32xf32>
    %300 = vector.broadcast %224 : vector<1x32xf32> to vector<8x32xf32>
    %301 = arith.addf %299, %300 : vector<8x32xf32>
    %cst_105 = arith.constant 5.000000e-01 : f32
    %302 = vector.broadcast %cst_105 : f32 to vector<8x32xf32>
    %303 = arith.mulf %302, %301 : vector<8x32xf32>
    %cst_106 = arith.constant 0.707106769 : f32
    %304 = vector.broadcast %cst_106 : f32 to vector<8x32xf32>
    %305 = arith.mulf %301, %304 : vector<8x32xf32>
    %306 = math.erf %305 : vector<8x32xf32>
    %cst_107 = arith.constant 1.000000e+00 : f32
    %307 = vector.broadcast %cst_107 : f32 to vector<8x32xf32>
    %308 = arith.addf %307, %306 : vector<8x32xf32>
    %309 = arith.mulf %303, %308 : vector<8x32xf32>
    %310 = arith.addf %254, %309 : vector<8x32xf32>
    %cst_108 = arith.constant 5.000000e-01 : f32
    %311 = vector.broadcast %cst_108 : f32 to vector<8x32xf32>
    %312 = arith.mulf %310, %311 : vector<8x32xf32>
    %313 = arith.addf %312, %230 : vector<8x32xf32>
    %cst_109 = arith.constant 5.000000e-01 : f32
    %314 = vector.broadcast %cst_109 : f32 to vector<8x32xf32>
    %315 = arith.mulf %313, %314 : vector<8x32xf32>
    %316 = vector.broadcast %225 : vector<1x32xf32> to vector<8x32xf32>
    %317 = arith.mulf %315, %316 : vector<8x32xf32>
    %cst_110 = arith.constant dense<0.000000e+00> : vector<8xf32>
    %318 = vector.multi_reduction <add>, %317, %cst_110 [1] : vector<8x32xf32> to vector<8xf32>
    %c2_111 = arith.constant 2 : index
    %c0_112 = arith.constant 0 : index
    %319 = memref.load %arg6[%c2_111, %c0_112] : memref<3x1xf32, #tpu.memory_space<smem>>
    %320 = vector.broadcast %319 : f32 to vector<8xf32>
    %321 = arith.addf %318, %320 : vector<8xf32>
    %322 = vector.shape_cast %111 : vector<8xf32> to vector<1x8xf32>
    %323 = vector.shape_cast %216 : vector<8xf32> to vector<1x8xf32>
    %324 = vector.shape_cast %321 : vector<8xf32> to vector<1x8xf32>
    %325 = tpu.concatenate %322, %323, %324 in 0 : vector<1x8xf32>, vector<1x8xf32>, vector<1x8xf32> -> vector<3x8xf32>
    %c0_113 = arith.constant 0 : index
    %c0_114 = arith.constant 0 : index
    %326 = vector.load %arg7[%c0_113, %c0_114] : memref<3x8xf32, #tpu.memory_space<vmem>>, vector<3x8xf32>
    tpu.vector_store %arg7[%c0_113, %c0_114], %325 {strides = array<i32>} : memref<3x8xf32, #tpu.memory_space<vmem>>, vector<3x8xf32>,
    return
  }
}

</mosaic_0001>

<llo_original>
// kernel: multitask_mlp_forward.1
$region0: #{multitask_mlp_forward.1}
  #allocation0 [shape = 'u32[]', space=smem, size = 0x4, offset = 0x4, fixed_abs, tag = 'smem constant byte address 0x4 - core index']
  #allocation1 [shape = 'u32[72,128]{1,0:T(1,128)}', space=vmem, size = 0x9000, scoped, tag = 'internal scratch']
  %s0 = inlined_call_operand.hbm [shape: f32[8,32], index: 0, kind: input, shape index: {}]
  %s1 = inlined_call_operand.hbm [shape: bf16[3,32,32], index: 1, kind: input, shape index: {}]
  %s2 = inlined_call_operand.hbm [shape: bf16[3,32,2048], index: 2, kind: input, shape index: {}]
  %s3 = inlined_call_operand.hbm [shape: bf16[3,32,2048], index: 3, kind: input, shape index: {}]
  %s4 = inlined_call_operand.hbm [shape: f32[3,2048], index: 4, kind: input, shape index: {}]
  %s5 = inlined_call_operand.hbm [shape: f32[3,7,32], index: 5, kind: input, shape index: {}]
  %s6 = inlined_call_operand.vmem [shape: f32[3,1], index: 6, kind: input, shape index: {}]
  %s7 = inlined_call_operand.vmem [shape: f32[3,8], index: 7, kind: output, shape index: {}]
  %s8 = sld [smem:[#allocation0]]
  $region66: #{multitask_mlp_forward.1} parent=0
    _
  %s10 = ssub.s32 1, %s8
  %s11 = scalar_select 0, %s10, %s8
  $region1: #{multitask_mlp_forward.1} parent=0
    #allocation2 [shape = 'u8[4096]{0}', space=vmem, size = 0x1000, scoped, tag = 'input window, operand 0, single buffered']
    #allocation3 [shape = 's32[1]{0}', space=sflag, size = 0x4, scoped, tag = 'scoped memory for multitask_mlp_forward.1']
    #allocation4 [shape = 's32[1]{0}', space=sflag, size = 0x4, scoped, tag = 'scoped memory for multitask_mlp_forward.1']
    #allocation5 [shape = 'u8[24576]{0}', space=vmem, size = 0x6000, scoped, tag = 'input window, operand 1, single buffered']
    #allocation6 [shape = 's32[1]{0}', space=sflag, size = 0x4, scoped, tag = 'scoped memory for multitask_mlp_forward.1']
    #allocation7 [shape = 'u8[393216]{0}', space=vmem, size = 0x60000, scoped, tag = 'input window, operand 2, single buffered']
    #allocation8 [shape = 'u8[393216]{0}', space=vmem, size = 0x60000, scoped, tag = 'input window, operand 3, single buffered']
    #allocation9 [shape = 's32[1]{0}', space=sflag, size = 0x4, scoped, tag = 'scoped memory for multitask_mlp_forward.1']
    #allocation10 [shape = 'u8[32768]{0}', space=vmem, size = 0x8000, scoped, tag = 'input window, operand 4, single buffered']
    #allocation11 [shape = 'u8[12288]{0}', space=vmem, size = 0x3000, scoped, tag = 'input window, operand 5, single buffered']
    #allocation12 [shape = 's32[1]{0}', space=sflag, size = 0x4, scoped, tag = 'scoped memory for multitask_mlp_forward.1']
    #allocation13 [shape = 'u8[2048]{0}', space=smem, size = 0x800, scoped, tag = 'input window, operand 6, single buffered']
    %12 = vsyncpa [#allocation3], 0
    %13 = vsyncpa [#allocation6], 0
    %14 = vsyncpa [#allocation9], 0
    %15 = vsyncpa [#allocation12], 0
    %16 = vsyncpa [#allocation4], 0
    // Predicated region
    $region2: #{multitask_mlp_forward.1} parent=1 // pred_check
      _
    $region3: #{multitask_mlp_forward.1} parent=1 // pred_check_branch
      %18 = sbr.rel (0) target = $region5
    $region4: #{multitask_mlp_forward.1} parent=1 // pred_region
      %20 = vsyncadd [#allocation3], 0
      %s22 = sshll.u32 %s0, 4
      %s23 = int_to_ptr.hbm [resolvable:$true] %s22
      %s24 = sshll.u32 [#allocation2], 4
      %s25 = int_to_ptr.vmem [resolvable:$true] %s24
      %27 = dma.hbm_to_vmem [thread:$0]  %s23, 128, %s25, [#allocation3]
    $region5: #{multitask_mlp_forward.1} parent=1 // pred_fallthru
      _
    // Predicated region
    $region6: #{multitask_mlp_forward.1} parent=1 // pred_check
      _
    $region7: #{multitask_mlp_forward.1} parent=1 // pred_check_branch
      %29 = sbr.rel (0) target = $region9
    $region8: #{multitask_mlp_forward.1} parent=1 // pred_region
      %31 = vsyncadd [#allocation6], 0
      %s32 = sshll.u32 %s1, 4
      %s33 = int_to_ptr.hbm [resolvable:$true] %s32
      %s34 = sshll.u32 [#allocation5], 4
      %s35 = int_to_ptr.vmem [resolvable:$true] %s34
      %40 = dma.hbm_to_vmem [thread:$0]  %s33, 768, %s35, [#allocation6], 64, 64, 4
    $region9: #{multitask_mlp_forward.1} parent=1 // pred_fallthru
      _
    // Predicated region
    $region10: #{multitask_mlp_forward.1} parent=1 // pred_check
      _
    $region11: #{multitask_mlp_forward.1} parent=1 // pred_check_branch
      %42 = sbr.rel (0) target = $region13
    $region12: #{multitask_mlp_forward.1} parent=1 // pred_region
      %44 = vsyncadd [#allocation6], 0
      %s45 = sshll.u32 %s2, 4
      %s46 = int_to_ptr.hbm [resolvable:$true] %s45
      %s47 = sshll.u32 [#allocation7], 4
      %s48 = int_to_ptr.vmem [resolvable:$true] %s47
      %53 = dma.hbm_to_vmem [thread:$0]  %s46, 12288, %s48, [#allocation6], 1024, 1024, 64
    $region13: #{multitask_mlp_forward.1} parent=1 // pred_fallthru
      _
    // Predicated region
    $region14: #{multitask_mlp_forward.1} parent=1 // pred_check
      _
    $region15: #{multitask_mlp_forward.1} parent=1 // pred_check_branch
      %55 = sbr.rel (0) target = $region17
    $region16: #{multitask_mlp_forward.1} parent=1 // pred_region
      %57 = vsyncadd [#allocation9], 0
      %s58 = sshll.u32 %s3, 4
      %s59 = int_to_ptr.hbm [resolvable:$true] %s58
      %s60 = sshll.u32 [#allocation8], 4
      %s61 = int_to_ptr.vmem [resolvable:$true] %s60
      %66 = dma.hbm_to_vmem [thread:$0]  %s59, 12288, %s61, [#allocation9], 1024, 1024, 64
    $region17: #{multitask_mlp_forward.1} parent=1 // pred_fallthru
      _
    // Predicated region
    $region18: #{multitask_mlp_forward.1} parent=1 // pred_check
      _
    $region19: #{multitask_mlp_forward.1} parent=1 // pred_check_branch
      %68 = sbr.rel (0) target = $region21
    $region20: #{multitask_mlp_forward.1} parent=1 // pred_region
      %70 = vsyncadd [#allocation9], 0
      %s72 = sshll.u32 %s4, 4
      %s73 = int_to_ptr.hbm [resolvable:$true] %s72
      %s74 = sshll.u32 [#allocation10], 4
      %s75 = int_to_ptr.vmem [resolvable:$true] %s74
      %77 = dma.hbm_to_vmem [thread:$0]  %s73, 1024, %s75, [#allocation9]
    $region21: #{multitask_mlp_forward.1} parent=1 // pred_fallthru
      _
    // Predicated region
    $region22: #{multitask_mlp_forward.1} parent=1 // pred_check
      _
    $region23: #{multitask_mlp_forward.1} parent=1 // pred_check_branch
      %79 = sbr.rel (0) target = $region25
    $region24: #{multitask_mlp_forward.1} parent=1 // pred_region
      %81 = vsyncadd [#allocation12], 0
      %s82 = sshll.u32 %s5, 4
      %s83 = int_to_ptr.hbm [resolvable:$true] %s82
      %s84 = sshll.u32 [#allocation11], 4
      %s85 = int_to_ptr.vmem [resolvable:$true] %s84
      %90 = dma.hbm_to_vmem [thread:$0]  %s83, 384, %s85, [#allocation12], 128, 128, 8
    $region25: #{multitask_mlp_forward.1} parent=1 // pred_fallthru
      _
    // Predicated region
    $region26: #{multitask_mlp_forward.1} parent=1 // pred_check
      _
    $region27: #{multitask_mlp_forward.1} parent=1 // pred_check_branch
      %92 = sbr.rel (0) target = $region29
    $region28: #{multitask_mlp_forward.1} parent=1 // pred_region
      %94 = vsyncadd [#allocation4], 0
      %s96 = sshll.u32 %s6, 4
      %s97 = int_to_ptr.vmem [resolvable:$true] %s96
      %99 = dma.vmem_to_smem %s97, 64, [#allocation13], [#allocation4]
    $region29: #{multitask_mlp_forward.1} parent=1 // pred_fallthru
      _
    // Predicated region
    $region30: #{multitask_mlp_forward.1} parent=1 // pred_check
      _
    $region31: #{multitask_mlp_forward.1} parent=1 // pred_check_branch
      %101 = sbr.rel (0) target = $region33
    $region32: #{multitask_mlp_forward.1} parent=1 // pred_region
      %103 = dma.done [#allocation3], 128
    $region33: #{multitask_mlp_forward.1} parent=1 // pred_fallthru
      _
    // Predicated region
    $region34: #{multitask_mlp_forward.1} parent=1 // pred_check
      _
    $region35: #{multitask_mlp_forward.1} parent=1 // pred_check_branch
      %105 = sbr.rel (0) target = $region37
    $region36: #{multitask_mlp_forward.1} parent=1 // pred_region
      %107 = dma.done [#allocation6], 768
    $region37: #{multitask_mlp_forward.1} parent=1 // pred_fallthru
      _
    // Predicated region
    $region38: #{multitask_mlp_forward.1} parent=1 // pred_check
      _
    $region39: #{multitask_mlp_forward.1} parent=1 // pred_check_branch
      %109 = sbr.rel (0) target = $region41
    $region40: #{multitask_mlp_forward.1} parent=1 // pred_region
      %111 = dma.done [#allocation6], 12288
    $region41: #{multitask_mlp_forward.1} parent=1 // pred_fallthru
      _
    // Predicated region
    $region42: #{multitask_mlp_forward.1} parent=1 // pred_check
      _
    $region43: #{multitask_mlp_forward.1} parent=1 // pred_check_branch
      %113 = sbr.rel (0) target = $region45
    $region44: #{multitask_mlp_forward.1} parent=1 // pred_region
      %115 = dma.done [#allocation9], 12288
    $region45: #{multitask_mlp_forward.1} parent=1 // pred_fallthru
      _
    // Predicated region
    $region46: #{multitask_mlp_forward.1} parent=1 // pred_check
      _
    $region47: #{multitask_mlp_forward.1} parent=1 // pred_check_branch
      %117 = sbr.rel (0) target = $region49
    $region48: #{multitask_mlp_forward.1} parent=1 // pred_region
      %119 = dma.done [#allocation9], 1024
    $region49: #{multitask_mlp_forward.1} parent=1 // pred_fallthru
      _
    // Predicated region
    $region50: #{multitask_mlp_forward.1} parent=1 // pred_check
      _
    $region51: #{multitask_mlp_forward.1} parent=1 // pred_check_branch
      %121 = sbr.rel (0) target = $region53
    $region52: #{multitask_mlp_forward.1} parent=1 // pred_region
      %123 = dma.done [#allocation12], 384
    $region53: #{multitask_mlp_forward.1} parent=1 // pred_fallthru
      _
    // Predicated region
    $region54: #{multitask_mlp_forward.1} parent=1 // pred_check
      _
    $region55: #{multitask_mlp_forward.1} parent=1 // pred_check_branch
      %125 = sbr.rel (0) target = $region57
    $region56: #{multitask_mlp_forward.1} parent=1 // pred_region
      %127 = dma.done [#allocation4], 64
    $region57: #{multitask_mlp_forward.1} parent=1 // pred_fallthru
      _
    %128 = sfence
    %v130 = vld [vmem:[#allocation2] sm:$0xff]
    %v131 = vxor.u32 %v130, 2147483648
    %v132 = vmul.f32 %v131, 1.442695
    %v133 = vpow.pop %v132
    %v134 = vadd.f32 %v133, 1.0
    %v135 = vrcp.pop %v134
    %v136 = vmul.f32 %v134, %v135
    %v137 = vsub.f32 1.0, %v136
    %v138 = vmul.f32 %v135, %v137
    %v139 = vadd.f32 %v135, %v138
    %vm140 = vweird.f32 %v134
    %vm141 = vweird.f32 %v135
    %vm142 = vmor %vm140, %vm141
    %v143 = vsel %vm142, %v135, %v139
    %v144 = vand.u32 2147483647, %v134
    %vm145 = vcmp.eq.f32.partialorder %v144, 8.507059e+37
    %v146 = vand.u32 %v134, 2147483648
    %v147 = vor.u32 1.1754944e-38, %v146
    %v148 = vsel %vm145, %v147, %v143
    %v149 = vmul.f32 1.0, %v148
    %v150 = vpack.c.bf16 %v149, %v149
    %v151 = vld [vmem:[#allocation11] sm:$0x7f]
    %v152 = vld [vmem:[#allocation5] sm:$0xf]
    %v153 = vld [vmem:[#allocation5 + $0x4] sm:$0xf]
    %v154 = vld [vmem:[#allocation5 + $0x8] sm:$0xf]
    %v155 = vld [vmem:[#allocation5 + $0xc] sm:$0xf]
    %v156 = vperm.slane %v151, 0
    %v161 = vunpack.c.l.b16 %v152
    %v162 = vunpack.c.l.b16 %v153
    %v163 = vunpack.c.l.b16 %v154
    %v164 = vunpack.c.l.b16 %v155
    %v165 = vpack.c.b16 %v162, %v161
    %v166 = vpack.c.b16 %v164, %v163
    %vm169 = vcmask 261120
    %v171 = vsel %vm169, %v150, 0
    %173 = vmatpush.bf16.msra.mxu0 0
    %174 = vmatpush.bf16.msra.mxu0 0
    %175 = vmatpush.bf16.msra.mxu0 0
    %176 = vmatpush.bf16.msra.mxu0 0
    %177 = vmatpush.bf16.msra.mxu0 0
    %178 = vmatpush.bf16.msra.mxu0 0
    %179 = vmatpush.bf16.msra.mxu0 %v166
    %180 = vmatpush.bf16.msra.mxu0 %v165
    %181 = vmatmul.bf16.gmra.mxu0 %v171
    %v182 = vpop.f32.mrf.mxu0
    %v183 = vadd.f32 %v156, %v182
    %v184 = vpop.f32.mrf.mxu0
    %185 = vdwg.mxu0
    %v186 = vsel %vm169, %v183, 0.0
    %187 = vadd.xlane.f32.xlu0 %v186
    %v188 = vpop.xlane.xlu0 %187
    %v189 = vrcp.pop 32.0
    %v190 = vmul.f32 32.0, %v189
    %v191 = vsub.f32 1.0, %v190
    %v192 = vmul.f32 %v189, %v191
    %v193 = vadd.f32 %v189, %v192
    %vm194 = vweird.f32 %v189
    %v195 = vsel %vm194, %v189, %v193
    %v196 = vmul.f32 %v188, %v195
    %v197 = vsub.f32 %v183, %v196
    %v198 = vmul.f32 %v197, %v197
    %v199 = vsel %vm169, %v198, 0.0
    %200 = vadd.xlane.f32.xlu0 %v199
    %v201 = vpop.xlane.xlu0 %200
    %v202 = vmul.f32 %v201, %v195
    %v203 = vadd.f32 %v202, 1e-05
    %v204 = vrsqrt.pop %v203
    %v205 = vmul.f32 %v204, %v203
    %v206 = vmul.f32 %v205, %v204
    %v207 = vmul.f32 0.5, %v206
    %v208 = vsub.f32 1.5, %v207
    %v209 = vmul.f32 %v204, %v208
    %vm210 = vweird.f32 %v203
    %vm211 = vweird.f32 %v204
    %vm212 = vmor %vm210, %vm211
    %v213 = vsel %vm212, %v204, %v209
    %v214 = vmul.f32 %v197, %v213
    %v215 = vperm.slane %v151, 1
    %v216 = vmul.f32 %v214, %v215
    %v217 = vperm.slane %v151, 2
    %v218 = vadd.f32 %v216, %v217
    %v219 = vpack.c.bf16 %v218, %v218
    %v220 = vld [vmem:[#allocation7] sm:$0xff]
    %v221 = vld [vmem:[#allocation7 + $0x8] sm:$0xff]
    %v222 = vld [vmem:[#allocation7 + $0x10] sm:$0xff]
    %v223 = vld [vmem:[#allocation7 + $0x18] sm:$0xff]
    %v224 = vld [vmem:[#allocation7 + $0x20] sm:$0xff]
    %v225 = vld [vmem:[#allocation7 + $0x28] sm:$0xff]
    %v226 = vld [vmem:[#allocation7 + $0x30] sm:$0xff]
    %v227 = vld [vmem:[#allocation7 + $0x38] sm:$0xff]
    %v228 = vld [vmem:[#allocation7 + $0x40] sm:$0xff]
    %v229 = vld [vmem:[#allocation7 + $0x48] sm:$0xff]
    %v230 = vld [vmem:[#allocation7 + $0x50] sm:$0xff]
    %v231 = vld [vmem:[#allocation7 + $0x58] sm:$0xff]
    %v232 = vld [vmem:[#allocation7 + $0x60] sm:$0xff]
    %v233 = vld [vmem:[#allocation7 + $0x68] sm:$0xff]
    %v234 = vld [vmem:[#allocation7 + $0x70] sm:$0xff]
    %v235 = vld [vmem:[#allocation7 + $0x78] sm:$0xff]
    %v236 = vld [vmem:[#allocation7 + $0x80] sm:$0xff]
    %v237 = vld [vmem:[#allocation7 + $0x88] sm:$0xff]
    %v238 = vld [vmem:[#allocation7 + $0x90] sm:$0xff]
    %v239 = vld [vmem:[#allocation7 + $0x98] sm:$0xff]
    %v240 = vld [vmem:[#allocation7 + $0xa0] sm:$0xff]
    %v241 = vld [vmem:[#allocation7 + $0xa8] sm:$0xff]
    %v242 = vld [vmem:[#allocation7 + $0xb0] sm:$0xff]
    %v243 = vld [vmem:[#allocation7 + $0xb8] sm:$0xff]
    %v244 = vld [vmem:[#allocation7 + $0xc0] sm:$0xff]
    %v245 = vld [vmem:[#allocation7 + $0xc8] sm:$0xff]
    %v246 = vld [vmem:[#allocation7 + $0xd0] sm:$0xff]
    %v247 = vld [vmem:[#allocation7 + $0xd8] sm:$0xff]
    %v248 = vld [vmem:[#allocation7 + $0xe0] sm:$0xff]
    %v249 = vld [vmem:[#allocation7 + $0xe8] sm:$0xff]
    %v250 = vld [vmem:[#allocation7 + $0xf0] sm:$0xff]
    %v251 = vld [vmem:[#allocation7 + $0xf8] sm:$0xff]
    %v252 = vld [vmem:[#allocation10] ss:$4 sm:$0xff]
    %s253 = scalar_lea.vmem [#allocation10], 32
    %v254 = vld [vmem:[%s253] ss:$4 sm:$0xff]
    %v257 = vperm.slane %v252, 0
    %v258 = vperm.slane %v252, 1
    %v259 = vperm.slane %v252, 2
    %v260 = vperm.slane %v252, 3
    %v261 = vperm.slane %v252, 4
    %v262 = vperm.slane %v252, 5
    %v263 = vperm.slane %v252, 6
    %v264 = vperm.slane %v252, 7
    %v265 = vperm.slane %v254, 0
    %v266 = vperm.slane %v254, 1
    %v267 = vperm.slane %v254, 2
    %v268 = vperm.slane %v254, 3
    %v269 = vperm.slane %v254, 4
    %v270 = vperm.slane %v254, 5
    %v271 = vperm.slane %v254, 6
    %v272 = vperm.slane %v254, 7
    %v321 = vunpack.c.l.b16 %v220
    %v322 = vunpack.c.h.b16 %v220
    %v323 = vunpack.c.l.b16 %v221
    %v324 = vunpack.c.h.b16 %v221
    %v325 = vunpack.c.l.b16 %v222
    %v326 = vunpack.c.h.b16 %v222
    %v327 = vunpack.c.l.b16 %v223
    %v328 = vunpack.c.h.b16 %v223
    %v329 = vunpack.c.l.b16 %v224
    %v330 = vunpack.c.h.b16 %v224
    %v331 = vunpack.c.l.b16 %v225
    %v332 = vunpack.c.h.b16 %v225
    %v333 = vunpack.c.l.b16 %v226
    %v334 = vunpack.c.h.b16 %v226
    %v335 = vunpack.c.l.b16 %v227
    %v336 = vunpack.c.h.b16 %v227
    %v337 = vunpack.c.l.b16 %v228
    %v338 = vunpack.c.h.b16 %v228
    %v339 = vunpack.c.l.b16 %v229
    %v340 = vunpack.c.h.b16 %v229
    %v341 = vunpack.c.l.b16 %v230
    %v342 = vunpack.c.h.b16 %v230
    %v343 = vunpack.c.l.b16 %v231
    %v344 = vunpack.c.h.b16 %v231
    %v345 = vunpack.c.l.b16 %v232
    %v346 = vunpack.c.h.b16 %v232
    %v347 = vunpack.c.l.b16 %v233
    %v348 = vunpack.c.h.b16 %v233
    %v349 = vunpack.c.l.b16 %v234
    %v350 = vunpack.c.h.b16 %v234
    %v351 = vunpack.c.l.b16 %v235
    %v352 = vunpack.c.h.b16 %v235
    %v353 = vunpack.c.l.b16 %v236
    %v354 = vunpack.c.h.b16 %v236
    %v355 = vunpack.c.l.b16 %v237
    %v356 = vunpack.c.h.b16 %v237
    %v357 = vunpack.c.l.b16 %v238
    %v358 = vunpack.c.h.b16 %v238
    %v359 = vunpack.c.l.b16 %v239
    %v360 = vunpack.c.h.b16 %v239
    %v361 = vunpack.c.l.b16 %v240
    %v362 = vunpack.c.h.b16 %v240
    %v363 = vunpack.c.l.b16 %v241
    %v364 = vunpack.c.h.b16 %v241
    %v365 = vunpack.c.l.b16 %v242
    %v366 = vunpack.c.h.b16 %v242
    %v367 = vunpack.c.l.b16 %v243
    %v368 = vunpack.c.h.b16 %v243
    %v369 = vunpack.c.l.b16 %v244
    %v370 = vunpack.c.h.b16 %v244
    %v371 = vunpack.c.l.b16 %v245
    %v372 = vunpack.c.h.b16 %v245
    %v373 = vunpack.c.l.b16 %v246
    %v374 = vunpack.c.h.b16 %v246
    %v375 = vunpack.c.l.b16 %v247
    %v376 = vunpack.c.h.b16 %v247
    %v377 = vunpack.c.l.b16 %v248
    %v378 = vunpack.c.h.b16 %v248
    %v379 = vunpack.c.l.b16 %v249
    %v380 = vunpack.c.h.b16 %v249
    %v381 = vunpack.c.l.b16 %v250
    %v382 = vunpack.c.h.b16 %v250
    %v383 = vunpack.c.l.b16 %v251
    %v384 = vunpack.c.h.b16 %v251
    %v385 = vpack.c.b16 %v337, %v321
    %v386 = vpack.c.b16 %v338, %v322
    %v387 = vpack.c.b16 %v339, %v323
    %v388 = vpack.c.b16 %v340, %v324
    %v389 = vpack.c.b16 %v341, %v325
    %v390 = vpack.c.b16 %v342, %v326
    %v391 = vpack.c.b16 %v343, %v327
    %v392 = vpack.c.b16 %v344, %v328
    %v393 = vpack.c.b16 %v345, %v329
    %v394 = vpack.c.b16 %v346, %v330
    %v395 = vpack.c.b16 %v347, %v331
    %v396 = vpack.c.b16 %v348, %v332
    %v397 = vpack.c.b16 %v349, %v333
    %v398 = vpack.c.b16 %v350, %v334
    %v399 = vpack.c.b16 %v351, %v335
    %v400 = vpack.c.b16 %v352, %v336
    %v401 = vpack.c.b16 %v369, %v353
    %v402 = vpack.c.b16 %v370, %v354
    %v403 = vpack.c.b16 %v371, %v355
    %v404 = vpack.c.b16 %v372, %v356
    %v405 = vpack.c.b16 %v373, %v357
    %v406 = vpack.c.b16 %v374, %v358
    %v407 = vpack.c.b16 %v375, %v359
    %v408 = vpack.c.b16 %v376, %v360
    %v409 = vpack.c.b16 %v377, %v361
    %v410 = vpack.c.b16 %v378, %v362
    %v411 = vpack.c.b16 %v379, %v363
    %v412 = vpack.c.b16 %v380, %v364
    %v413 = vpack.c.b16 %v381, %v365
    %v414 = vpack.c.b16 %v382, %v366
    %v415 = vpack.c.b16 %v383, %v367
    %v416 = vpack.c.b16 %v384, %v368
    %v450 = vsel %vm169, %v219, 0
    %452 = vmatpush.bf16.msra.mxu0 0
    %453 = vmatpush.bf16.msra.mxu0 0
    %454 = vmatpush.bf16.msra.mxu0 0
    %455 = vmatpush.bf16.msra.mxu0 0
    %456 = vmatpush.bf16.msra.mxu0 0
    %457 = vmatpush.bf16.msra.mxu0 0
    %458 = vmatpush.bf16.msra.mxu0 %v401
    %459 = vmatpush.bf16.msra.mxu0 %v385
    %460 = vmatmul.bf16.gmra.mxu0 %v450
    %v461 = vpop.f32.mrf.mxu0
    %v462 = vadd.f32 %v257, %v461
    %v463 = vpop.f32.mrf.mxu0
    %464 = vdwg.mxu0
    %465 = vmatpush.bf16.msra.mxu0 0
    %466 = vmatpush.bf16.msra.mxu0 0
    %467 = vmatpush.bf16.msra.mxu0 0
    %468 = vmatpush.bf16.msra.mxu0 0
    %469 = vmatpush.bf16.msra.mxu0 0
    %470 = vmatpush.bf16.msra.mxu0 0
    %471 = vmatpush.bf16.msra.mxu0 %v402
    %472 = vmatpush.bf16.msra.mxu0 %v386
    %473 = vmatmul.bf16.gmra.mxu0 %v450
    %v474 = vpop.f32.mrf.mxu0
    %v475 = vadd.f32 %v258, %v474
    %v476 = vpop.f32.mrf.mxu0
    %477 = vdwg.mxu0
    %478 = vmatpush.bf16.msra.mxu0 0
    %479 = vmatpush.bf16.msra.mxu0 0
    %480 = vmatpush.bf16.msra.mxu0 0
    %481 = vmatpush.bf16.msra.mxu0 0
    %482 = vmatpush.bf16.msra.mxu0 0
    %483 = vmatpush.bf16.msra.mxu0 0
    %484 = vmatpush.bf16.msra.mxu0 %v403
    %485 = vmatpush.bf16.msra.mxu0 %v387
    %486 = vmatmul.bf16.gmra.mxu0 %v450
    %v487 = vpop.f32.mrf.mxu0
    %v488 = vadd.f32 %v259, %v487
    %v489 = vpop.f32.mrf.mxu0
    %490 = vdwg.mxu0
    %491 = vmatpush.bf16.msra.mxu0 0
    %492 = vmatpush.bf16.msra.mxu0 0
    %493 = vmatpush.bf16.msra.mxu0 0
    %494 = vmatpush.bf16.msra.mxu0 0
    %495 = vmatpush.bf16.msra.mxu0 0
    %496 = vmatpush.bf16.msra.mxu0 0
    %497 = vmatpush.bf16.msra.mxu0 %v404
    %498 = vmatpush.bf16.msra.mxu0 %v388
    %499 = vmatmul.bf16.gmra.mxu0 %v450
    %v500 = vpop.f32.mrf.mxu0
    %v501 = vadd.f32 %v260, %v500
    %v502 = vpop.f32.mrf.mxu0
    %503 = vdwg.mxu0
    %504 = vmatpush.bf16.msra.mxu0 0
    %505 = vmatpush.bf16.msra.mxu0 0
    %506 = vmatpush.bf16.msra.mxu0 0
    %507 = vmatpush.bf16.msra.mxu0 0
    %508 = vmatpush.bf16.msra.mxu0 0
    %509 = vmatpush.bf16.msra.mxu0 0
    %510 = vmatpush.bf16.msra.mxu0 %v405
    %511 = vmatpush.bf16.msra.mxu0 %v389
    %512 = vmatmul.bf16.gmra.mxu0 %v450
    %v513 = vpop.f32.mrf.mxu0
    %v514 = vadd.f32 %v261, %v513
    %v515 = vpop.f32.mrf.mxu0
    %516 = vdwg.mxu0
    %517 = vmatpush.bf16.msra.mxu0 0
    %518 = vmatpush.bf16.msra.mxu0 0
    %519 = vmatpush.bf16.msra.mxu0 0
    %520 = vmatpush.bf16.msra.mxu0 0
    %521 = vmatpush.bf16.msra.mxu0 0
    %522 = vmatpush.bf16.msra.mxu0 0
    %523 = vmatpush.bf16.msra.mxu0 %v406
    %524 = vmatpush.bf16.msra.mxu0 %v390
    %525 = vmatmul.bf16.gmra.mxu0 %v450
    %v526 = vpop.f32.mrf.mxu0
    %v527 = vadd.f32 %v262, %v526
    %v528 = vpop.f32.mrf.mxu0
    %529 = vdwg.mxu0
    %530 = vmatpush.bf16.msra.mxu0 0
    %531 = vmatpush.bf16.msra.mxu0 0
    %532 = vmatpush.bf16.msra.mxu0 0
    %533 = vmatpush.bf16.msra.mxu0 0
    %534 = vmatpush.bf16.msra.mxu0 0
    %535 = vmatpush.bf16.msra.mxu0 0
    %536 = vmatpush.bf16.msra.mxu0 %v407
    %537 = vmatpush.bf16.msra.mxu0 %v391
    %538 = vmatmul.bf16.gmra.mxu0 %v450
    %v539 = vpop.f32.mrf.mxu0
    %v540 = vadd.f32 %v263, %v539
    %v541 = vpop.f32.mrf.mxu0
    %542 = vdwg.mxu0
    %543 = vmatpush.bf16.msra.mxu0 0
    %544 = vmatpush.bf16.msra.mxu0 0
    %545 = vmatpush.bf16.msra.mxu0 0
    %546 = vmatpush.bf16.msra.mxu0 0
    %547 = vmatpush.bf16.msra.mxu0 0
    %548 = vmatpush.bf16.msra.mxu0 0
    %549 = vmatpush.bf16.msra.mxu0 %v408
    %550 = vmatpush.bf16.msra.mxu0 %v392
    %551 = vmatmul.bf16.gmra.mxu0 %v450
    %v552 = vpop.f32.mrf.mxu0
    %v553 = vadd.f32 %v264, %v552
    %v554 = vpop.f32.mrf.mxu0
    %555 = vdwg.mxu0
    %556 = vmatpush.bf16.msra.mxu0 0
    %557 = vmatpush.bf16.msra.mxu0 0
    %558 = vmatpush.bf16.msra.mxu0 0
    %559 = vmatpush.bf16.msra.mxu0 0
    %560 = vmatpush.bf16.msra.mxu0 0
    %561 = vmatpush.bf16.msra.mxu0 0
    %562 = vmatpush.bf16.msra.mxu0 %v409
    %563 = vmatpush.bf16.msra.mxu0 %v393
    %564 = vmatmul.bf16.gmra.mxu0 %v450
    %v565 = vpop.f32.mrf.mxu0
    %v566 = vadd.f32 %v265, %v565
    %v567 = vpop.f32.mrf.mxu0
    %568 = vdwg.mxu0
    %569 = vmatpush.bf16.msra.mxu0 0
    %570 = vmatpush.bf16.msra.mxu0 0
    %571 = vmatpush.bf16.msra.mxu0 0
    %572 = vmatpush.bf16.msra.mxu0 0
    %573 = vmatpush.bf16.msra.mxu0 0
    %574 = vmatpush.bf16.msra.mxu0 0
    %575 = vmatpush.bf16.msra.mxu0 %v410
    %576 = vmatpush.bf16.msra.mxu0 %v394
    %577 = vmatmul.bf16.gmra.mxu0 %v450
    %v578 = vpop.f32.mrf.mxu0
    %v579 = vadd.f32 %v266, %v578
    %v580 = vpop.f32.mrf.mxu0
    %581 = vdwg.mxu0
    %582 = vmatpush.bf16.msra.mxu0 0
    %583 = vmatpush.bf16.msra.mxu0 0
    %584 = vmatpush.bf16.msra.mxu0 0
    %585 = vmatpush.bf16.msra.mxu0 0
    %586 = vmatpush.bf16.msra.mxu0 0
    %587 = vmatpush.bf16.msra.mxu0 0
    %588 = vmatpush.bf16.msra.mxu0 %v411
    %589 = vmatpush.bf16.msra.mxu0 %v395
    %590 = vmatmul.bf16.gmra.mxu0 %v450
    %v591 = vpop.f32.mrf.mxu0
    %v592 = vadd.f32 %v267, %v591
    %v593 = vpop.f32.mrf.mxu0
    %594 = vdwg.mxu0
    %595 = vmatpush.bf16.msra.mxu0 0
    %596 = vmatpush.bf16.msra.mxu0 0
    %597 = vmatpush.bf16.msra.mxu0 0
    %598 = vmatpush.bf16.msra.mxu0 0
    %599 = vmatpush.bf16.msra.mxu0 0
    %600 = vmatpush.bf16.msra.mxu0 0
    %601 = vmatpush.bf16.msra.mxu0 %v412
    %602 = vmatpush.bf16.msra.mxu0 %v396
    %603 = vmatmul.bf16.gmra.mxu0 %v450
    %v604 = vpop.f32.mrf.mxu0
    %v605 = vadd.f32 %v268, %v604
    %v606 = vpop.f32.mrf.mxu0
    %607 = vdwg.mxu0
    %608 = vmatpush.bf16.msra.mxu0 0
    %609 = vmatpush.bf16.msra.mxu0 0
    %610 = vmatpush.bf16.msra.mxu0 0
    %611 = vmatpush.bf16.msra.mxu0 0
    %612 = vmatpush.bf16.msra.mxu0 0
    %613 = vmatpush.bf16.msra.mxu0 0
    %614 = vmatpush.bf16.msra.mxu0 %v413
    %615 = vmatpush.bf16.msra.mxu0 %v397
    %616 = vmatmul.bf16.gmra.mxu0 %v450
    %v617 = vpop.f32.mrf.mxu0
    %v618 = vadd.f32 %v269, %v617
    %v619 = vpop.f32.mrf.mxu0
    %620 = vdwg.mxu0
    %621 = vmatpush.bf16.msra.mxu0 0
    %622 = vmatpush.bf16.msra.mxu0 0
    %623 = vmatpush.bf16.msra.mxu0 0
    %624 = vmatpush.bf16.msra.mxu0 0
    %625 = vmatpush.bf16.msra.mxu0 0
    %626 = vmatpush.bf16.msra.mxu0 0
    %627 = vmatpush.bf16.msra.mxu0 %v414
    %628 = vmatpush.bf16.msra.mxu0 %v398
    %629 = vmatmul.bf16.gmra.mxu0 %v450
    %v630 = vpop.f32.mrf.mxu0
    %v631 = vadd.f32 %v270, %v630
    %v632 = vpop.f32.mrf.mxu0
    %633 = vdwg.mxu0
    %634 = vmatpush.bf16.msra.mxu0 0
    %635 = vmatpush.bf16.msra.mxu0 0
    %636 = vmatpush.bf16.msra.mxu0 0
    %637 = vmatpush.bf16.msra.mxu0 0
    %638 = vmatpush.bf16.msra.mxu0 0
    %639 = vmatpush.bf16.msra.mxu0 0
    %640 = vmatpush.bf16.msra.mxu0 %v415
    %641 = vmatpush.bf16.msra.mxu0 %v399
    %642 = vmatmul.bf16.gmra.mxu0 %v450
    %v643 = vpop.f32.mrf.mxu0
    %v644 = vadd.f32 %v271, %v643
    %v645 = vpop.f32.mrf.mxu0
    %646 = vdwg.mxu0
    %647 = vmatpush.bf16.msra.mxu0 0
    %648 = vmatpush.bf16.msra.mxu0 0
    %649 = vmatpush.bf16.msra.mxu0 0
    %650 = vmatpush.bf16.msra.mxu0 0
    %651 = vmatpush.bf16.msra.mxu0 0
    %652 = vmatpush.bf16.msra.mxu0 0
    %653 = vmatpush.bf16.msra.mxu0 %v416
    %654 = vmatpush.bf16.msra.mxu0 %v400
    %655 = vmatmul.bf16.gmra.mxu0 %v450
    %v656 = vpop.f32.mrf.mxu0
    %v657 = vadd.f32 %v272, %v656
    %v658 = vpop.f32.mrf.mxu0
    %659 = vdwg.mxu0
    %v660 = vmul.f32 %v462, 0.5
    %v661 = vmul.f32 %v475, 0.5
    %v662 = vmul.f32 %v488, 0.5
    %v663 = vmul.f32 %v501, 0.5
    %v664 = vmul.f32 %v514, 0.5
    %v665 = vmul.f32 %v527, 0.5
    %v666 = vmul.f32 %v540, 0.5
    %v667 = vmul.f32 %v553, 0.5
    %v668 = vmul.f32 %v566, 0.5
    %v669 = vmul.f32 %v579, 0.5
    %v670 = vmul.f32 %v592, 0.5
    %v671 = vmul.f32 %v605, 0.5
    %v672 = vmul.f32 %v618, 0.5
    %v673 = vmul.f32 %v631, 0.5
    %v674 = vmul.f32 %v644, 0.5
    %v675 = vmul.f32 %v657, 0.5
    %v676 = vmul.f32 %v462, 0.70710677
    %v677 = vmul.f32 %v475, 0.70710677
    %v678 = vmul.f32 %v488, 0.70710677
    %v679 = vmul.f32 %v501, 0.70710677
    %v680 = vmul.f32 %v514, 0.70710677
    %v681 = vmul.f32 %v527, 0.70710677
    %v682 = vmul.f32 %v540, 0.70710677
    %v683 = vmul.f32 %v553, 0.70710677
    %v684 = vmul.f32 %v566, 0.70710677
    %v685 = vmul.f32 %v579, 0.70710677
    %v686 = vmul.f32 %v592, 0.70710677
    %v687 = vmul.f32 %v605, 0.70710677
    %v688 = vmul.f32 %v618, 0.70710677
    %v689 = vmul.f32 %v631, 0.70710677
    %v690 = vmul.f32 %v644, 0.70710677
    %v691 = vmul.f32 %v657, 0.70710677
    %v692 = vmul.f32 %v676, %v676
    %v693 = vmin.f32 16.0, %v692
    %v694 = vmul.f32 %v693, 2.1237322e-06
    %v695 = vadd.f32 %v694, 0.00028619796
    %v696 = vmul.f32 %v693, %v695
    %v697 = vadd.f32 %v696, 0.0036580483
    %v698 = vmul.f32 %v693, %v697
    %v699 = vadd.f32 %v698, 0.05243302
    %v700 = vmul.f32 %v693, %v699
    %v701 = vadd.f32 %v700, 0.18741608
    %v702 = vmul.f32 %v693, %v701
    %v703 = vadd.f32 %v702, 1.1283791
    %v704 = vmul.f32 %v676, %v703
    %v705 = vmul.f32 %v693, 3.8918573e-05
    %v706 = vadd.f32 %v705, 0.001143296
    %v707 = vmul.f32 %v693, %v706
    %v708 = vadd.f32 %v707, 0.014752088
    %v709 = vmul.f32 %v693, %v708
    %v710 = vadd.f32 %v709, 0.112945676
    %v711 = vmul.f32 %v693, %v710
    %v712 = vadd.f32 %v711, 0.4994258
    %v713 = vmul.f32 %v693, %v712
    %v714 = vadd.f32 %v713, 1.0
    %v715 = vrcp.pop %v714
    %v716 = vmul.f32 %v714, %v715
    %v717 = vsub.f32 1.0, %v716
    %v718 = vmul.f32 %v715, %v717
    %v719 = vadd.f32 %v715, %v718
    %vm720 = vweird.f32 %v714
    %vm721 = vweird.f32 %v715
    %vm722 = vmor %vm720, %vm721
    %v723 = vsel %vm722, %v715, %v719
    %v724 = vand.u32 2147483647, %v714
    %vm725 = vcmp.eq.f32.partialorder %v724, 8.507059e+37
    %v726 = vand.u32 %v714, 2147483648
    %v727 = vor.u32 1.1754944e-38, %v726
    %v728 = vsel %vm725, %v727, %v723
    %v729 = vmul.f32 %v704, %v728
    %v730 = vmin.f32 %v729, 1.0
    %v731 = vmax.f32 %v730, -1.0
    %v732 = vmul.f32 %v677, %v677
    %v733 = vmin.f32 16.0, %v732
    %v734 = vmul.f32 %v733, 2.1237322e-06
    %v735 = vadd.f32 %v734, 0.00028619796
    %v736 = vmul.f32 %v733, %v735
    %v737 = vadd.f32 %v736, 0.0036580483
    %v738 = vmul.f32 %v733, %v737
    %v739 = vadd.f32 %v738, 0.05243302
    %v740 = vmul.f32 %v733, %v739
    %v741 = vadd.f32 %v740, 0.18741608
    %v742 = vmul.f32 %v733, %v741
    %v743 = vadd.f32 %v742, 1.1283791
    %v744 = vmul.f32 %v677, %v743
    %v745 = vmul.f32 %v733, 3.8918573e-05
    %v746 = vadd.f32 %v745, 0.001143296
    %v747 = vmul.f32 %v733, %v746
    %v748 = vadd.f32 %v747, 0.014752088
    %v749 = vmul.f32 %v733, %v748
    %v750 = vadd.f32 %v749, 0.112945676
    %v751 = vmul.f32 %v733, %v750
    %v752 = vadd.f32 %v751, 0.4994258
    %v753 = vmul.f32 %v733, %v752
    %v754 = vadd.f32 %v753, 1.0
    %v755 = vrcp.pop %v754
    %v756 = vmul.f32 %v754, %v755
    %v757 = vsub.f32 1.0, %v756
    %v758 = vmul.f32 %v755, %v757
    %v759 = vadd.f32 %v755, %v758
    %vm760 = vweird.f32 %v754
    %vm761 = vweird.f32 %v755
    %vm762 = vmor %vm760, %vm761
    %v763 = vsel %vm762, %v755, %v759
    %v764 = vand.u32 2147483647, %v754
    %vm765 = vcmp.eq.f32.partialorder %v764, 8.507059e+37
    %v766 = vand.u32 %v754, 2147483648
    %v767 = vor.u32 1.1754944e-38, %v766
    %v768 = vsel %vm765, %v767, %v763
    %v769 = vmul.f32 %v744, %v768
    %v770 = vmin.f32 %v769, 1.0
    %v771 = vmax.f32 %v770, -1.0
    %v772 = vmul.f32 %v678, %v678
    %v773 = vmin.f32 16.0, %v772
    %v774 = vmul.f32 %v773, 2.1237322e-06
    %v775 = vadd.f32 %v774, 0.00028619796
    %v776 = vmul.f32 %v773, %v775
    %v777 = vadd.f32 %v776, 0.0036580483
    %v778 = vmul.f32 %v773, %v777
    %v779 = vadd.f32 %v778, 0.05243302
    %v780 = vmul.f32 %v773, %v779
    %v781 = vadd.f32 %v780, 0.18741608
    %v782 = vmul.f32 %v773, %v781
    %v783 = vadd.f32 %v782, 1.1283791
    %v784 = vmul.f32 %v678, %v783
    %v785 = vmul.f32 %v773, 3.8918573e-05
    %v786 = vadd.f32 %v785, 0.001143296
    %v787 = vmul.f32 %v773, %v786
    %v788 = vadd.f32 %v787, 0.014752088
    %v789 = vmul.f32 %v773, %v788
    %v790 = vadd.f32 %v789, 0.112945676
    %v791 = vmul.f32 %v773, %v790
    %v792 = vadd.f32 %v791, 0.4994258
    %v793 = vmul.f32 %v773, %v792
    %v794 = vadd.f32 %v793, 1.0
    %v795 = vrcp.pop %v794
    %v796 = vmul.f32 %v794, %v795
    %v797 = vsub.f32 1.0, %v796
    %v798 = vmul.f32 %v795, %v797
    %v799 = vadd.f32 %v795, %v798
    %vm800 = vweird.f32 %v794
    %vm801 = vweird.f32 %v795
    %vm802 = vmor %vm800, %vm801
    %v803 = vsel %vm802, %v795, %v799
    %v804 = vand.u32 2147483647, %v794
    %vm805 = vcmp.eq.f32.partialorder %v804, 8.507059e+37
    %v806 = vand.u32 %v794, 2147483648
    %v807 = vor.u32 1.1754944e-38, %v806
    %v808 = vsel %vm805, %v807, %v803
    %v809 = vmul.f32 %v784, %v808
    %v810 = vmin.f32 %v809, 1.0
    %v811 = vmax.f32 %v810, -1.0
    %v812 = vmul.f32 %v679, %v679
    %v813 = vmin.f32 16.0, %v812
    %v814 = vmul.f32 %v813, 2.1237322e-06
    %v815 = vadd.f32 %v814, 0.00028619796
    %v816 = vmul.f32 %v813, %v815
    %v817 = vadd.f32 %v816, 0.0036580483
    %v818 = vmul.f32 %v813, %v817
    %v819 = vadd.f32 %v818, 0.05243302
    %v820 = vmul.f32 %v813, %v819
    %v821 = vadd.f32 %v820, 0.18741608
    %v822 = vmul.f32 %v813, %v821
    %v823 = vadd.f32 %v822, 1.1283791
    %v824 = vmul.f32 %v679, %v823
    %v825 = vmul.f32 %v813, 3.8918573e-05
    %v826 = vadd.f32 %v825, 0.001143296
    %v827 = vmul.f32 %v813, %v826
    %v828 = vadd.f32 %v827, 0.014752088
    %v829 = vmul.f32 %v813, %v828
    %v830 = vadd.f32 %v829, 0.112945676
    %v831 = vmul.f32 %v813, %v830
    %v832 = vadd.f32 %v831, 0.4994258
    %v833 = vmul.f32 %v813, %v832
    %v834 = vadd.f32 %v833, 1.0
    %v835 = vrcp.pop %v834
    %v836 = vmul.f32 %v834, %v835
    %v837 = vsub.f32 1.0, %v836
    %v838 = vmul.f32 %v835, %v837
    %v839 = vadd.f32 %v835, %v838
    %vm840 = vweird.f32 %v834
    %vm841 = vweird.f32 %v835
    %vm842 = vmor %vm840, %vm841
    %v843 = vsel %vm842, %v835, %v839
    %v844 = vand.u32 2147483647, %v834
    %vm845 = vcmp.eq.f32.partialorder %v844, 8.507059e+37
    %v846 = vand.u32 %v834, 2147483648
    %v847 = vor.u32 1.1754944e-38, %v846
    %v848 = vsel %vm845, %v847, %v843
    %v849 = vmul.f32 %v824, %v848
    %v850 = vmin.f32 %v849, 1.0
    %v851 = vmax.f32 %v850, -1.0
    %v852 = vmul.f32 %v680, %v680
    %v853 = vmin.f32 16.0, %v852
    %v854 = vmul.f32 %v853, 2.1237322e-06
    %v855 = vadd.f32 %v854, 0.00028619796
    %v856 = vmul.f32 %v853, %v855
    %v857 = vadd.f32 %v856, 0.0036580483
    %v858 = vmul.f32 %v853, %v857
    %v859 = vadd.f32 %v858, 0.05243302
    %v860 = vmul.f32 %v853, %v859
    %v861 = vadd.f32 %v860, 0.18741608
    %v862 = vmul.f32 %v853, %v861
    %v863 = vadd.f32 %v862, 1.1283791
    %v864 = vmul.f32 %v680, %v863
    %v865 = vmul.f32 %v853, 3.8918573e-05
    %v866 = vadd.f32 %v865, 0.001143296
    %v867 = vmul.f32 %v853, %v866
    %v868 = vadd.f32 %v867, 0.014752088
    %v869 = vmul.f32 %v853, %v868
    %v870 = vadd.f32 %v869, 0.112945676
    %v871 = vmul.f32 %v853, %v870
    %v872 = vadd.f32 %v871, 0.4994258
    %v873 = vmul.f32 %v853, %v872
    %v874 = vadd.f32 %v873, 1.0
    %v875 = vrcp.pop %v874
    %v876 = vmul.f32 %v874, %v875
    %v877 = vsub.f32 1.0, %v876
    %v878 = vmul.f32 %v875, %v877
    %v879 = vadd.f32 %v875, %v878
    %vm880 = vweird.f32 %v874
    %vm881 = vweird.f32 %v875
    %vm882 = vmor %vm880, %vm881
    %v883 = vsel %vm882, %v875, %v879
    %v884 = vand.u32 2147483647, %v874
    %vm885 = vcmp.eq.f32.partialorder %v884, 8.507059e+37
    %v886 = vand.u32 %v874, 2147483648
    %v887 = vor.u32 1.1754944e-38, %v886
    %v888 = vsel %vm885, %v887, %v883
    %v889 = vmul.f32 %v864, %v888
    %v890 = vmin.f32 %v889, 1.0
    %v891 = vmax.f32 %v890, -1.0
    %v892 = vmul.f32 %v681, %v681
    %v893 = vmin.f32 16.0, %v892
    %v894 = vmul.f32 %v893, 2.1237322e-06
    %v895 = vadd.f32 %v894, 0.00028619796
    %v896 = vmul.f32 %v893, %v895
    %v897 = vadd.f32 %v896, 0.0036580483
    %v898 = vmul.f32 %v893, %v897
    %v899 = vadd.f32 %v898, 0.05243302
    %v900 = vmul.f32 %v893, %v899
    %v901 = vadd.f32 %v900, 0.18741608
    %v902 = vmul.f32 %v893, %v901
    %v903 = vadd.f32 %v902, 1.1283791
    %v904 = vmul.f32 %v681, %v903
    %v905 = vmul.f32 %v893, 3.8918573e-05
    %v906 = vadd.f32 %v905, 0.001143296
    %v907 = vmul.f32 %v893, %v906
    %v908 = vadd.f32 %v907, 0.014752088
    %v909 = vmul.f32 %v893, %v908
    %v910 = vadd.f32 %v909, 0.112945676
    %v911 = vmul.f32 %v893, %v910
    %v912 = vadd.f32 %v911, 0.4994258
    %v913 = vmul.f32 %v893, %v912
    %v914 = vadd.f32 %v913, 1.0
    %v915 = vrcp.pop %v914
    %v916 = vmul.f32 %v914, %v915
    %v917 = vsub.f32 1.0, %v916
    %v918 = vmul.f32 %v915, %v917
    %v919 = vadd.f32 %v915, %v918
    %vm920 = vweird.f32 %v914
    %vm921 = vweird.f32 %v915
    %vm922 = vmor %vm920, %vm921
    %v923 = vsel %vm922, %v915, %v919
    %v924 = vand.u32 2147483647, %v914
    %vm925 = vcmp.eq.f32.partialorder %v924, 8.507059e+37
    %v926 = vand.u32 %v914, 2147483648
    %v927 = vor.u32 1.1754944e-38, %v926
    %v928 = vsel %vm925, %v927, %v923
    %v929 = vmul.f32 %v904, %v928
    %v930 = vmin.f32 %v929, 1.0
    %v931 = vmax.f32 %v930, -1.0
    %v932 = vmul.f32 %v682, %v682
    %v933 = vmin.f32 16.0, %v932
    %v934 = vmul.f32 %v933, 2.1237322e-06
    %v935 = vadd.f32 %v934, 0.00028619796
    %v936 = vmul.f32 %v933, %v935
    %v937 = vadd.f32 %v936, 0.0036580483
    %v938 = vmul.f32 %v933, %v937
    %v939 = vadd.f32 %v938, 0.05243302
    %v940 = vmul.f32 %v933, %v939
    %v941 = vadd.f32 %v940, 0.18741608
    %v942 = vmul.f32 %v933, %v941
    %v943 = vadd.f32 %v942, 1.1283791
    %v944 = vmul.f32 %v682, %v943
    %v945 = vmul.f32 %v933, 3.8918573e-05
    %v946 = vadd.f32 %v945, 0.001143296
    %v947 = vmul.f32 %v933, %v946
    %v948 = vadd.f32 %v947, 0.014752088
    %v949 = vmul.f32 %v933, %v948
    %v950 = vadd.f32 %v949, 0.112945676
    %v951 = vmul.f32 %v933, %v950
    %v952 = vadd.f32 %v951, 0.4994258
    %v953 = vmul.f32 %v933, %v952
    %v954 = vadd.f32 %v953, 1.0
    %v955 = vrcp.pop %v954
    %v956 = vmul.f32 %v954, %v955
    %v957 = vsub.f32 1.0, %v956
    %v958 = vmul.f32 %v955, %v957
    %v959 = vadd.f32 %v955, %v958
    %vm960 = vweird.f32 %v954
    %vm961 = vweird.f32 %v955
    %vm962 = vmor %vm960, %vm961
    %v963 = vsel %vm962, %v955, %v959
    %v964 = vand.u32 2147483647, %v954
    %vm965 = vcmp.eq.f32.partialorder %v964, 8.507059e+37
    %v966 = vand.u32 %v954, 2147483648
    %v967 = vor.u32 1.1754944e-38, %v966
    %v968 = vsel %vm965, %v967, %v963
    %v969 = vmul.f32 %v944, %v968
    %v970 = vmin.f32 %v969, 1.0
    %v971 = vmax.f32 %v970, -1.0
    %v972 = vmul.f32 %v683, %v683
    %v973 = vmin.f32 16.0, %v972
    %v974 = vmul.f32 %v973, 2.1237322e-06
    %v975 = vadd.f32 %v974, 0.00028619796
    %v976 = vmul.f32 %v973, %v975
    %v977 = vadd.f32 %v976, 0.0036580483
    %v978 = vmul.f32 %v973, %v977
    %v979 = vadd.f32 %v978, 0.05243302
    %v980 = vmul.f32 %v973, %v979
    %v981 = vadd.f32 %v980, 0.18741608
    %v982 = vmul.f32 %v973, %v981
    %v983 = vadd.f32 %v982, 1.1283791
    %v984 = vmul.f32 %v683, %v983
    %v985 = vmul.f32 %v973, 3.8918573e-05
    %v986 = vadd.f32 %v985, 0.001143296
    %v987 = vmul.f32 %v973, %v986
    %v988 = vadd.f32 %v987, 0.014752088
    %v989 = vmul.f32 %v973, %v988
    %v990 = vadd.f32 %v989, 0.112945676
    %v991 = vmul.f32 %v973, %v990
    %v992 = vadd.f32 %v991, 0.4994258
    %v993 = vmul.f32 %v973, %v992
    %v994 = vadd.f32 %v993, 1.0
    %v995 = vrcp.pop %v994
    %v996 = vmul.f32 %v994, %v995
    %v997 = vsub.f32 1.0, %v996
    %v998 = vmul.f32 %v995, %v997
    %v999 = vadd.f32 %v995, %v998
    %vm1000 = vweird.f32 %v994
    %vm1001 = vweird.f32 %v995
    %vm1002 = vmor %vm1000, %vm1001
    %v1003 = vsel %vm1002, %v995, %v999
    %v1004 = vand.u32 2147483647, %v994
    %vm1005 = vcmp.eq.f32.partialorder %v1004, 8.507059e+37
    %v1006 = vand.u32 %v994, 2147483648
    %v1007 = vor.u32 1.1754944e-38, %v1006
    %v1008 = vsel %vm1005, %v1007, %v1003
    %v1009 = vmul.f32 %v984, %v1008
    %v1010 = vmin.f32 %v1009, 1.0
    %v1011 = vmax.f32 %v1010, -1.0
    %v1012 = vmul.f32 %v684, %v684
    %v1013 = vmin.f32 16.0, %v1012
    %v1014 = vmul.f32 %v1013, 2.1237322e-06
    %v1015 = vadd.f32 %v1014, 0.00028619796
    %v1016 = vmul.f32 %v1013, %v1015
    %v1017 = vadd.f32 %v1016, 0.0036580483
    %v1018 = vmul.f32 %v1013, %v1017
    %v1019 = vadd.f32 %v1018, 0.05243302
    %v1020 = vmul.f32 %v1013, %v1019
    %v1021 = vadd.f32 %v1020, 0.18741608
    %v1022 = vmul.f32 %v1013, %v1021
    %v1023 = vadd.f32 %v1022, 1.1283791
    %v1024 = vmul.f32 %v684, %v1023
    %v1025 = vmul.f32 %v1013, 3.8918573e-05
    %v1026 = vadd.f32 %v1025, 0.001143296
    %v1027 = vmul.f32 %v1013, %v1026
    %v1028 = vadd.f32 %v1027, 0.014752088
    %v1029 = vmul.f32 %v1013, %v1028
    %v1030 = vadd.f32 %v1029, 0.112945676
    %v1031 = vmul.f32 %v1013, %v1030
    %v1032 = vadd.f32 %v1031, 0.4994258
    %v1033 = vmul.f32 %v1013, %v1032
    %v1034 = vadd.f32 %v1033, 1.0
    %v1035 = vrcp.pop %v1034
    %v1036 = vmul.f32 %v1034, %v1035
    %v1037 = vsub.f32 1.0, %v1036
    %v1038 = vmul.f32 %v1035, %v1037
    %v1039 = vadd.f32 %v1035, %v1038
    %vm1040 = vweird.f32 %v1034
    %vm1041 = vweird.f32 %v1035
    %vm1042 = vmor %vm1040, %vm1041
    %v1043 = vsel %vm1042, %v1035, %v1039
    %v1044 = vand.u32 2147483647, %v1034
    %vm1045 = vcmp.eq.f32.partialorder %v1044, 8.507059e+37
    %v1046 = vand.u32 %v1034, 2147483648
    %v1047 = vor.u32 1.1754944e-38, %v1046
    %v1048 = vsel %vm1045, %v1047, %v1043
    %v1049 = vmul.f32 %v1024, %v1048
    %v1050 = vmin.f32 %v1049, 1.0
    %v1051 = vmax.f32 %v1050, -1.0
    %v1052 = vmul.f32 %v685, %v685
    %v1053 = vmin.f32 16.0, %v1052
    %v1054 = vmul.f32 %v1053, 2.1237322e-06
    %v1055 = vadd.f32 %v1054, 0.00028619796
    %v1056 = vmul.f32 %v1053, %v1055
    %v1057 = vadd.f32 %v1056, 0.0036580483
    %v1058 = vmul.f32 %v1053, %v1057
    %v1059 = vadd.f32 %v1058, 0.05243302
    %v1060 = vmul.f32 %v1053, %v1059
    %v1061 = vadd.f32 %v1060, 0.18741608
    %v1062 = vmul.f32 %v1053, %v1061
    %v1063 = vadd.f32 %v1062, 1.1283791
    %v1064 = vmul.f32 %v685, %v1063
    %v1065 = vmul.f32 %v1053, 3.8918573e-05
    %v1066 = vadd.f32 %v1065, 0.001143296
    %v1067 = vmul.f32 %v1053, %v1066
    %v1068 = vadd.f32 %v1067, 0.014752088
    %v1069 = vmul.f32 %v1053, %v1068
    %v1070 = vadd.f32 %v1069, 0.112945676
    %v1071 = vmul.f32 %v1053, %v1070
    %v1072 = vadd.f32 %v1071, 0.4994258
    %v1073 = vmul.f32 %v1053, %v1072
    %v1074 = vadd.f32 %v1073, 1.0
    %v1075 = vrcp.pop %v1074
    %v1076 = vmul.f32 %v1074, %v1075
    %v1077 = vsub.f32 1.0, %v1076
    %v1078 = vmul.f32 %v1075, %v1077
    %v1079 = vadd.f32 %v1075, %v1078
    %vm1080 = vweird.f32 %v1074
    %vm1081 = vweird.f32 %v1075
    %vm1082 = vmor %vm1080, %vm1081
    %v1083 = vsel %vm1082, %v1075, %v1079
    %v1084 = vand.u32 2147483647, %v1074
    %vm1085 = vcmp.eq.f32.partialorder %v1084, 8.507059e+37
    %v1086 = vand.u32 %v1074, 2147483648
    %v1087 = vor.u32 1.1754944e-38, %v1086
    %v1088 = vsel %vm1085, %v1087, %v1083
    %v1089 = vmul.f32 %v1064, %v1088
    %v1090 = vmin.f32 %v1089, 1.0
    %v1091 = vmax.f32 %v1090, -1.0
    %v1092 = vmul.f32 %v686, %v686
    %v1093 = vmin.f32 16.0, %v1092
    %v1094 = vmul.f32 %v1093, 2.1237322e-06
    %v1095 = vadd.f32 %v1094, 0.00028619796
    %v1096 = vmul.f32 %v1093, %v1095
    %v1097 = vadd.f32 %v1096, 0.0036580483
    %v1098 = vmul.f32 %v1093, %v1097
    %v1099 = vadd.f32 %v1098, 0.05243302
    %v1100 = vmul.f32 %v1093, %v1099
    %v1101 = vadd.f32 %v1100, 0.18741608
    %v1102 = vmul.f32 %v1093, %v1101
    %v1103 = vadd.f32 %v1102, 1.1283791
    %v1104 = vmul.f32 %v686, %v1103
    %v1105 = vmul.f32 %v1093, 3.8918573e-05
    %v1106 = vadd.f32 %v1105, 0.001143296
    %v1107 = vmul.f32 %v1093, %v1106
    %v1108 = vadd.f32 %v1107, 0.014752088
    %v1109 = vmul.f32 %v1093, %v1108
    %v1110 = vadd.f32 %v1109, 0.112945676
    %v1111 = vmul.f32 %v1093, %v1110
    %v1112 = vadd.f32 %v1111, 0.4994258
    %v1113 = vmul.f32 %v1093, %v1112
    %v1114 = vadd.f32 %v1113, 1.0
    %v1115 = vrcp.pop %v1114
    %v1116 = vmul.f32 %v1114, %v1115
    %v1117 = vsub.f32 1.0, %v1116
    %v1118 = vmul.f32 %v1115, %v1117
    %v1119 = vadd.f32 %v1115, %v1118
    %vm1120 = vweird.f32 %v1114
    %vm1121 = vweird.f32 %v1115
    %vm1122 = vmor %vm1120, %vm1121
    %v1123 = vsel %vm1122, %v1115, %v1119
    %v1124 = vand.u32 2147483647, %v1114
    %vm1125 = vcmp.eq.f32.partialorder %v1124, 8.507059e+37
    %v1126 = vand.u32 %v1114, 2147483648
    %v1127 = vor.u32 1.1754944e-38, %v1126
    %v1128 = vsel %vm1125, %v1127, %v1123
    %v1129 = vmul.f32 %v1104, %v1128
    %v1130 = vmin.f32 %v1129, 1.0
    %v1131 = vmax.f32 %v1130, -1.0
    %v1132 = vmul.f32 %v687, %v687
    %v1133 = vmin.f32 16.0, %v1132
    %v1134 = vmul.f32 %v1133, 2.1237322e-06
    %v1135 = vadd.f32 %v1134, 0.00028619796
    %v1136 = vmul.f32 %v1133, %v1135
    %v1137 = vadd.f32 %v1136, 0.0036580483
    %v1138 = vmul.f32 %v1133, %v1137
    %v1139 = vadd.f32 %v1138, 0.05243302
    %v1140 = vmul.f32 %v1133, %v1139
    %v1141 = vadd.f32 %v1140, 0.18741608
    %v1142 = vmul.f32 %v1133, %v1141
    %v1143 = vadd.f32 %v1142, 1.1283791
    %v1144 = vmul.f32 %v687, %v1143
    %v1145 = vmul.f32 %v1133, 3.8918573e-05
    %v1146 = vadd.f32 %v1145, 0.001143296
    %v1147 = vmul.f32 %v1133, %v1146
    %v1148 = vadd.f32 %v1147, 0.014752088
    %v1149 = vmul.f32 %v1133, %v1148
    %v1150 = vadd.f32 %v1149, 0.112945676
    %v1151 = vmul.f32 %v1133, %v1150
    %v1152 = vadd.f32 %v1151, 0.4994258
    %v1153 = vmul.f32 %v1133, %v1152
    %v1154 = vadd.f32 %v1153, 1.0
    %v1155 = vrcp.pop %v1154
    %v1156 = vmul.f32 %v1154, %v1155
    %v1157 = vsub.f32 1.0, %v1156
    %v1158 = vmul.f32 %v1155, %v1157
    %v1159 = vadd.f32 %v1155, %v1158
    %vm1160 = vweird.f32 %v1154
    %vm1161 = vweird.f32 %v1155
    %vm1162 = vmor %vm1160, %vm1161
    %v1163 = vsel %vm1162, %v1155, %v1159
    %v1164 = vand.u32 2147483647, %v1154
    %vm1165 = vcmp.eq.f32.partialorder %v1164, 8.507059e+37
    %v1166 = vand.u32 %v1154, 2147483648
    %v1167 = vor.u32 1.1754944e-38, %v1166
    %v1168 = vsel %vm1165, %v1167, %v1163
    %v1169 = vmul.f32 %v1144, %v1168
    %v1170 = vmin.f32 %v1169, 1.0
    %v1171 = vmax.f32 %v1170, -1.0
    %v1172 = vmul.f32 %v688, %v688
    %v1173 = vmin.f32 16.0, %v1172
    %v1174 = vmul.f32 %v1173, 2.1237322e-06
    %v1175 = vadd.f32 %v1174, 0.00028619796
    %v1176 = vmul.f32 %v1173, %v1175
    %v1177 = vadd.f32 %v1176, 0.0036580483
    %v1178 = vmul.f32 %v1173, %v1177
    %v1179 = vadd.f32 %v1178, 0.05243302
    %v1180 = vmul.f32 %v1173, %v1179
    %v1181 = vadd.f32 %v1180, 0.18741608
    %v1182 = vmul.f32 %v1173, %v1181
    %v1183 = vadd.f32 %v1182, 1.1283791
    %v1184 = vmul.f32 %v688, %v1183
    %v1185 = vmul.f32 %v1173, 3.8918573e-05
    %v1186 = vadd.f32 %v1185, 0.001143296
    %v1187 = vmul.f32 %v1173, %v1186
    %v1188 = vadd.f32 %v1187, 0.014752088
    %v1189 = vmul.f32 %v1173, %v1188
    %v1190 = vadd.f32 %v1189, 0.112945676
    %v1191 = vmul.f32 %v1173, %v1190
    %v1192 = vadd.f32 %v1191, 0.4994258
    %v1193 = vmul.f32 %v1173, %v1192
    %v1194 = vadd.f32 %v1193, 1.0
    %v1195 = vrcp.pop %v1194
    %v1196 = vmul.f32 %v1194, %v1195
    %v1197 = vsub.f32 1.0, %v1196
    %v1198 = vmul.f32 %v1195, %v1197
    %v1199 = vadd.f32 %v1195, %v1198
    %vm1200 = vweird.f32 %v1194
    %vm1201 = vweird.f32 %v1195
    %vm1202 = vmor %vm1200, %vm1201
    %v1203 = vsel %vm1202, %v1195, %v1199
    %v1204 = vand.u32 2147483647, %v1194
    %vm1205 = vcmp.eq.f32.partialorder %v1204, 8.507059e+37
    %v1206 = vand.u32 %v1194, 2147483648
    %v1207 = vor.u32 1.1754944e-38, %v1206
    %v1208 = vsel %vm1205, %v1207, %v1203
    %v1209 = vmul.f32 %v1184, %v1208
    %v1210 = vmin.f32 %v1209, 1.0
    %v1211 = vmax.f32 %v1210, -1.0
    %v1212 = vmul.f32 %v689, %v689
    %v1213 = vmin.f32 16.0, %v1212
    %v1214 = vmul.f32 %v1213, 2.1237322e-06
    %v1215 = vadd.f32 %v1214, 0.00028619796
    %v1216 = vmul.f32 %v1213, %v1215
    %v1217 = vadd.f32 %v1216, 0.0036580483
    %v1218 = vmul.f32 %v1213, %v1217
    %v1219 = vadd.f32 %v1218, 0.05243302
    %v1220 = vmul.f32 %v1213, %v1219
    %v1221 = vadd.f32 %v1220, 0.18741608
    %v1222 = vmul.f32 %v1213, %v1221
    %v1223 = vadd.f32 %v1222, 1.1283791
    %v1224 = vmul.f32 %v689, %v1223
    %v1225 = vmul.f32 %v1213, 3.8918573e-05
    %v1226 = vadd.f32 %v1225, 0.001143296
    %v1227 = vmul.f32 %v1213, %v1226
    %v1228 = vadd.f32 %v1227, 0.014752088
    %v1229 = vmul.f32 %v1213, %v1228
    %v1230 = vadd.f32 %v1229, 0.112945676
    %v1231 = vmul.f32 %v1213, %v1230
    %v1232 = vadd.f32 %v1231, 0.4994258
    %v1233 = vmul.f32 %v1213, %v1232
    %v1234 = vadd.f32 %v1233, 1.0
    %v1235 = vrcp.pop %v1234
    %v1236 = vmul.f32 %v1234, %v1235
    %v1237 = vsub.f32 1.0, %v1236
    %v1238 = vmul.f32 %v1235, %v1237
    %v1239 = vadd.f32 %v1235, %v1238
    %vm1240 = vweird.f32 %v1234
    %vm1241 = vweird.f32 %v1235
    %vm1242 = vmor %vm1240, %vm1241
    %v1243 = vsel %vm1242, %v1235, %v1239
    %v1244 = vand.u32 2147483647, %v1234
    %vm1245 = vcmp.eq.f32.partialorder %v1244, 8.507059e+37
    %v1246 = vand.u32 %v1234, 2147483648
    %v1247 = vor.u32 1.1754944e-38, %v1246
    %v1248 = vsel %vm1245, %v1247, %v1243
    %v1249 = vmul.f32 %v1224, %v1248
    %v1250 = vmin.f32 %v1249, 1.0
    %v1251 = vmax.f32 %v1250, -1.0
    %v1252 = vmul.f32 %v690, %v690
    %v1253 = vmin.f32 16.0, %v1252
    %v1254 = vmul.f32 %v1253, 2.1237322e-06
    %v1255 = vadd.f32 %v1254, 0.00028619796
    %v1256 = vmul.f32 %v1253, %v1255
    %v1257 = vadd.f32 %v1256, 0.0036580483
    %v1258 = vmul.f32 %v1253, %v1257
    %v1259 = vadd.f32 %v1258, 0.05243302
    %v1260 = vmul.f32 %v1253, %v1259
    %v1261 = vadd.f32 %v1260, 0.18741608
    %v1262 = vmul.f32 %v1253, %v1261
    %v1263 = vadd.f32 %v1262, 1.1283791
    %v1264 = vmul.f32 %v690, %v1263
    %v1265 = vmul.f32 %v1253, 3.8918573e-05
    %v1266 = vadd.f32 %v1265, 0.001143296
    %v1267 = vmul.f32 %v1253, %v1266
    %v1268 = vadd.f32 %v1267, 0.014752088
    %v1269 = vmul.f32 %v1253, %v1268
    %v1270 = vadd.f32 %v1269, 0.112945676
    %v1271 = vmul.f32 %v1253, %v1270
    %v1272 = vadd.f32 %v1271, 0.4994258
    %v1273 = vmul.f32 %v1253, %v1272
    %v1274 = vadd.f32 %v1273, 1.0
    %v1275 = vrcp.pop %v1274
    %v1276 = vmul.f32 %v1274, %v1275
    %v1277 = vsub.f32 1.0, %v1276
    %v1278 = vmul.f32 %v1275, %v1277
    %v1279 = vadd.f32 %v1275, %v1278
    %vm1280 = vweird.f32 %v1274
    %vm1281 = vweird.f32 %v1275
    %vm1282 = vmor %vm1280, %vm1281
    %v1283 = vsel %vm1282, %v1275, %v1279
    %v1284 = vand.u32 2147483647, %v1274
    %vm1285 = vcmp.eq.f32.partialorder %v1284, 8.507059e+37
    %v1286 = vand.u32 %v1274, 2147483648
    %v1287 = vor.u32 1.1754944e-38, %v1286
    %v1288 = vsel %vm1285, %v1287, %v1283
    %v1289 = vmul.f32 %v1264, %v1288
    %v1290 = vmin.f32 %v1289, 1.0
    %v1291 = vmax.f32 %v1290, -1.0
    %v1292 = vmul.f32 %v691, %v691
    %v1293 = vmin.f32 16.0, %v1292
    %v1294 = vmul.f32 %v1293, 2.1237322e-06
    %v1295 = vadd.f32 %v1294, 0.00028619796
    %v1296 = vmul.f32 %v1293, %v1295
    %v1297 = vadd.f32 %v1296, 0.0036580483
    %v1298 = vmul.f32 %v1293, %v1297
    %v1299 = vadd.f32 %v1298, 0.05243302
    %v1300 = vmul.f32 %v1293, %v1299
    %v1301 = vadd.f32 %v1300, 0.18741608
    %v1302 = vmul.f32 %v1293, %v1301
    %v1303 = vadd.f32 %v1302, 1.1283791
    %v1304 = vmul.f32 %v691, %v1303
    %v1305 = vmul.f32 %v1293, 3.8918573e-05
    %v1306 = vadd.f32 %v1305, 0.001143296
    %v1307 = vmul.f32 %v1293, %v1306
    %v1308 = vadd.f32 %v1307, 0.014752088
    %v1309 = vmul.f32 %v1293, %v1308
    %v1310 = vadd.f32 %v1309, 0.112945676
    %v1311 = vmul.f32 %v1293, %v1310
    %v1312 = vadd.f32 %v1311, 0.4994258
    %v1313 = vmul.f32 %v1293, %v1312
    %v1314 = vadd.f32 %v1313, 1.0
    %v1315 = vrcp.pop %v1314
    %v1316 = vmul.f32 %v1314, %v1315
    %v1317 = vsub.f32 1.0, %v1316
    %v1318 = vmul.f32 %v1315, %v1317
    %v1319 = vadd.f32 %v1315, %v1318
    %vm1320 = vweird.f32 %v1314
    %vm1321 = vweird.f32 %v1315
    %vm1322 = vmor %vm1320, %vm1321
    %v1323 = vsel %vm1322, %v1315, %v1319
    %v1324 = vand.u32 2147483647, %v1314
    %vm1325 = vcmp.eq.f32.partialorder %v1324, 8.507059e+37
    %v1326 = vand.u32 %v1314, 2147483648
    %v1327 = vor.u32 1.1754944e-38, %v1326
    %v1328 = vsel %vm1325, %v1327, %v1323
    %v1329 = vmul.f32 %v1304, %v1328
    %v1330 = vmin.f32 %v1329, 1.0
    %v1331 = vmax.f32 %v1330, -1.0
    %v1332 = vadd.f32 %v731, 1.0
    %v1333 = vadd.f32 %v771, 1.0
    %v1334 = vadd.f32 %v811, 1.0
    %v1335 = vadd.f32 %v851, 1.0
    %v1336 = vadd.f32 %v891, 1.0
    %v1337 = vadd.f32 %v931, 1.0
    %v1338 = vadd.f32 %v971, 1.0
    %v1339 = vadd.f32 %v1011, 1.0
    %v1340 = vadd.f32 %v1051, 1.0
    %v1341 = vadd.f32 %v1091, 1.0
    %v1342 = vadd.f32 %v1131, 1.0
    %v1343 = vadd.f32 %v1171, 1.0
    %v1344 = vadd.f32 %v1211, 1.0
    %v1345 = vadd.f32 %v1251, 1.0
    %v1346 = vadd.f32 %v1291, 1.0
    %v1347 = vadd.f32 %v1331, 1.0
    %v1348 = vmul.f32 %v660, %v1332
    %v1349 = vmul.f32 %v661, %v1333
    %v1350 = vmul.f32 %v662, %v1334
    %v1351 = vmul.f32 %v663, %v1335
    %v1352 = vmul.f32 %v664, %v1336
    %v1353 = vmul.f32 %v665, %v1337
    %v1354 = vmul.f32 %v666, %v1338
    %v1355 = vmul.f32 %v667, %v1339
    %v1356 = vmul.f32 %v668, %v1340
    %v1357 = vmul.f32 %v669, %v1341
    %v1358 = vmul.f32 %v670, %v1342
    %v1359 = vmul.f32 %v671, %v1343
    %v1360 = vmul.f32 %v672, %v1344
    %v1361 = vmul.f32 %v673, %v1345
    %v1362 = vmul.f32 %v674, %v1346
    %v1363 = vmul.f32 %v675, %v1347
    %v1364 = vpack.c.bf16 %v1348, %v1348
    %v1365 = vpack.c.bf16 %v1349, %v1349
    %v1366 = vpack.c.bf16 %v1350, %v1350
    %v1367 = vpack.c.bf16 %v1351, %v1351
    %v1368 = vpack.c.bf16 %v1352, %v1352
    %v1369 = vpack.c.bf16 %v1353, %v1353
    %v1370 = vpack.c.bf16 %v1354, %v1354
    %v1371 = vpack.c.bf16 %v1355, %v1355
    %v1372 = vpack.c.bf16 %v1356, %v1356
    %v1373 = vpack.c.bf16 %v1357, %v1357
    %v1374 = vpack.c.bf16 %v1358, %v1358
    %v1375 = vpack.c.bf16 %v1359, %v1359
    %v1376 = vpack.c.bf16 %v1360, %v1360
    %v1377 = vpack.c.bf16 %v1361, %v1361
    %v1378 = vpack.c.bf16 %v1362, %v1362
    %v1379 = vpack.c.bf16 %v1363, %v1363
    %v1380 = vld [vmem:[#allocation8] sm:$0xff]
    %v1381 = vld [vmem:[#allocation8 + $0x8] sm:$0xff]
    %v1382 = vld [vmem:[#allocation8 + $0x10] sm:$0xff]
    %v1383 = vld [vmem:[#allocation8 + $0x18] sm:$0xff]
    %v1384 = vld [vmem:[#allocation8 + $0x20] sm:$0xff]
    %v1385 = vld [vmem:[#allocation8 + $0x28] sm:$0xff]
    %v1386 = vld [vmem:[#allocation8 + $0x30] sm:$0xff]
    %v1387 = vld [vmem:[#allocation8 + $0x38] sm:$0xff]
    %v1388 = vld [vmem:[#allocation8 + $0x40] sm:$0xff]
    %v1389 = vld [vmem:[#allocation8 + $0x48] sm:$0xff]
    %v1390 = vld [vmem:[#allocation8 + $0x50] sm:$0xff]
    %v1391 = vld [vmem:[#allocation8 + $0x58] sm:$0xff]
    %v1392 = vld [vmem:[#allocation8 + $0x60] sm:$0xff]
    %v1393 = vld [vmem:[#allocation8 + $0x68] sm:$0xff]
    %v1394 = vld [vmem:[#allocation8 + $0x70] sm:$0xff]
    %v1395 = vld [vmem:[#allocation8 + $0x78] sm:$0xff]
    %v1396 = vld [vmem:[#allocation8 + $0x80] sm:$0xff]
    %v1397 = vld [vmem:[#allocation8 + $0x88] sm:$0xff]
    %v1398 = vld [vmem:[#allocation8 + $0x90] sm:$0xff]
    %v1399 = vld [vmem:[#allocation8 + $0x98] sm:$0xff]
    %v1400 = vld [vmem:[#allocation8 + $0xa0] sm:$0xff]
    %v1401 = vld [vmem:[#allocation8 + $0xa8] sm:$0xff]
    %v1402 = vld [vmem:[#allocation8 + $0xb0] sm:$0xff]
    %v1403 = vld [vmem:[#allocation8 + $0xb8] sm:$0xff]
    %v1404 = vld [vmem:[#allocation8 + $0xc0] sm:$0xff]
    %v1405 = vld [vmem:[#allocation8 + $0xc8] sm:$0xff]
    %v1406 = vld [vmem:[#allocation8 + $0xd0] sm:$0xff]
    %v1407 = vld [vmem:[#allocation8 + $0xd8] sm:$0xff]
    %v1408 = vld [vmem:[#allocation8 + $0xe0] sm:$0xff]
    %v1409 = vld [vmem:[#allocation8 + $0xe8] sm:$0xff]
    %v1410 = vld [vmem:[#allocation8 + $0xf0] sm:$0xff]
    %v1411 = vld [vmem:[#allocation8 + $0xf8] sm:$0xff]
    %v1412 = vperm.slane %v151, 3
    %v1445 = vunpack.c.l.b16 %v1380
    %v1446 = vunpack.c.h.b16 %v1380
    %v1447 = vunpack.c.l.b16 %v1381
    %v1448 = vunpack.c.h.b16 %v1381
    %v1449 = vunpack.c.l.b16 %v1382
    %v1450 = vunpack.c.h.b16 %v1382
    %v1451 = vunpack.c.l.b16 %v1383
    %v1452 = vunpack.c.h.b16 %v1383
    %v1453 = vunpack.c.l.b16 %v1384
    %v1454 = vunpack.c.h.b16 %v1384
    %v1455 = vunpack.c.l.b16 %v1385
    %v1456 = vunpack.c.h.b16 %v1385
    %v1457 = vunpack.c.l.b16 %v1386
    %v1458 = vunpack.c.h.b16 %v1386
    %v1459 = vunpack.c.l.b16 %v1387
    %v1460 = vunpack.c.h.b16 %v1387
    %v1461 = vunpack.c.l.b16 %v1388
    %v1462 = vunpack.c.h.b16 %v1388
    %v1463 = vunpack.c.l.b16 %v1389
    %v1464 = vunpack.c.h.b16 %v1389
    %v1465 = vunpack.c.l.b16 %v1390
    %v1466 = vunpack.c.h.b16 %v1390
    %v1467 = vunpack.c.l.b16 %v1391
    %v1468 = vunpack.c.h.b16 %v1391
    %v1469 = vunpack.c.l.b16 %v1392
    %v1470 = vunpack.c.h.b16 %v1392
    %v1471 = vunpack.c.l.b16 %v1393
    %v1472 = vunpack.c.h.b16 %v1393
    %v1473 = vunpack.c.l.b16 %v1394
    %v1474 = vunpack.c.h.b16 %v1394
    %v1475 = vunpack.c.l.b16 %v1395
    %v1476 = vunpack.c.h.b16 %v1395
    %v1477 = vunpack.c.l.b16 %v1396
    %v1478 = vunpack.c.h.b16 %v1396
    %v1479 = vunpack.c.l.b16 %v1397
    %v1480 = vunpack.c.h.b16 %v1397
    %v1481 = vunpack.c.l.b16 %v1398
    %v1482 = vunpack.c.h.b16 %v1398
    %v1483 = vunpack.c.l.b16 %v1399
    %v1484 = vunpack.c.h.b16 %v1399
    %v1485 = vunpack.c.l.b16 %v1400
    %v1486 = vunpack.c.h.b16 %v1400
    %v1487 = vunpack.c.l.b16 %v1401
    %v1488 = vunpack.c.h.b16 %v1401
    %v1489 = vunpack.c.l.b16 %v1402
    %v1490 = vunpack.c.h.b16 %v1402
    %v1491 = vunpack.c.l.b16 %v1403
    %v1492 = vunpack.c.h.b16 %v1403
    %v1493 = vunpack.c.l.b16 %v1404
    %v1494 = vunpack.c.h.b16 %v1404
    %v1495 = vunpack.c.l.b16 %v1405
    %v1496 = vunpack.c.h.b16 %v1405
    %v1497 = vunpack.c.l.b16 %v1406
    %v1498 = vunpack.c.h.b16 %v1406
    %v1499 = vunpack.c.l.b16 %v1407
    %v1500 = vunpack.c.h.b16 %v1407
    %v1501 = vunpack.c.l.b16 %v1408
    %v1502 = vunpack.c.h.b16 %v1408
    %v1503 = vunpack.c.l.b16 %v1409
    %v1504 = vunpack.c.h.b16 %v1409
    %v1505 = vunpack.c.l.b16 %v1410
    %v1506 = vunpack.c.h.b16 %v1410
    %v1507 = vunpack.c.l.b16 %v1411
    %v1508 = vunpack.c.h.b16 %v1411
    %v1509 = vpack.c.b16 %v1461, %v1445
    %v1510 = vpack.c.b16 %v1462, %v1446
    %v1511 = vpack.c.b16 %v1463, %v1447
    %v1512 = vpack.c.b16 %v1464, %v1448
    %v1513 = vpack.c.b16 %v1465, %v1449
    %v1514 = vpack.c.b16 %v1466, %v1450
    %v1515 = vpack.c.b16 %v1467, %v1451
    %v1516 = vpack.c.b16 %v1468, %v1452
    %v1517 = vpack.c.b16 %v1469, %v1453
    %v1518 = vpack.c.b16 %v1470, %v1454
    %v1519 = vpack.c.b16 %v1471, %v1455
    %v1520 = vpack.c.b16 %v1472, %v1456
    %v1521 = vpack.c.b16 %v1473, %v1457
    %v1522 = vpack.c.b16 %v1474, %v1458
    %v1523 = vpack.c.b16 %v1475, %v1459
    %v1524 = vpack.c.b16 %v1476, %v1460
    %v1525 = vpack.c.b16 %v1493, %v1477
    %v1526 = vpack.c.b16 %v1494, %v1478
    %v1527 = vpack.c.b16 %v1495, %v1479
    %v1528 = vpack.c.b16 %v1496, %v1480
    %v1529 = vpack.c.b16 %v1497, %v1481
    %v1530 = vpack.c.b16 %v1498, %v1482
    %v1531 = vpack.c.b16 %v1499, %v1483
    %v1532 = vpack.c.b16 %v1500, %v1484
    %v1533 = vpack.c.b16 %v1501, %v1485
    %v1534 = vpack.c.b16 %v1502, %v1486
    %v1535 = vpack.c.b16 %v1503, %v1487
    %v1536 = vpack.c.b16 %v1504, %v1488
    %v1537 = vpack.c.b16 %v1505, %v1489
    %v1538 = vpack.c.b16 %v1506, %v1490
    %v1539 = vpack.c.b16 %v1507, %v1491
    %v1540 = vpack.c.b16 %v1508, %v1492
    %1573 = vmatpush.bf16.xpose.msra.mxu0 0
    %1574 = vmatpush.bf16.xpose.msra.mxu0 0
    %1575 = vmatpush.bf16.xpose.msra.mxu0 0
    %1576 = vmatpush.bf16.xpose.msra.mxu0 0
    %1577 = vmatpush.bf16.xpose.msra.mxu0 0
    %1578 = vmatpush.bf16.xpose.msra.mxu0 0
    %1579 = vmatpush.bf16.xpose.msra.mxu0 %v1525
    %1580 = vmatpush.bf16.xpose.msra.mxu0 %v1509
    %1581 = vmatmul.bf16.gmra.mxu0 %v1364
    %v1582 = vpop.f32.mrf.mxu0
    %v1583 = vadd.f32 %v1412, %v1582
    %v1584 = vpop.f32.mrf.mxu0
    %1585 = vdwg.mxu0
    %1586 = vmatpush.bf16.xpose.msra.mxu0 0
    %1587 = vmatpush.bf16.xpose.msra.mxu0 0
    %1588 = vmatpush.bf16.xpose.msra.mxu0 0
    %1589 = vmatpush.bf16.xpose.msra.mxu0 0
    %1590 = vmatpush.bf16.xpose.msra.mxu0 0
    %1591 = vmatpush.bf16.xpose.msra.mxu0 0
    %1592 = vmatpush.bf16.xpose.msra.mxu0 %v1526
    %1593 = vmatpush.bf16.xpose.msra.mxu0 %v1510
    %1594 = vmatmul.bf16.gmra.mxu0 %v1365
    %v1595 = vpop.f32.mrf.mxu0
    %v1596 = vadd.f32 %v1583, %v1595
    %v1597 = vpop.f32.mrf.mxu0
    %1598 = vdwg.mxu0
    %1599 = vmatpush.bf16.xpose.msra.mxu0 0
    %1600 = vmatpush.bf16.xpose.msra.mxu0 0
    %1601 = vmatpush.bf16.xpose.msra.mxu0 0
    %1602 = vmatpush.bf16.xpose.msra.mxu0 0
    %1603 = vmatpush.bf16.xpose.msra.mxu0 0
    %1604 = vmatpush.bf16.xpose.msra.mxu0 0
    %1605 = vmatpush.bf16.xpose.msra.mxu0 %v1527
    %1606 = vmatpush.bf16.xpose.msra.mxu0 %v1511
    %1607 = vmatmul.bf16.gmra.mxu0 %v1366
    %v1608 = vpop.f32.mrf.mxu0
    %v1609 = vadd.f32 %v1596, %v1608
    %v1610 = vpop.f32.mrf.mxu0
    %1611 = vdwg.mxu0
    %1612 = vmatpush.bf16.xpose.msra.mxu0 0
    %1613 = vmatpush.bf16.xpose.msra.mxu0 0
    %1614 = vmatpush.bf16.xpose.msra.mxu0 0
    %1615 = vmatpush.bf16.xpose.msra.mxu0 0
    %1616 = vmatpush.bf16.xpose.msra.mxu0 0
    %1617 = vmatpush.bf16.xpose.msra.mxu0 0
    %1618 = vmatpush.bf16.xpose.msra.mxu0 %v1528
    %1619 = vmatpush.bf16.xpose.msra.mxu0 %v1512
    %1620 = vmatmul.bf16.gmra.mxu0 %v1367
    %v1621 = vpop.f32.mrf.mxu0
    %v1622 = vadd.f32 %v1609, %v1621
    %v1623 = vpop.f32.mrf.mxu0
    %1624 = vdwg.mxu0
    %1625 = vmatpush.bf16.xpose.msra.mxu0 0
    %1626 = vmatpush.bf16.xpose.msra.mxu0 0
    %1627 = vmatpush.bf16.xpose.msra.mxu0 0
    %1628 = vmatpush.bf16.xpose.msra.mxu0 0
    %1629 = vmatpush.bf16.xpose.msra.mxu0 0
    %1630 = vmatpush.bf16.xpose.msra.mxu0 0
    %1631 = vmatpush.bf16.xpose.msra.mxu0 %v1529
    %1632 = vmatpush.bf16.xpose.msra.mxu0 %v1513
    %1633 = vmatmul.bf16.gmra.mxu0 %v1368
    %v1634 = vpop.f32.mrf.mxu0
    %v1635 = vadd.f32 %v1622, %v1634
    %v1636 = vpop.f32.mrf.mxu0
    %1637 = vdwg.mxu0
    %1638 = vmatpush.bf16.xpose.msra.mxu0 0
    %1639 = vmatpush.bf16.xpose.msra.mxu0 0
    %1640 = vmatpush.bf16.xpose.msra.mxu0 0
    %1641 = vmatpush.bf16.xpose.msra.mxu0 0
    %1642 = vmatpush.bf16.xpose.msra.mxu0 0
    %1643 = vmatpush.bf16.xpose.msra.mxu0 0
    %1644 = vmatpush.bf16.xpose.msra.mxu0 %v1530
    %1645 = vmatpush.bf16.xpose.msra.mxu0 %v1514
    %1646 = vmatmul.bf16.gmra.mxu0 %v1369
    %v1647 = vpop.f32.mrf.mxu0
    %v1648 = vadd.f32 %v1635, %v1647
    %v1649 = vpop.f32.mrf.mxu0
    %1650 = vdwg.mxu0
    %1651 = vmatpush.bf16.xpose.msra.mxu0 0
    %1652 = vmatpush.bf16.xpose.msra.mxu0 0
    %1653 = vmatpush.bf16.xpose.msra.mxu0 0
    %1654 = vmatpush.bf16.xpose.msra.mxu0 0
    %1655 = vmatpush.bf16.xpose.msra.mxu0 0
    %1656 = vmatpush.bf16.xpose.msra.mxu0 0
    %1657 = vmatpush.bf16.xpose.msra.mxu0 %v1531
    %1658 = vmatpush.bf16.xpose.msra.mxu0 %v1515
    %1659 = vmatmul.bf16.gmra.mxu0 %v1370
    %v1660 = vpop.f32.mrf.mxu0
    %v1661 = vadd.f32 %v1648, %v1660
    %v1662 = vpop.f32.mrf.mxu0
    %1663 = vdwg.mxu0
    %1664 = vmatpush.bf16.xpose.msra.mxu0 0
    %1665 = vmatpush.bf16.xpose.msra.mxu0 0
    %1666 = vmatpush.bf16.xpose.msra.mxu0 0
    %1667 = vmatpush.bf16.xpose.msra.mxu0 0
    %1668 = vmatpush.bf16.xpose.msra.mxu0 0
    %1669 = vmatpush.bf16.xpose.msra.mxu0 0
    %1670 = vmatpush.bf16.xpose.msra.mxu0 %v1532
    %1671 = vmatpush.bf16.xpose.msra.mxu0 %v1516
    %1672 = vmatmul.bf16.gmra.mxu0 %v1371
    %v1673 = vpop.f32.mrf.mxu0
    %v1674 = vadd.f32 %v1661, %v1673
    %v1675 = vpop.f32.mrf.mxu0
    %1676 = vdwg.mxu0
    %1677 = vmatpush.bf16.xpose.msra.mxu0 0
    %1678 = vmatpush.bf16.xpose.msra.mxu0 0
    %1679 = vmatpush.bf16.xpose.msra.mxu0 0
    %1680 = vmatpush.bf16.xpose.msra.mxu0 0
    %1681 = vmatpush.bf16.xpose.msra.mxu0 0
    %1682 = vmatpush.bf16.xpose.msra.mxu0 0
    %1683 = vmatpush.bf16.xpose.msra.mxu0 %v1533
    %1684 = vmatpush.bf16.xpose.msra.mxu0 %v1517
    %1685 = vmatmul.bf16.gmra.mxu0 %v1372
    %v1686 = vpop.f32.mrf.mxu0
    %v1687 = vadd.f32 %v1674, %v1686
    %v1688 = vpop.f32.mrf.mxu0
    %1689 = vdwg.mxu0
    %1690 = vmatpush.bf16.xpose.msra.mxu0 0
    %1691 = vmatpush.bf16.xpose.msra.mxu0 0
    %1692 = vmatpush.bf16.xpose.msra.mxu0 0
    %1693 = vmatpush.bf16.xpose.msra.mxu0 0
    %1694 = vmatpush.bf16.xpose.msra.mxu0 0
    %1695 = vmatpush.bf16.xpose.msra.mxu0 0
    %1696 = vmatpush.bf16.xpose.msra.mxu0 %v1534
    %1697 = vmatpush.bf16.xpose.msra.mxu0 %v1518
    %1698 = vmatmul.bf16.gmra.mxu0 %v1373
    %v1699 = vpop.f32.mrf.mxu0
    %v1700 = vadd.f32 %v1687, %v1699
    %v1701 = vpop.f32.mrf.mxu0
    %1702 = vdwg.mxu0
    %1703 = vmatpush.bf16.xpose.msra.mxu0 0
    %1704 = vmatpush.bf16.xpose.msra.mxu0 0
    %1705 = vmatpush.bf16.xpose.msra.mxu0 0
    %1706 = vmatpush.bf16.xpose.msra.mxu0 0
    %1707 = vmatpush.bf16.xpose.msra.mxu0 0
    %1708 = vmatpush.bf16.xpose.msra.mxu0 0
    %1709 = vmatpush.bf16.xpose.msra.mxu0 %v1535
    %1710 = vmatpush.bf16.xpose.msra.mxu0 %v1519
    %1711 = vmatmul.bf16.gmra.mxu0 %v1374
    %v1712 = vpop.f32.mrf.mxu0
    %v1713 = vadd.f32 %v1700, %v1712
    %v1714 = vpop.f32.mrf.mxu0
    %1715 = vdwg.mxu0
    %1716 = vmatpush.bf16.xpose.msra.mxu0 0
    %1717 = vmatpush.bf16.xpose.msra.mxu0 0
    %1718 = vmatpush.bf16.xpose.msra.mxu0 0
    %1719 = vmatpush.bf16.xpose.msra.mxu0 0
    %1720 = vmatpush.bf16.xpose.msra.mxu0 0
    %1721 = vmatpush.bf16.xpose.msra.mxu0 0
    %1722 = vmatpush.bf16.xpose.msra.mxu0 %v1536
    %1723 = vmatpush.bf16.xpose.msra.mxu0 %v1520
    %1724 = vmatmul.bf16.gmra.mxu0 %v1375
    %v1725 = vpop.f32.mrf.mxu0
    %v1726 = vadd.f32 %v1713, %v1725
    %v1727 = vpop.f32.mrf.mxu0
    %1728 = vdwg.mxu0
    %1729 = vmatpush.bf16.xpose.msra.mxu0 0
    %1730 = vmatpush.bf16.xpose.msra.mxu0 0
    %1731 = vmatpush.bf16.xpose.msra.mxu0 0
    %1732 = vmatpush.bf16.xpose.msra.mxu0 0
    %1733 = vmatpush.bf16.xpose.msra.mxu0 0
    %1734 = vmatpush.bf16.xpose.msra.mxu0 0
    %1735 = vmatpush.bf16.xpose.msra.mxu0 %v1537
    %1736 = vmatpush.bf16.xpose.msra.mxu0 %v1521
    %1737 = vmatmul.bf16.gmra.mxu0 %v1376
    %v1738 = vpop.f32.mrf.mxu0
    %v1739 = vadd.f32 %v1726, %v1738
    %v1740 = vpop.f32.mrf.mxu0
    %1741 = vdwg.mxu0
    %1742 = vmatpush.bf16.xpose.msra.mxu0 0
    %1743 = vmatpush.bf16.xpose.msra.mxu0 0
    %1744 = vmatpush.bf16.xpose.msra.mxu0 0
    %1745 = vmatpush.bf16.xpose.msra.mxu0 0
    %1746 = vmatpush.bf16.xpose.msra.mxu0 0
    %1747 = vmatpush.bf16.xpose.msra.mxu0 0
    %1748 = vmatpush.bf16.xpose.msra.mxu0 %v1538
    %1749 = vmatpush.bf16.xpose.msra.mxu0 %v1522
    %1750 = vmatmul.bf16.gmra.mxu0 %v1377
    %v1751 = vpop.f32.mrf.mxu0
    %v1752 = vadd.f32 %v1739, %v1751
    %v1753 = vpop.f32.mrf.mxu0
    %1754 = vdwg.mxu0
    %1755 = vmatpush.bf16.xpose.msra.mxu0 0
    %1756 = vmatpush.bf16.xpose.msra.mxu0 0
    %1757 = vmatpush.bf16.xpose.msra.mxu0 0
    %1758 = vmatpush.bf16.xpose.msra.mxu0 0
    %1759 = vmatpush.bf16.xpose.msra.mxu0 0
    %1760 = vmatpush.bf16.xpose.msra.mxu0 0
    %1761 = vmatpush.bf16.xpose.msra.mxu0 %v1539
    %1762 = vmatpush.bf16.xpose.msra.mxu0 %v1523
    %1763 = vmatmul.bf16.gmra.mxu0 %v1378
    %v1764 = vpop.f32.mrf.mxu0
    %v1765 = vadd.f32 %v1752, %v1764
    %v1766 = vpop.f32.mrf.mxu0
    %1767 = vdwg.mxu0
    %1768 = vmatpush.bf16.xpose.msra.mxu0 0
    %1769 = vmatpush.bf16.xpose.msra.mxu0 0
    %1770 = vmatpush.bf16.xpose.msra.mxu0 0
    %1771 = vmatpush.bf16.xpose.msra.mxu0 0
    %1772 = vmatpush.bf16.xpose.msra.mxu0 0
    %1773 = vmatpush.bf16.xpose.msra.mxu0 0
    %1774 = vmatpush.bf16.xpose.msra.mxu0 %v1540
    %1775 = vmatpush.bf16.xpose.msra.mxu0 %v1524
    %1776 = vmatmul.bf16.gmra.mxu0 %v1379
    %v1777 = vpop.f32.mrf.mxu0
    %v1778 = vadd.f32 %v1765, %v1777
    %v1779 = vpop.f32.mrf.mxu0
    %1780 = vdwg.mxu0
    %v1781 = vsel %vm169, %v1778, 0.0
    %1782 = vadd.xlane.f32.xlu0 %v1781
    %v1783 = vpop.xlane.xlu0 %1782
    %v1784 = vmul.f32 %v1783, %v195
    %v1785 = vsub.f32 %v1778, %v1784
    %v1786 = vmul.f32 %v1785, %v1785
    %v1787 = vsel %vm169, %v1786, 0.0
    %1788 = vadd.xlane.f32.xlu0 %v1787
    %v1789 = vpop.xlane.xlu0 %1788
    %v1790 = vmul.f32 %v1789, %v195
    %v1791 = vadd.f32 %v1790, 1e-05
    %v1792 = vrsqrt.pop %v1791
    %v1793 = vmul.f32 %v1792, %v1791
    %v1794 = vmul.f32 %v1793, %v1792
    %v1795 = vmul.f32 0.5, %v1794
    %v1796 = vsub.f32 1.5, %v1795
    %v1797 = vmul.f32 %v1792, %v1796
    %vm1798 = vweird.f32 %v1791
    %vm1799 = vweird.f32 %v1792
    %vm1800 = vmor %vm1798, %vm1799
    %v1801 = vsel %vm1800, %v1792, %v1797
    %v1802 = vmul.f32 %v1785, %v1801
    %v1803 = vperm.slane %v151, 4
    %v1804 = vmul.f32 %v1802, %v1803
    %v1805 = vperm.slane %v151, 5
    %v1806 = vadd.f32 %v1804, %v1805
    %v1807 = vmul.f32 %v1806, 0.5
    %v1808 = vmul.f32 %v1806, 0.70710677
    %v1809 = vmul.f32 %v1808, %v1808
    %v1810 = vmin.f32 16.0, %v1809
    %v1811 = vmul.f32 %v1810, 2.1237322e-06
    %v1812 = vadd.f32 %v1811, 0.00028619796
    %v1813 = vmul.f32 %v1810, %v1812
    %v1814 = vadd.f32 %v1813, 0.0036580483
    %v1815 = vmul.f32 %v1810, %v1814
    %v1816 = vadd.f32 %v1815, 0.05243302
    %v1817 = vmul.f32 %v1810, %v1816
    %v1818 = vadd.f32 %v1817, 0.18741608
    %v1819 = vmul.f32 %v1810, %v1818
    %v1820 = vadd.f32 %v1819, 1.1283791
    %v1821 = vmul.f32 %v1808, %v1820
    %v1822 = vmul.f32 %v1810, 3.8918573e-05
    %v1823 = vadd.f32 %v1822, 0.001143296
    %v1824 = vmul.f32 %v1810, %v1823
    %v1825 = vadd.f32 %v1824, 0.014752088
    %v1826 = vmul.f32 %v1810, %v1825
    %v1827 = vadd.f32 %v1826, 0.112945676
    %v1828 = vmul.f32 %v1810, %v1827
    %v1829 = vadd.f32 %v1828, 0.4994258
    %v1830 = vmul.f32 %v1810, %v1829
    %v1831 = vadd.f32 %v1830, 1.0
    %v1832 = vrcp.pop %v1831
    %v1833 = vmul.f32 %v1831, %v1832
    %v1834 = vsub.f32 1.0, %v1833
    %v1835 = vmul.f32 %v1832, %v1834
    %v1836 = vadd.f32 %v1832, %v1835
    %vm1837 = vweird.f32 %v1831
    %vm1838 = vweird.f32 %v1832
    %vm1839 = vmor %vm1837, %vm1838
    %v1840 = vsel %vm1839, %v1832, %v1836
    %v1841 = vand.u32 2147483647, %v1831
    %vm1842 = vcmp.eq.f32.partialorder %v1841, 8.507059e+37
    %v1843 = vand.u32 %v1831, 2147483648
    %v1844 = vor.u32 1.1754944e-38, %v1843
    %v1845 = vsel %vm1842, %v1844, %v1840
    %v1846 = vmul.f32 %v1821, %v1845
    %v1847 = vmin.f32 %v1846, 1.0
    %v1848 = vmax.f32 %v1847, -1.0
    %v1849 = vadd.f32 %v1848, 1.0
    %v1850 = vmul.f32 %v1807, %v1849
    %v1851 = vadd.f32 %v218, %v1850
    %v1852 = vmul.f32 %v1851, 0.5
    %v1853 = vadd.f32 %v1852, %v183
    %v1854 = vmul.f32 %v1853, 0.5
    %v1855 = vperm.slane %v151, 6
    %v1856 = vmul.f32 %v1854, %v1855
    %v1857 = vsel %vm169, %v1856, 0.0
    %1858 = vadd.xlane.f32.xlu0 %v1857
    %v1859 = vpop.xlane.xlu0 %1858
    %s1860 = sld [smem:[#allocation13]]
    %v1861 = vstv %s1860
    %v1862 = vadd.f32 %v1859, %v1861
    %s1863 = scalar_lea.vmem [#allocation11], 8
    %v1864 = vld [vmem:[%s1863] sm:$0x7f]
    %s1865 = scalar_lea.vmem [#allocation5], 16
    %v1866 = vld [vmem:[%s1865] sm:$0xf]
    %v1867 = vld [vmem:[%s1865 + $0x4] sm:$0xf]
    %v1868 = vld [vmem:[%s1865 + $0x8] sm:$0xf]
    %v1869 = vld [vmem:[%s1865 + $0xc] sm:$0xf]
    %v1870 = vperm.slane %v1864, 0
    %v1875 = vunpack.c.l.b16 %v1866
    %v1876 = vunpack.c.l.b16 %v1867
    %v1877 = vunpack.c.l.b16 %v1868
    %v1878 = vunpack.c.l.b16 %v1869
    %v1879 = vpack.c.b16 %v1876, %v1875
    %v1880 = vpack.c.b16 %v1878, %v1877
    %1883 = vmatpush.bf16.msra.mxu0 0
    %1884 = vmatpush.bf16.msra.mxu0 0
    %1885 = vmatpush.bf16.msra.mxu0 0
    %1886 = vmatpush.bf16.msra.mxu0 0
    %1887 = vmatpush.bf16.msra.mxu0 0
    %1888 = vmatpush.bf16.msra.mxu0 0
    %1889 = vmatpush.bf16.msra.mxu0 %v1880
    %1890 = vmatpush.bf16.msra.mxu0 %v1879
    %1891 = vmatmul.bf16.gmra.mxu0 %v171
    %v1892 = vpop.f32.mrf.mxu0
    %v1893 = vadd.f32 %v1870, %v1892
    %v1894 = vpop.f32.mrf.mxu0
    %1895 = vdwg.mxu0
    %v1896 = vsel %vm169, %v1893, 0.0
    %1897 = vadd.xlane.f32.xlu0 %v1896
    %v1898 = vpop.xlane.xlu0 %1897
    %v1899 = vmul.f32 %v1898, %v195
    %v1900 = vsub.f32 %v1893, %v1899
    %v1901 = vmul.f32 %v1900, %v1900
    %v1902 = vsel %vm169, %v1901, 0.0
    %1903 = vadd.xlane.f32.xlu0 %v1902
    %v1904 = vpop.xlane.xlu0 %1903
    %v1905 = vmul.f32 %v1904, %v195
    %v1906 = vadd.f32 %v1905, 1e-05
    %v1907 = vrsqrt.pop %v1906
    %v1908 = vmul.f32 %v1907, %v1906
    %v1909 = vmul.f32 %v1908, %v1907
    %v1910 = vmul.f32 0.5, %v1909
    %v1911 = vsub.f32 1.5, %v1910
    %v1912 = vmul.f32 %v1907, %v1911
    %vm1913 = vweird.f32 %v1906
    %vm1914 = vweird.f32 %v1907
    %vm1915 = vmor %vm1913, %vm1914
    %v1916 = vsel %vm1915, %v1907, %v1912
    %v1917 = vmul.f32 %v1900, %v1916
    %v1918 = vperm.slane %v1864, 1
    %v1919 = vmul.f32 %v1917, %v1918
    %v1920 = vperm.slane %v1864, 2
    %v1921 = vadd.f32 %v1919, %v1920
    %v1922 = vpack.c.bf16 %v1921, %v1921
    %s1923 = scalar_lea.vmem [#allocation7], 256
    %v1924 = vld [vmem:[%s1923] sm:$0xff]
    %v1925 = vld [vmem:[%s1923 + $0x8] sm:$0xff]
    %v1926 = vld [vmem:[%s1923 + $0x10] sm:$0xff]
    %v1927 = vld [vmem:[%s1923 + $0x18] sm:$0xff]
    %v1928 = vld [vmem:[%s1923 + $0x20] sm:$0xff]
    %v1929 = vld [vmem:[%s1923 + $0x28] sm:$0xff]
    %v1930 = vld [vmem:[%s1923 + $0x30] sm:$0xff]
    %v1931 = vld [vmem:[%s1923 + $0x38] sm:$0xff]
    %v1932 = vld [vmem:[%s1923 + $0x40] sm:$0xff]
    %v1933 = vld [vmem:[%s1923 + $0x48] sm:$0xff]
    %v1934 = vld [vmem:[%s1923 + $0x50] sm:$0xff]
    %v1935 = vld [vmem:[%s1923 + $0x58] sm:$0xff]
    %v1936 = vld [vmem:[%s1923 + $0x60] sm:$0xff]
    %v1937 = vld [vmem:[%s1923 + $0x68] sm:$0xff]
    %v1938 = vld [vmem:[%s1923 + $0x70] sm:$0xff]
    %v1939 = vld [vmem:[%s1923 + $0x78] sm:$0xff]
    %v1940 = vld [vmem:[%s1923 + $0x80] sm:$0xff]
    %v1941 = vld [vmem:[%s1923 + $0x88] sm:$0xff]
    %v1942 = vld [vmem:[%s1923 + $0x90] sm:$0xff]
    %v1943 = vld [vmem:[%s1923 + $0x98] sm:$0xff]
    %v1944 = vld [vmem:[%s1923 + $0xa0] sm:$0xff]
    %v1945 = vld [vmem:[%s1923 + $0xa8] sm:$0xff]
    %v1946 = vld [vmem:[%s1923 + $0xb0] sm:$0xff]
    %v1947 = vld [vmem:[%s1923 + $0xb8] sm:$0xff]
    %v1948 = vld [vmem:[%s1923 + $0xc0] sm:$0xff]
    %v1949 = vld [vmem:[%s1923 + $0xc8] sm:$0xff]
    %v1950 = vld [vmem:[%s1923 + $0xd0] sm:$0xff]
    %v1951 = vld [vmem:[%s1923 + $0xd8] sm:$0xff]
    %v1952 = vld [vmem:[%s1923 + $0xe0] sm:$0xff]
    %v1953 = vld [vmem:[%s1923 + $0xe8] sm:$0xff]
    %v1954 = vld [vmem:[%s1923 + $0xf0] sm:$0xff]
    %v1955 = vld [vmem:[%s1923 + $0xf8] sm:$0xff]
    %s1956 = scalar_lea.vmem [#allocation10], 1
    %v1957 = vld [vmem:[%s1956] ss:$4 sm:$0xff]
    %s1958 = scalar_lea.vmem [#allocation10], 33
    %v1959 = vld [vmem:[%s1958] ss:$4 sm:$0xff]
    %v1962 = vperm.slane %v1957, 0
    %v1963 = vperm.slane %v1957, 1
    %v1964 = vperm.slane %v1957, 2
    %v1965 = vperm.slane %v1957, 3
    %v1966 = vperm.slane %v1957, 4
    %v1967 = vperm.slane %v1957, 5
    %v1968 = vperm.slane %v1957, 6
    %v1969 = vperm.slane %v1957, 7
    %v1970 = vperm.slane %v1959, 0
    %v1971 = vperm.slane %v1959, 1
    %v1972 = vperm.slane %v1959, 2
    %v1973 = vperm.slane %v1959, 3
    %v1974 = vperm.slane %v1959, 4
    %v1975 = vperm.slane %v1959, 5
    %v1976 = vperm.slane %v1959, 6
    %v1977 = vperm.slane %v1959, 7
    %v2026 = vunpack.c.l.b16 %v1924
    %v2027 = vunpack.c.h.b16 %v1924
    %v2028 = vunpack.c.l.b16 %v1925
    %v2029 = vunpack.c.h.b16 %v1925
    %v2030 = vunpack.c.l.b16 %v1926
    %v2031 = vunpack.c.h.b16 %v1926
    %v2032 = vunpack.c.l.b16 %v1927
    %v2033 = vunpack.c.h.b16 %v1927
    %v2034 = vunpack.c.l.b16 %v1928
    %v2035 = vunpack.c.h.b16 %v1928
    %v2036 = vunpack.c.l.b16 %v1929
    %v2037 = vunpack.c.h.b16 %v1929
    %v2038 = vunpack.c.l.b16 %v1930
    %v2039 = vunpack.c.h.b16 %v1930
    %v2040 = vunpack.c.l.b16 %v1931
    %v2041 = vunpack.c.h.b16 %v1931
    %v2042 = vunpack.c.l.b16 %v1932
    %v2043 = vunpack.c.h.b16 %v1932
    %v2044 = vunpack.c.l.b16 %v1933
    %v2045 = vunpack.c.h.b16 %v1933
    %v2046 = vunpack.c.l.b16 %v1934
    %v2047 = vunpack.c.h.b16 %v1934
    %v2048 = vunpack.c.l.b16 %v1935
    %v2049 = vunpack.c.h.b16 %v1935
    %v2050 = vunpack.c.l.b16 %v1936
    %v2051 = vunpack.c.h.b16 %v1936
    %v2052 = vunpack.c.l.b16 %v1937
    %v2053 = vunpack.c.h.b16 %v1937
    %v2054 = vunpack.c.l.b16 %v1938
    %v2055 = vunpack.c.h.b16 %v1938
    %v2056 = vunpack.c.l.b16 %v1939
    %v2057 = vunpack.c.h.b16 %v1939
    %v2058 = vunpack.c.l.b16 %v1940
    %v2059 = vunpack.c.h.b16 %v1940
    %v2060 = vunpack.c.l.b16 %v1941
    %v2061 = vunpack.c.h.b16 %v1941
    %v2062 = vunpack.c.l.b16 %v1942
    %v2063 = vunpack.c.h.b16 %v1942
    %v2064 = vunpack.c.l.b16 %v1943
    %v2065 = vunpack.c.h.b16 %v1943
    %v2066 = vunpack.c.l.b16 %v1944
    %v2067 = vunpack.c.h.b16 %v1944
    %v2068 = vunpack.c.l.b16 %v1945
    %v2069 = vunpack.c.h.b16 %v1945
    %v2070 = vunpack.c.l.b16 %v1946
    %v2071 = vunpack.c.h.b16 %v1946
    %v2072 = vunpack.c.l.b16 %v1947
    %v2073 = vunpack.c.h.b16 %v1947
    %v2074 = vunpack.c.l.b16 %v1948
    %v2075 = vunpack.c.h.b16 %v1948
    %v2076 = vunpack.c.l.b16 %v1949
    %v2077 = vunpack.c.h.b16 %v1949
    %v2078 = vunpack.c.l.b16 %v1950
    %v2079 = vunpack.c.h.b16 %v1950
    %v2080 = vunpack.c.l.b16 %v1951
    %v2081 = vunpack.c.h.b16 %v1951
    %v2082 = vunpack.c.l.b16 %v1952
    %v2083 = vunpack.c.h.b16 %v1952
    %v2084 = vunpack.c.l.b16 %v1953
    %v2085 = vunpack.c.h.b16 %v1953
    %v2086 = vunpack.c.l.b16 %v1954
    %v2087 = vunpack.c.h.b16 %v1954
    %v2088 = vunpack.c.l.b16 %v1955
    %v2089 = vunpack.c.h.b16 %v1955
    %v2090 = vpack.c.b16 %v2042, %v2026
    %v2091 = vpack.c.b16 %v2043, %v2027
    %v2092 = vpack.c.b16 %v2044, %v2028
    %v2093 = vpack.c.b16 %v2045, %v2029
    %v2094 = vpack.c.b16 %v2046, %v2030
    %v2095 = vpack.c.b16 %v2047, %v2031
    %v2096 = vpack.c.b16 %v2048, %v2032
    %v2097 = vpack.c.b16 %v2049, %v2033
    %v2098 = vpack.c.b16 %v2050, %v2034
    %v2099 = vpack.c.b16 %v2051, %v2035
    %v2100 = vpack.c.b16 %v2052, %v2036
    %v2101 = vpack.c.b16 %v2053, %v2037
    %v2102 = vpack.c.b16 %v2054, %v2038
    %v2103 = vpack.c.b16 %v2055, %v2039
    %v2104 = vpack.c.b16 %v2056, %v2040
    %v2105 = vpack.c.b16 %v2057, %v2041
    %v2106 = vpack.c.b16 %v2074, %v2058
    %v2107 = vpack.c.b16 %v2075, %v2059
    %v2108 = vpack.c.b16 %v2076, %v2060
    %v2109 = vpack.c.b16 %v2077, %v2061
    %v2110 = vpack.c.b16 %v2078, %v2062
    %v2111 = vpack.c.b16 %v2079, %v2063
    %v2112 = vpack.c.b16 %v2080, %v2064
    %v2113 = vpack.c.b16 %v2081, %v2065
    %v2114 = vpack.c.b16 %v2082, %v2066
    %v2115 = vpack.c.b16 %v2083, %v2067
    %v2116 = vpack.c.b16 %v2084, %v2068
    %v2117 = vpack.c.b16 %v2085, %v2069
    %v2118 = vpack.c.b16 %v2086, %v2070
    %v2119 = vpack.c.b16 %v2087, %v2071
    %v2120 = vpack.c.b16 %v2088, %v2072
    %v2121 = vpack.c.b16 %v2089, %v2073
    %v2155 = vsel %vm169, %v1922, 0
    %2157 = vmatpush.bf16.msra.mxu0 0
    %2158 = vmatpush.bf16.msra.mxu0 0
    %2159 = vmatpush.bf16.msra.mxu0 0
    %2160 = vmatpush.bf16.msra.mxu0 0
    %2161 = vmatpush.bf16.msra.mxu0 0
    %2162 = vmatpush.bf16.msra.mxu0 0
    %2163 = vmatpush.bf16.msra.mxu0 %v2106
    %2164 = vmatpush.bf16.msra.mxu0 %v2090
    %2165 = vmatmul.bf16.gmra.mxu0 %v2155
    %v2166 = vpop.f32.mrf.mxu0
    %v2167 = vadd.f32 %v1962, %v2166
    %v2168 = vpop.f32.mrf.mxu0
    %2169 = vdwg.mxu0
    %2170 = vmatpush.bf16.msra.mxu0 0
    %2171 = vmatpush.bf16.msra.mxu0 0
    %2172 = vmatpush.bf16.msra.mxu0 0
    %2173 = vmatpush.bf16.msra.mxu0 0
    %2174 = vmatpush.bf16.msra.mxu0 0
    %2175 = vmatpush.bf16.msra.mxu0 0
    %2176 = vmatpush.bf16.msra.mxu0 %v2107
    %2177 = vmatpush.bf16.msra.mxu0 %v2091
    %2178 = vmatmul.bf16.gmra.mxu0 %v2155
    %v2179 = vpop.f32.mrf.mxu0
    %v2180 = vadd.f32 %v1963, %v2179
    %v2181 = vpop.f32.mrf.mxu0
    %2182 = vdwg.mxu0
    %2183 = vmatpush.bf16.msra.mxu0 0
    %2184 = vmatpush.bf16.msra.mxu0 0
    %2185 = vmatpush.bf16.msra.mxu0 0
    %2186 = vmatpush.bf16.msra.mxu0 0
    %2187 = vmatpush.bf16.msra.mxu0 0
    %2188 = vmatpush.bf16.msra.mxu0 0
    %2189 = vmatpush.bf16.msra.mxu0 %v2108
    %2190 = vmatpush.bf16.msra.mxu0 %v2092
    %2191 = vmatmul.bf16.gmra.mxu0 %v2155
    %v2192 = vpop.f32.mrf.mxu0
    %v2193 = vadd.f32 %v1964, %v2192
    %v2194 = vpop.f32.mrf.mxu0
    %2195 = vdwg.mxu0
    %2196 = vmatpush.bf16.msra.mxu0 0
    %2197 = vmatpush.bf16.msra.mxu0 0
    %2198 = vmatpush.bf16.msra.mxu0 0
    %2199 = vmatpush.bf16.msra.mxu0 0
    %2200 = vmatpush.bf16.msra.mxu0 0
    %2201 = vmatpush.bf16.msra.mxu0 0
    %2202 = vmatpush.bf16.msra.mxu0 %v2109
    %2203 = vmatpush.bf16.msra.mxu0 %v2093
    %2204 = vmatmul.bf16.gmra.mxu0 %v2155
    %v2205 = vpop.f32.mrf.mxu0
    %v2206 = vadd.f32 %v1965, %v2205
    %v2207 = vpop.f32.mrf.mxu0
    %2208 = vdwg.mxu0
    %2209 = vmatpush.bf16.msra.mxu0 0
    %2210 = vmatpush.bf16.msra.mxu0 0
    %2211 = vmatpush.bf16.msra.mxu0 0
    %2212 = vmatpush.bf16.msra.mxu0 0
    %2213 = vmatpush.bf16.msra.mxu0 0
    %2214 = vmatpush.bf16.msra.mxu0 0
    %2215 = vmatpush.bf16.msra.mxu0 %v2110
    %2216 = vmatpush.bf16.msra.mxu0 %v2094
    %2217 = vmatmul.bf16.gmra.mxu0 %v2155
    %v2218 = vpop.f32.mrf.mxu0
    %v2219 = vadd.f32 %v1966, %v2218
    %v2220 = vpop.f32.mrf.mxu0
    %2221 = vdwg.mxu0
    %2222 = vmatpush.bf16.msra.mxu0 0
    %2223 = vmatpush.bf16.msra.mxu0 0
    %2224 = vmatpush.bf16.msra.mxu0 0
    %2225 = vmatpush.bf16.msra.mxu0 0
    %2226 = vmatpush.bf16.msra.mxu0 0
    %2227 = vmatpush.bf16.msra.mxu0 0
    %2228 = vmatpush.bf16.msra.mxu0 %v2111
    %2229 = vmatpush.bf16.msra.mxu0 %v2095
    %2230 = vmatmul.bf16.gmra.mxu0 %v2155
    %v2231 = vpop.f32.mrf.mxu0
    %v2232 = vadd.f32 %v1967, %v2231
    %v2233 = vpop.f32.mrf.mxu0
    %2234 = vdwg.mxu0
    %2235 = vmatpush.bf16.msra.mxu0 0
    %2236 = vmatpush.bf16.msra.mxu0 0
    %2237 = vmatpush.bf16.msra.mxu0 0
    %2238 = vmatpush.bf16.msra.mxu0 0
    %2239 = vmatpush.bf16.msra.mxu0 0
    %2240 = vmatpush.bf16.msra.mxu0 0
    %2241 = vmatpush.bf16.msra.mxu0 %v2112
    %2242 = vmatpush.bf16.msra.mxu0 %v2096
    %2243 = vmatmul.bf16.gmra.mxu0 %v2155
    %v2244 = vpop.f32.mrf.mxu0
    %v2245 = vadd.f32 %v1968, %v2244
    %v2246 = vpop.f32.mrf.mxu0
    %2247 = vdwg.mxu0
    %2248 = vmatpush.bf16.msra.mxu0 0
    %2249 = vmatpush.bf16.msra.mxu0 0
    %2250 = vmatpush.bf16.msra.mxu0 0
    %2251 = vmatpush.bf16.msra.mxu0 0
    %2252 = vmatpush.bf16.msra.mxu0 0
    %2253 = vmatpush.bf16.msra.mxu0 0
    %2254 = vmatpush.bf16.msra.mxu0 %v2113
    %2255 = vmatpush.bf16.msra.mxu0 %v2097
    %2256 = vmatmul.bf16.gmra.mxu0 %v2155
    %v2257 = vpop.f32.mrf.mxu0
    %v2258 = vadd.f32 %v1969, %v2257
    %v2259 = vpop.f32.mrf.mxu0
    %2260 = vdwg.mxu0
    %2261 = vmatpush.bf16.msra.mxu0 0
    %2262 = vmatpush.bf16.msra.mxu0 0
    %2263 = vmatpush.bf16.msra.mxu0 0
    %2264 = vmatpush.bf16.msra.mxu0 0
    %2265 = vmatpush.bf16.msra.mxu0 0
    %2266 = vmatpush.bf16.msra.mxu0 0
    %2267 = vmatpush.bf16.msra.mxu0 %v2114
    %2268 = vmatpush.bf16.msra.mxu0 %v2098
    %2269 = vmatmul.bf16.gmra.mxu0 %v2155
    %v2270 = vpop.f32.mrf.mxu0
    %v2271 = vadd.f32 %v1970, %v2270
    %v2272 = vpop.f32.mrf.mxu0
    %2273 = vdwg.mxu0
    %2274 = vmatpush.bf16.msra.mxu0 0
    %2275 = vmatpush.bf16.msra.mxu0 0
    %2276 = vmatpush.bf16.msra.mxu0 0
    %2277 = vmatpush.bf16.msra.mxu0 0
    %2278 = vmatpush.bf16.msra.mxu0 0
    %2279 = vmatpush.bf16.msra.mxu0 0
    %2280 = vmatpush.bf16.msra.mxu0 %v2115
    %2281 = vmatpush.bf16.msra.mxu0 %v2099
    %2282 = vmatmul.bf16.gmra.mxu0 %v2155
    %v2283 = vpop.f32.mrf.mxu0
    %v2284 = vadd.f32 %v1971, %v2283
    %v2285 = vpop.f32.mrf.mxu0
    %2286 = vdwg.mxu0
    %2287 = vmatpush.bf16.msra.mxu0 0
    %2288 = vmatpush.bf16.msra.mxu0 0
    %2289 = vmatpush.bf16.msra.mxu0 0
    %2290 = vmatpush.bf16.msra.mxu0 0
    %2291 = vmatpush.bf16.msra.mxu0 0
    %2292 = vmatpush.bf16.msra.mxu0 0
    %2293 = vmatpush.bf16.msra.mxu0 %v2116
    %2294 = vmatpush.bf16.msra.mxu0 %v2100
    %2295 = vmatmul.bf16.gmra.mxu0 %v2155
    %v2296 = vpop.f32.mrf.mxu0
    %v2297 = vadd.f32 %v1972, %v2296
    %v2298 = vpop.f32.mrf.mxu0
    %2299 = vdwg.mxu0
    %2300 = vmatpush.bf16.msra.mxu0 0
    %2301 = vmatpush.bf16.msra.mxu0 0
    %2302 = vmatpush.bf16.msra.mxu0 0
    %2303 = vmatpush.bf16.msra.mxu0 0
    %2304 = vmatpush.bf16.msra.mxu0 0
    %2305 = vmatpush.bf16.msra.mxu0 0
    %2306 = vmatpush.bf16.msra.mxu0 %v2117
    %2307 = vmatpush.bf16.msra.mxu0 %v2101
    %2308 = vmatmul.bf16.gmra.mxu0 %v2155
    %v2309 = vpop.f32.mrf.mxu0
    %v2310 = vadd.f32 %v1973, %v2309
    %v2311 = vpop.f32.mrf.mxu0
    %2312 = vdwg.mxu0
    %2313 = vmatpush.bf16.msra.mxu0 0
    %2314 = vmatpush.bf16.msra.mxu0 0
    %2315 = vmatpush.bf16.msra.mxu0 0
    %2316 = vmatpush.bf16.msra.mxu0 0
    %2317 = vmatpush.bf16.msra.mxu0 0
    %2318 = vmatpush.bf16.msra.mxu0 0
    %2319 = vmatpush.bf16.msra.mxu0 %v2118
    %2320 = vmatpush.bf16.msra.mxu0 %v2102
    %2321 = vmatmul.bf16.gmra.mxu0 %v2155
    %v2322 = vpop.f32.mrf.mxu0
    %v2323 = vadd.f32 %v1974, %v2322
    %v2324 = vpop.f32.mrf.mxu0
    %2325 = vdwg.mxu0
    %2326 = vmatpush.bf16.msra.mxu0 0
    %2327 = vmatpush.bf16.msra.mxu0 0
    %2328 = vmatpush.bf16.msra.mxu0 0
    %2329 = vmatpush.bf16.msra.mxu0 0
    %2330 = vmatpush.bf16.msra.mxu0 0
    %2331 = vmatpush.bf16.msra.mxu0 0
    %2332 = vmatpush.bf16.msra.mxu0 %v2119
    %2333 = vmatpush.bf16.msra.mxu0 %v2103
    %2334 = vmatmul.bf16.gmra.mxu0 %v2155
    %v2335 = vpop.f32.mrf.mxu0
    %v2336 = vadd.f32 %v1975, %v2335
    %v2337 = vpop.f32.mrf.mxu0
    %2338 = vdwg.mxu0
    %2339 = vmatpush.bf16.msra.mxu0 0
    %2340 = vmatpush.bf16.msra.mxu0 0
    %2341 = vmatpush.bf16.msra.mxu0 0
    %2342 = vmatpush.bf16.msra.mxu0 0
    %2343 = vmatpush.bf16.msra.mxu0 0
    %2344 = vmatpush.bf16.msra.mxu0 0
    %2345 = vmatpush.bf16.msra.mxu0 %v2120
    %2346 = vmatpush.bf16.msra.mxu0 %v2104
    %2347 = vmatmul.bf16.gmra.mxu0 %v2155
    %v2348 = vpop.f32.mrf.mxu0
    %v2349 = vadd.f32 %v1976, %v2348
    %v2350 = vpop.f32.mrf.mxu0
    %2351 = vdwg.mxu0
    %2352 = vmatpush.bf16.msra.mxu0 0
    %2353 = vmatpush.bf16.msra.mxu0 0
    %2354 = vmatpush.bf16.msra.mxu0 0
    %2355 = vmatpush.bf16.msra.mxu0 0
    %2356 = vmatpush.bf16.msra.mxu0 0
    %2357 = vmatpush.bf16.msra.mxu0 0
    %2358 = vmatpush.bf16.msra.mxu0 %v2121
    %2359 = vmatpush.bf16.msra.mxu0 %v2105
    %2360 = vmatmul.bf16.gmra.mxu0 %v2155
    %v2361 = vpop.f32.mrf.mxu0
    %v2362 = vadd.f32 %v1977, %v2361
    %v2363 = vpop.f32.mrf.mxu0
    %2364 = vdwg.mxu0
    %v2365 = vmul.f32 %v2167, 0.5
    %v2366 = vmul.f32 %v2180, 0.5
    %v2367 = vmul.f32 %v2193, 0.5
    %v2368 = vmul.f32 %v2206, 0.5
    %v2369 = vmul.f32 %v2219, 0.5
    %v2370 = vmul.f32 %v2232, 0.5
    %v2371 = vmul.f32 %v2245, 0.5
    %v2372 = vmul.f32 %v2258, 0.5
    %v2373 = vmul.f32 %v2271, 0.5
    %v2374 = vmul.f32 %v2284, 0.5
    %v2375 = vmul.f32 %v2297, 0.5
    %v2376 = vmul.f32 %v2310, 0.5
    %v2377 = vmul.f32 %v2323, 0.5
    %v2378 = vmul.f32 %v2336, 0.5
    %v2379 = vmul.f32 %v2349, 0.5
    %v2380 = vmul.f32 %v2362, 0.5
    %v2381 = vmul.f32 %v2167, 0.70710677
    %v2382 = vmul.f32 %v2180, 0.70710677
    %v2383 = vmul.f32 %v2193, 0.70710677
    %v2384 = vmul.f32 %v2206, 0.70710677
    %v2385 = vmul.f32 %v2219, 0.70710677
    %v2386 = vmul.f32 %v2232, 0.70710677
    %v2387 = vmul.f32 %v2245, 0.70710677
    %v2388 = vmul.f32 %v2258, 0.70710677
    %v2389 = vmul.f32 %v2271, 0.70710677
    %v2390 = vmul.f32 %v2284, 0.70710677
    %v2391 = vmul.f32 %v2297, 0.70710677
    %v2392 = vmul.f32 %v2310, 0.70710677
    %v2393 = vmul.f32 %v2323, 0.70710677
    %v2394 = vmul.f32 %v2336, 0.70710677
    %v2395 = vmul.f32 %v2349, 0.70710677
    %v2396 = vmul.f32 %v2362, 0.70710677
    %v2397 = vmul.f32 %v2381, %v2381
    %v2398 = vmin.f32 16.0, %v2397
    %v2399 = vmul.f32 %v2398, 2.1237322e-06
    %v2400 = vadd.f32 %v2399, 0.00028619796
    %v2401 = vmul.f32 %v2398, %v2400
    %v2402 = vadd.f32 %v2401, 0.0036580483
    %v2403 = vmul.f32 %v2398, %v2402
    %v2404 = vadd.f32 %v2403, 0.05243302
    %v2405 = vmul.f32 %v2398, %v2404
    %v2406 = vadd.f32 %v2405, 0.18741608
    %v2407 = vmul.f32 %v2398, %v2406
    %v2408 = vadd.f32 %v2407, 1.1283791
    %v2409 = vmul.f32 %v2381, %v2408
    %v2410 = vmul.f32 %v2398, 3.8918573e-05
    %v2411 = vadd.f32 %v2410, 0.001143296
    %v2412 = vmul.f32 %v2398, %v2411
    %v2413 = vadd.f32 %v2412, 0.014752088
    %v2414 = vmul.f32 %v2398, %v2413
    %v2415 = vadd.f32 %v2414, 0.112945676
    %v2416 = vmul.f32 %v2398, %v2415
    %v2417 = vadd.f32 %v2416, 0.4994258
    %v2418 = vmul.f32 %v2398, %v2417
    %v2419 = vadd.f32 %v2418, 1.0
    %v2420 = vrcp.pop %v2419
    %v2421 = vmul.f32 %v2419, %v2420
    %v2422 = vsub.f32 1.0, %v2421
    %v2423 = vmul.f32 %v2420, %v2422
    %v2424 = vadd.f32 %v2420, %v2423
    %vm2425 = vweird.f32 %v2419
    %vm2426 = vweird.f32 %v2420
    %vm2427 = vmor %vm2425, %vm2426
    %v2428 = vsel %vm2427, %v2420, %v2424
    %v2429 = vand.u32 2147483647, %v2419
    %vm2430 = vcmp.eq.f32.partialorder %v2429, 8.507059e+37
    %v2431 = vand.u32 %v2419, 2147483648
    %v2432 = vor.u32 1.1754944e-38, %v2431
    %v2433 = vsel %vm2430, %v2432, %v2428
    %v2434 = vmul.f32 %v2409, %v2433
    %v2435 = vmin.f32 %v2434, 1.0
    %v2436 = vmax.f32 %v2435, -1.0
    %v2437 = vmul.f32 %v2382, %v2382
    %v2438 = vmin.f32 16.0, %v2437
    %v2439 = vmul.f32 %v2438, 2.1237322e-06
    %v2440 = vadd.f32 %v2439, 0.00028619796
    %v2441 = vmul.f32 %v2438, %v2440
    %v2442 = vadd.f32 %v2441, 0.0036580483
    %v2443 = vmul.f32 %v2438, %v2442
    %v2444 = vadd.f32 %v2443, 0.05243302
    %v2445 = vmul.f32 %v2438, %v2444
    %v2446 = vadd.f32 %v2445, 0.18741608
    %v2447 = vmul.f32 %v2438, %v2446
    %v2448 = vadd.f32 %v2447, 1.1283791
    %v2449 = vmul.f32 %v2382, %v2448
    %v2450 = vmul.f32 %v2438, 3.8918573e-05
    %v2451 = vadd.f32 %v2450, 0.001143296
    %v2452 = vmul.f32 %v2438, %v2451
    %v2453 = vadd.f32 %v2452, 0.014752088
    %v2454 = vmul.f32 %v2438, %v2453
    %v2455 = vadd.f32 %v2454, 0.112945676
    %v2456 = vmul.f32 %v2438, %v2455
    %v2457 = vadd.f32 %v2456, 0.4994258
    %v2458 = vmul.f32 %v2438, %v2457
    %v2459 = vadd.f32 %v2458, 1.0
    %v2460 = vrcp.pop %v2459
    %v2461 = vmul.f32 %v2459, %v2460
    %v2462 = vsub.f32 1.0, %v2461
    %v2463 = vmul.f32 %v2460, %v2462
    %v2464 = vadd.f32 %v2460, %v2463
    %vm2465 = vweird.f32 %v2459
    %vm2466 = vweird.f32 %v2460
    %vm2467 = vmor %vm2465, %vm2466
    %v2468 = vsel %vm2467, %v2460, %v2464
    %v2469 = vand.u32 2147483647, %v2459
    %vm2470 = vcmp.eq.f32.partialorder %v2469, 8.507059e+37
    %v2471 = vand.u32 %v2459, 2147483648
    %v2472 = vor.u32 1.1754944e-38, %v2471
    %v2473 = vsel %vm2470, %v2472, %v2468
    %v2474 = vmul.f32 %v2449, %v2473
    %v2475 = vmin.f32 %v2474, 1.0
    %v2476 = vmax.f32 %v2475, -1.0
    %v2477 = vmul.f32 %v2383, %v2383
    %v2478 = vmin.f32 16.0, %v2477
    %v2479 = vmul.f32 %v2478, 2.1237322e-06
    %v2480 = vadd.f32 %v2479, 0.00028619796
    %v2481 = vmul.f32 %v2478, %v2480
    %v2482 = vadd.f32 %v2481, 0.0036580483
    %v2483 = vmul.f32 %v2478, %v2482
    %v2484 = vadd.f32 %v2483, 0.05243302
    %v2485 = vmul.f32 %v2478, %v2484
    %v2486 = vadd.f32 %v2485, 0.18741608
    %v2487 = vmul.f32 %v2478, %v2486
    %v2488 = vadd.f32 %v2487, 1.1283791
    %v2489 = vmul.f32 %v2383, %v2488
    %v2490 = vmul.f32 %v2478, 3.8918573e-05
    %v2491 = vadd.f32 %v2490, 0.001143296
    %v2492 = vmul.f32 %v2478, %v2491
    %v2493 = vadd.f32 %v2492, 0.014752088
    %v2494 = vmul.f32 %v2478, %v2493
    %v2495 = vadd.f32 %v2494, 0.112945676
    %v2496 = vmul.f32 %v2478, %v2495
    %v2497 = vadd.f32 %v2496, 0.4994258
    %v2498 = vmul.f32 %v2478, %v2497
    %v2499 = vadd.f32 %v2498, 1.0
    %v2500 = vrcp.pop %v2499
    %v2501 = vmul.f32 %v2499, %v2500
    %v2502 = vsub.f32 1.0, %v2501
    %v2503 = vmul.f32 %v2500, %v2502
    %v2504 = vadd.f32 %v2500, %v2503
    %vm2505 = vweird.f32 %v2499
    %vm2506 = vweird.f32 %v2500
    %vm2507 = vmor %vm2505, %vm2506
    %v2508 = vsel %vm2507, %v2500, %v2504
    %v2509 = vand.u32 2147483647, %v2499
    %vm2510 = vcmp.eq.f32.partialorder %v2509, 8.507059e+37
    %v2511 = vand.u32 %v2499, 2147483648
    %v2512 = vor.u32 1.1754944e-38, %v2511
    %v2513 = vsel %vm2510, %v2512, %v2508
    %v2514 = vmul.f32 %v2489, %v2513
    %v2515 = vmin.f32 %v2514, 1.0
    %v2516 = vmax.f32 %v2515, -1.0
    %v2517 = vmul.f32 %v2384, %v2384
    %v2518 = vmin.f32 16.0, %v2517
    %v2519 = vmul.f32 %v2518, 2.1237322e-06
    %v2520 = vadd.f32 %v2519, 0.00028619796
    %v2521 = vmul.f32 %v2518, %v2520
    %v2522 = vadd.f32 %v2521, 0.0036580483
    %v2523 = vmul.f32 %v2518, %v2522
    %v2524 = vadd.f32 %v2523, 0.05243302
    %v2525 = vmul.f32 %v2518, %v2524
    %v2526 = vadd.f32 %v2525, 0.18741608
    %v2527 = vmul.f32 %v2518, %v2526
    %v2528 = vadd.f32 %v2527, 1.1283791
    %v2529 = vmul.f32 %v2384, %v2528
    %v2530 = vmul.f32 %v2518, 3.8918573e-05
    %v2531 = vadd.f32 %v2530, 0.001143296
    %v2532 = vmul.f32 %v2518, %v2531
    %v2533 = vadd.f32 %v2532, 0.014752088
    %v2534 = vmul.f32 %v2518, %v2533
    %v2535 = vadd.f32 %v2534, 0.112945676
    %v2536 = vmul.f32 %v2518, %v2535
    %v2537 = vadd.f32 %v2536, 0.4994258
    %v2538 = vmul.f32 %v2518, %v2537
    %v2539 = vadd.f32 %v2538, 1.0
    %v2540 = vrcp.pop %v2539
    %v2541 = vmul.f32 %v2539, %v2540
    %v2542 = vsub.f32 1.0, %v2541
    %v2543 = vmul.f32 %v2540, %v2542
    %v2544 = vadd.f32 %v2540, %v2543
    %vm2545 = vweird.f32 %v2539
    %vm2546 = vweird.f32 %v2540
    %vm2547 = vmor %vm2545, %vm2546
    %v2548 = vsel %vm2547, %v2540, %v2544
    %v2549 = vand.u32 2147483647, %v2539
    %vm2550 = vcmp.eq.f32.partialorder %v2549, 8.507059e+37
    %v2551 = vand.u32 %v2539, 2147483648
    %v2552 = vor.u32 1.1754944e-38, %v2551
    %v2553 = vsel %vm2550, %v2552, %v2548
    %v2554 = vmul.f32 %v2529, %v2553
    %v2555 = vmin.f32 %v2554, 1.0
    %v2556 = vmax.f32 %v2555, -1.0
    %v2557 = vmul.f32 %v2385, %v2385
    %v2558 = vmin.f32 16.0, %v2557
    %v2559 = vmul.f32 %v2558, 2.1237322e-06
    %v2560 = vadd.f32 %v2559, 0.00028619796
    %v2561 = vmul.f32 %v2558, %v2560
    %v2562 = vadd.f32 %v2561, 0.0036580483
    %v2563 = vmul.f32 %v2558, %v2562
    %v2564 = vadd.f32 %v2563, 0.05243302
    %v2565 = vmul.f32 %v2558, %v2564
    %v2566 = vadd.f32 %v2565, 0.18741608
    %v2567 = vmul.f32 %v2558, %v2566
    %v2568 = vadd.f32 %v2567, 1.1283791
    %v2569 = vmul.f32 %v2385, %v2568
    %v2570 = vmul.f32 %v2558, 3.8918573e-05
    %v2571 = vadd.f32 %v2570, 0.001143296
    %v2572 = vmul.f32 %v2558, %v2571
    %v2573 = vadd.f32 %v2572, 0.014752088
    %v2574 = vmul.f32 %v2558, %v2573
    %v2575 = vadd.f32 %v2574, 0.112945676
    %v2576 = vmul.f32 %v2558, %v2575
    %v2577 = vadd.f32 %v2576, 0.4994258
    %v2578 = vmul.f32 %v2558, %v2577
    %v2579 = vadd.f32 %v2578, 1.0
    %v2580 = vrcp.pop %v2579
    %v2581 = vmul.f32 %v2579, %v2580
    %v2582 = vsub.f32 1.0, %v2581
    %v2583 = vmul.f32 %v2580, %v2582
    %v2584 = vadd.f32 %v2580, %v2583
    %vm2585 = vweird.f32 %v2579
    %vm2586 = vweird.f32 %v2580
    %vm2587 = vmor %vm2585, %vm2586
    %v2588 = vsel %vm2587, %v2580, %v2584
    %v2589 = vand.u32 2147483647, %v2579
    %vm2590 = vcmp.eq.f32.partialorder %v2589, 8.507059e+37
    %v2591 = vand.u32 %v2579, 2147483648
    %v2592 = vor.u32 1.1754944e-38, %v2591
    %v2593 = vsel %vm2590, %v2592, %v2588
    %v2594 = vmul.f32 %v2569, %v2593
    %v2595 = vmin.f32 %v2594, 1.0
    %v2596 = vmax.f32 %v2595, -1.0
    %v2597 = vmul.f32 %v2386, %v2386
    %v2598 = vmin.f32 16.0, %v2597
    %v2599 = vmul.f32 %v2598, 2.1237322e-06
    %v2600 = vadd.f32 %v2599, 0.00028619796
    %v2601 = vmul.f32 %v2598, %v2600
    %v2602 = vadd.f32 %v2601, 0.0036580483
    %v2603 = vmul.f32 %v2598, %v2602
    %v2604 = vadd.f32 %v2603, 0.05243302
    %v2605 = vmul.f32 %v2598, %v2604
    %v2606 = vadd.f32 %v2605, 0.18741608
    %v2607 = vmul.f32 %v2598, %v2606
    %v2608 = vadd.f32 %v2607, 1.1283791
    %v2609 = vmul.f32 %v2386, %v2608
    %v2610 = vmul.f32 %v2598, 3.8918573e-05
    %v2611 = vadd.f32 %v2610, 0.001143296
    %v2612 = vmul.f32 %v2598, %v2611
    %v2613 = vadd.f32 %v2612, 0.014752088
    %v2614 = vmul.f32 %v2598, %v2613
    %v2615 = vadd.f32 %v2614, 0.112945676
    %v2616 = vmul.f32 %v2598, %v2615
    %v2617 = vadd.f32 %v2616, 0.4994258
    %v2618 = vmul.f32 %v2598, %v2617
    %v2619 = vadd.f32 %v2618, 1.0
    %v2620 = vrcp.pop %v2619
    %v2621 = vmul.f32 %v2619, %v2620
    %v2622 = vsub.f32 1.0, %v2621
    %v2623 = vmul.f32 %v2620, %v2622
    %v2624 = vadd.f32 %v2620, %v2623
    %vm2625 = vweird.f32 %v2619
    %vm2626 = vweird.f32 %v2620
    %vm2627 = vmor %vm2625, %vm2626
    %v2628 = vsel %vm2627, %v2620, %v2624
    %v2629 = vand.u32 2147483647, %v2619
    %vm2630 = vcmp.eq.f32.partialorder %v2629, 8.507059e+37
    %v2631 = vand.u32 %v2619, 2147483648
    %v2632 = vor.u32 1.1754944e-38, %v2631
    %v2633 = vsel %vm2630, %v2632, %v2628
    %v2634 = vmul.f32 %v2609, %v2633
    %v2635 = vmin.f32 %v2634, 1.0
    %v2636 = vmax.f32 %v2635, -1.0
    %v2637 = vmul.f32 %v2387, %v2387
    %v2638 = vmin.f32 16.0, %v2637
    %v2639 = vmul.f32 %v2638, 2.1237322e-06
    %v2640 = vadd.f32 %v2639, 0.00028619796
    %v2641 = vmul.f32 %v2638, %v2640
    %v2642 = vadd.f32 %v2641, 0.0036580483
    %v2643 = vmul.f32 %v2638, %v2642
    %v2644 = vadd.f32 %v2643, 0.05243302
    %v2645 = vmul.f32 %v2638, %v2644
    %v2646 = vadd.f32 %v2645, 0.18741608
    %v2647 = vmul.f32 %v2638, %v2646
    %v2648 = vadd.f32 %v2647, 1.1283791
    %v2649 = vmul.f32 %v2387, %v2648
    %v2650 = vmul.f32 %v2638, 3.8918573e-05
    %v2651 = vadd.f32 %v2650, 0.001143296
    %v2652 = vmul.f32 %v2638, %v2651
    %v2653 = vadd.f32 %v2652, 0.014752088
    %v2654 = vmul.f32 %v2638, %v2653
    %v2655 = vadd.f32 %v2654, 0.112945676
    %v2656 = vmul.f32 %v2638, %v2655
    %v2657 = vadd.f32 %v2656, 0.4994258
    %v2658 = vmul.f32 %v2638, %v2657
    %v2659 = vadd.f32 %v2658, 1.0
    %v2660 = vrcp.pop %v2659
    %v2661 = vmul.f32 %v2659, %v2660
    %v2662 = vsub.f32 1.0, %v2661
    %v2663 = vmul.f32 %v2660, %v2662
    %v2664 = vadd.f32 %v2660, %v2663
    %vm2665 = vweird.f32 %v2659
    %vm2666 = vweird.f32 %v2660
    %vm2667 = vmor %vm2665, %vm2666
    %v2668 = vsel %vm2667, %v2660, %v2664
    %v2669 = vand.u32 2147483647, %v2659
    %vm2670 = vcmp.eq.f32.partialorder %v2669, 8.507059e+37
    %v2671 = vand.u32 %v2659, 2147483648
    %v2672 = vor.u32 1.1754944e-38, %v2671
    %v2673 = vsel %vm2670, %v2672, %v2668
    %v2674 = vmul.f32 %v2649, %v2673
    %v2675 = vmin.f32 %v2674, 1.0
    %v2676 = vmax.f32 %v2675, -1.0
    %v2677 = vmul.f32 %v2388, %v2388
    %v2678 = vmin.f32 16.0, %v2677
    %v2679 = vmul.f32 %v2678, 2.1237322e-06
    %v2680 = vadd.f32 %v2679, 0.00028619796
    %v2681 = vmul.f32 %v2678, %v2680
    %v2682 = vadd.f32 %v2681, 0.0036580483
    %v2683 = vmul.f32 %v2678, %v2682
    %v2684 = vadd.f32 %v2683, 0.05243302
    %v2685 = vmul.f32 %v2678, %v2684
    %v2686 = vadd.f32 %v2685, 0.18741608
    %v2687 = vmul.f32 %v2678, %v2686
    %v2688 = vadd.f32 %v2687, 1.1283791
    %v2689 = vmul.f32 %v2388, %v2688
    %v2690 = vmul.f32 %v2678, 3.8918573e-05
    %v2691 = vadd.f32 %v2690, 0.001143296
    %v2692 = vmul.f32 %v2678, %v2691
    %v2693 = vadd.f32 %v2692, 0.014752088
    %v2694 = vmul.f32 %v2678, %v2693
    %v2695 = vadd.f32 %v2694, 0.112945676
    %v2696 = vmul.f32 %v2678, %v2695
    %v2697 = vadd.f32 %v2696, 0.4994258
    %v2698 = vmul.f32 %v2678, %v2697
    %v2699 = vadd.f32 %v2698, 1.0
    %v2700 = vrcp.pop %v2699
    %v2701 = vmul.f32 %v2699, %v2700
    %v2702 = vsub.f32 1.0, %v2701
    %v2703 = vmul.f32 %v2700, %v2702
    %v2704 = vadd.f32 %v2700, %v2703
    %vm2705 = vweird.f32 %v2699
    %vm2706 = vweird.f32 %v2700
    %vm2707 = vmor %vm2705, %vm2706
    %v2708 = vsel %vm2707, %v2700, %v2704
    %v2709 = vand.u32 2147483647, %v2699
    %vm2710 = vcmp.eq.f32.partialorder %v2709, 8.507059e+37
    %v2711 = vand.u32 %v2699, 2147483648
    %v2712 = vor.u32 1.1754944e-38, %v2711
    %v2713 = vsel %vm2710, %v2712, %v2708
    %v2714 = vmul.f32 %v2689, %v2713
    %v2715 = vmin.f32 %v2714, 1.0
    %v2716 = vmax.f32 %v2715, -1.0
    %v2717 = vmul.f32 %v2389, %v2389
    %v2718 = vmin.f32 16.0, %v2717
    %v2719 = vmul.f32 %v2718, 2.1237322e-06
    %v2720 = vadd.f32 %v2719, 0.00028619796
    %v2721 = vmul.f32 %v2718, %v2720
    %v2722 = vadd.f32 %v2721, 0.0036580483
    %v2723 = vmul.f32 %v2718, %v2722
    %v2724 = vadd.f32 %v2723, 0.05243302
    %v2725 = vmul.f32 %v2718, %v2724
    %v2726 = vadd.f32 %v2725, 0.18741608
    %v2727 = vmul.f32 %v2718, %v2726
    %v2728 = vadd.f32 %v2727, 1.1283791
    %v2729 = vmul.f32 %v2389, %v2728
    %v2730 = vmul.f32 %v2718, 3.8918573e-05
    %v2731 = vadd.f32 %v2730, 0.001143296
    %v2732 = vmul.f32 %v2718, %v2731
    %v2733 = vadd.f32 %v2732, 0.014752088
    %v2734 = vmul.f32 %v2718, %v2733
    %v2735 = vadd.f32 %v2734, 0.112945676
    %v2736 = vmul.f32 %v2718, %v2735
    %v2737 = vadd.f32 %v2736, 0.4994258
    %v2738 = vmul.f32 %v2718, %v2737
    %v2739 = vadd.f32 %v2738, 1.0
    %v2740 = vrcp.pop %v2739
    %v2741 = vmul.f32 %v2739, %v2740
    %v2742 = vsub.f32 1.0, %v2741
    %v2743 = vmul.f32 %v2740, %v2742
    %v2744 = vadd.f32 %v2740, %v2743
    %vm2745 = vweird.f32 %v2739
    %vm2746 = vweird.f32 %v2740
    %vm2747 = vmor %vm2745, %vm2746
    %v2748 = vsel %vm2747, %v2740, %v2744
    %v2749 = vand.u32 2147483647, %v2739
    %vm2750 = vcmp.eq.f32.partialorder %v2749, 8.507059e+37
    %v2751 = vand.u32 %v2739, 2147483648
    %v2752 = vor.u32 1.1754944e-38, %v2751
    %v2753 = vsel %vm2750, %v2752, %v2748
    %v2754 = vmul.f32 %v2729, %v2753
    %v2755 = vmin.f32 %v2754, 1.0
    %v2756 = vmax.f32 %v2755, -1.0
    %v2757 = vmul.f32 %v2390, %v2390
    %v2758 = vmin.f32 16.0, %v2757
    %v2759 = vmul.f32 %v2758, 2.1237322e-06
    %v2760 = vadd.f32 %v2759, 0.00028619796
    %v2761 = vmul.f32 %v2758, %v2760
    %v2762 = vadd.f32 %v2761, 0.0036580483
    %v2763 = vmul.f32 %v2758, %v2762
    %v2764 = vadd.f32 %v2763, 0.05243302
    %v2765 = vmul.f32 %v2758, %v2764
    %v2766 = vadd.f32 %v2765, 0.18741608
    %v2767 = vmul.f32 %v2758, %v2766
    %v2768 = vadd.f32 %v2767, 1.1283791
    %v2769 = vmul.f32 %v2390, %v2768
    %v2770 = vmul.f32 %v2758, 3.8918573e-05
    %v2771 = vadd.f32 %v2770, 0.001143296
    %v2772 = vmul.f32 %v2758, %v2771
    %v2773 = vadd.f32 %v2772, 0.014752088
    %v2774 = vmul.f32 %v2758, %v2773
    %v2775 = vadd.f32 %v2774, 0.112945676
    %v2776 = vmul.f32 %v2758, %v2775
    %v2777 = vadd.f32 %v2776, 0.4994258
    %v2778 = vmul.f32 %v2758, %v2777
    %v2779 = vadd.f32 %v2778, 1.0
    %v2780 = vrcp.pop %v2779
    %v2781 = vmul.f32 %v2779, %v2780
    %v2782 = vsub.f32 1.0, %v2781
    %v2783 = vmul.f32 %v2780, %v2782
    %v2784 = vadd.f32 %v2780, %v2783
    %vm2785 = vweird.f32 %v2779
    %vm2786 = vweird.f32 %v2780
    %vm2787 = vmor %vm2785, %vm2786
    %v2788 = vsel %vm2787, %v2780, %v2784
    %v2789 = vand.u32 2147483647, %v2779
    %vm2790 = vcmp.eq.f32.partialorder %v2789, 8.507059e+37
    %v2791 = vand.u32 %v2779, 2147483648
    %v2792 = vor.u32 1.1754944e-38, %v2791
    %v2793 = vsel %vm2790, %v2792, %v2788
    %v2794 = vmul.f32 %v2769, %v2793
    %v2795 = vmin.f32 %v2794, 1.0
    %v2796 = vmax.f32 %v2795, -1.0
    %v2797 = vmul.f32 %v2391, %v2391
    %v2798 = vmin.f32 16.0, %v2797
    %v2799 = vmul.f32 %v2798, 2.1237322e-06
    %v2800 = vadd.f32 %v2799, 0.00028619796
    %v2801 = vmul.f32 %v2798, %v2800
    %v2802 = vadd.f32 %v2801, 0.0036580483
    %v2803 = vmul.f32 %v2798, %v2802
    %v2804 = vadd.f32 %v2803, 0.05243302
    %v2805 = vmul.f32 %v2798, %v2804
    %v2806 = vadd.f32 %v2805, 0.18741608
    %v2807 = vmul.f32 %v2798, %v2806
    %v2808 = vadd.f32 %v2807, 1.1283791
    %v2809 = vmul.f32 %v2391, %v2808
    %v2810 = vmul.f32 %v2798, 3.8918573e-05
    %v2811 = vadd.f32 %v2810, 0.001143296
    %v2812 = vmul.f32 %v2798, %v2811
    %v2813 = vadd.f32 %v2812, 0.014752088
    %v2814 = vmul.f32 %v2798, %v2813
    %v2815 = vadd.f32 %v2814, 0.112945676
    %v2816 = vmul.f32 %v2798, %v2815
    %v2817 = vadd.f32 %v2816, 0.4994258
    %v2818 = vmul.f32 %v2798, %v2817
    %v2819 = vadd.f32 %v2818, 1.0
    %v2820 = vrcp.pop %v2819
    %v2821 = vmul.f32 %v2819, %v2820
    %v2822 = vsub.f32 1.0, %v2821
    %v2823 = vmul.f32 %v2820, %v2822
    %v2824 = vadd.f32 %v2820, %v2823
    %vm2825 = vweird.f32 %v2819
    %vm2826 = vweird.f32 %v2820
    %vm2827 = vmor %vm2825, %vm2826
    %v2828 = vsel %vm2827, %v2820, %v2824
    %v2829 = vand.u32 2147483647, %v2819
    %vm2830 = vcmp.eq.f32.partialorder %v2829, 8.507059e+37
    %v2831 = vand.u32 %v2819, 2147483648
    %v2832 = vor.u32 1.1754944e-38, %v2831
    %v2833 = vsel %vm2830, %v2832, %v2828
    %v2834 = vmul.f32 %v2809, %v2833
    %v2835 = vmin.f32 %v2834, 1.0
    %v2836 = vmax.f32 %v2835, -1.0
    %v2837 = vmul.f32 %v2392, %v2392
    %v2838 = vmin.f32 16.0, %v2837
    %v2839 = vmul.f32 %v2838, 2.1237322e-06
    %v2840 = vadd.f32 %v2839, 0.00028619796
    %v2841 = vmul.f32 %v2838, %v2840
    %v2842 = vadd.f32 %v2841, 0.0036580483
    %v2843 = vmul.f32 %v2838, %v2842
    %v2844 = vadd.f32 %v2843, 0.05243302
    %v2845 = vmul.f32 %v2838, %v2844
    %v2846 = vadd.f32 %v2845, 0.18741608
    %v2847 = vmul.f32 %v2838, %v2846
    %v2848 = vadd.f32 %v2847, 1.1283791
    %v2849 = vmul.f32 %v2392, %v2848
    %v2850 = vmul.f32 %v2838, 3.8918573e-05
    %v2851 = vadd.f32 %v2850, 0.001143296
    %v2852 = vmul.f32 %v2838, %v2851
    %v2853 = vadd.f32 %v2852, 0.014752088
    %v2854 = vmul.f32 %v2838, %v2853
    %v2855 = vadd.f32 %v2854, 0.112945676
    %v2856 = vmul.f32 %v2838, %v2855
    %v2857 = vadd.f32 %v2856, 0.4994258
    %v2858 = vmul.f32 %v2838, %v2857
    %v2859 = vadd.f32 %v2858, 1.0
    %v2860 = vrcp.pop %v2859
    %v2861 = vmul.f32 %v2859, %v2860
    %v2862 = vsub.f32 1.0, %v2861
    %v2863 = vmul.f32 %v2860, %v2862
    %v2864 = vadd.f32 %v2860, %v2863
    %vm2865 = vweird.f32 %v2859
    %vm2866 = vweird.f32 %v2860
    %vm2867 = vmor %vm2865, %vm2866
    %v2868 = vsel %vm2867, %v2860, %v2864
    %v2869 = vand.u32 2147483647, %v2859
    %vm2870 = vcmp.eq.f32.partialorder %v2869, 8.507059e+37
    %v2871 = vand.u32 %v2859, 2147483648
    %v2872 = vor.u32 1.1754944e-38, %v2871
    %v2873 = vsel %vm2870, %v2872, %v2868
    %v2874 = vmul.f32 %v2849, %v2873
    %v2875 = vmin.f32 %v2874, 1.0
    %v2876 = vmax.f32 %v2875, -1.0
    %v2877 = vmul.f32 %v2393, %v2393
    %v2878 = vmin.f32 16.0, %v2877
    %v2879 = vmul.f32 %v2878, 2.1237322e-06
    %v2880 = vadd.f32 %v2879, 0.00028619796
    %v2881 = vmul.f32 %v2878, %v2880
    %v2882 = vadd.f32 %v2881, 0.0036580483
    %v2883 = vmul.f32 %v2878, %v2882
    %v2884 = vadd.f32 %v2883, 0.05243302
    %v2885 = vmul.f32 %v2878, %v2884
    %v2886 = vadd.f32 %v2885, 0.18741608
    %v2887 = vmul.f32 %v2878, %v2886
    %v2888 = vadd.f32 %v2887, 1.1283791
    %v2889 = vmul.f32 %v2393, %v2888
    %v2890 = vmul.f32 %v2878, 3.8918573e-05
    %v2891 = vadd.f32 %v2890, 0.001143296
    %v2892 = vmul.f32 %v2878, %v2891
    %v2893 = vadd.f32 %v2892, 0.014752088
    %v2894 = vmul.f32 %v2878, %v2893
    %v2895 = vadd.f32 %v2894, 0.112945676
    %v2896 = vmul.f32 %v2878, %v2895
    %v2897 = vadd.f32 %v2896, 0.4994258
    %v2898 = vmul.f32 %v2878, %v2897
    %v2899 = vadd.f32 %v2898, 1.0
    %v2900 = vrcp.pop %v2899
    %v2901 = vmul.f32 %v2899, %v2900
    %v2902 = vsub.f32 1.0, %v2901
    %v2903 = vmul.f32 %v2900, %v2902
    %v2904 = vadd.f32 %v2900, %v2903
    %vm2905 = vweird.f32 %v2899
    %vm2906 = vweird.f32 %v2900
    %vm2907 = vmor %vm2905, %vm2906
    %v2908 = vsel %vm2907, %v2900, %v2904
    %v2909 = vand.u32 2147483647, %v2899
    %vm2910 = vcmp.eq.f32.partialorder %v2909, 8.507059e+37
    %v2911 = vand.u32 %v2899, 2147483648
    %v2912 = vor.u32 1.1754944e-38, %v2911
    %v2913 = vsel %vm2910, %v2912, %v2908
    %v2914 = vmul.f32 %v2889, %v2913
    %v2915 = vmin.f32 %v2914, 1.0
    %v2916 = vmax.f32 %v2915, -1.0
    %v2917 = vmul.f32 %v2394, %v2394
    %v2918 = vmin.f32 16.0, %v2917
    %v2919 = vmul.f32 %v2918, 2.1237322e-06
    %v2920 = vadd.f32 %v2919, 0.00028619796
    %v2921 = vmul.f32 %v2918, %v2920
    %v2922 = vadd.f32 %v2921, 0.0036580483
    %v2923 = vmul.f32 %v2918, %v2922
    %v2924 = vadd.f32 %v2923, 0.05243302
    %v2925 = vmul.f32 %v2918, %v2924
    %v2926 = vadd.f32 %v2925, 0.18741608
    %v2927 = vmul.f32 %v2918, %v2926
    %v2928 = vadd.f32 %v2927, 1.1283791
    %v2929 = vmul.f32 %v2394, %v2928
    %v2930 = vmul.f32 %v2918, 3.8918573e-05
    %v2931 = vadd.f32 %v2930, 0.001143296
    %v2932 = vmul.f32 %v2918, %v2931
    %v2933 = vadd.f32 %v2932, 0.014752088
    %v2934 = vmul.f32 %v2918, %v2933
    %v2935 = vadd.f32 %v2934, 0.112945676
    %v2936 = vmul.f32 %v2918, %v2935
    %v2937 = vadd.f32 %v2936, 0.4994258
    %v2938 = vmul.f32 %v2918, %v2937
    %v2939 = vadd.f32 %v2938, 1.0
    %v2940 = vrcp.pop %v2939
    %v2941 = vmul.f32 %v2939, %v2940
    %v2942 = vsub.f32 1.0, %v2941
    %v2943 = vmul.f32 %v2940, %v2942
    %v2944 = vadd.f32 %v2940, %v2943
    %vm2945 = vweird.f32 %v2939
    %vm2946 = vweird.f32 %v2940
    %vm2947 = vmor %vm2945, %vm2946
    %v2948 = vsel %vm2947, %v2940, %v2944
    %v2949 = vand.u32 2147483647, %v2939
    %vm2950 = vcmp.eq.f32.partialorder %v2949, 8.507059e+37
    %v2951 = vand.u32 %v2939, 2147483648
    %v2952 = vor.u32 1.1754944e-38, %v2951
    %v2953 = vsel %vm2950, %v2952, %v2948
    %v2954 = vmul.f32 %v2929, %v2953
    %v2955 = vmin.f32 %v2954, 1.0
    %v2956 = vmax.f32 %v2955, -1.0
    %v2957 = vmul.f32 %v2395, %v2395
    %v2958 = vmin.f32 16.0, %v2957
    %v2959 = vmul.f32 %v2958, 2.1237322e-06
    %v2960 = vadd.f32 %v2959, 0.00028619796
    %v2961 = vmul.f32 %v2958, %v2960
    %v2962 = vadd.f32 %v2961, 0.0036580483
    %v2963 = vmul.f32 %v2958, %v2962
    %v2964 = vadd.f32 %v2963, 0.05243302
    %v2965 = vmul.f32 %v2958, %v2964
    %v2966 = vadd.f32 %v2965, 0.18741608
    %v2967 = vmul.f32 %v2958, %v2966
    %v2968 = vadd.f32 %v2967, 1.1283791
    %v2969 = vmul.f32 %v2395, %v2968
    %v2970 = vmul.f32 %v2958, 3.8918573e-05
    %v2971 = vadd.f32 %v2970, 0.001143296
    %v2972 = vmul.f32 %v2958, %v2971
    %v2973 = vadd.f32 %v2972, 0.014752088
    %v2974 = vmul.f32 %v2958, %v2973
    %v2975 = vadd.f32 %v2974, 0.112945676
    %v2976 = vmul.f32 %v2958, %v2975
    %v2977 = vadd.f32 %v2976, 0.4994258
    %v2978 = vmul.f32 %v2958, %v2977
    %v2979 = vadd.f32 %v2978, 1.0
    %v2980 = vrcp.pop %v2979
    %v2981 = vmul.f32 %v2979, %v2980
    %v2982 = vsub.f32 1.0, %v2981
    %v2983 = vmul.f32 %v2980, %v2982
    %v2984 = vadd.f32 %v2980, %v2983
    %vm2985 = vweird.f32 %v2979
    %vm2986 = vweird.f32 %v2980
    %vm2987 = vmor %vm2985, %vm2986
    %v2988 = vsel %vm2987, %v2980, %v2984
    %v2989 = vand.u32 2147483647, %v2979
    %vm2990 = vcmp.eq.f32.partialorder %v2989, 8.507059e+37
    %v2991 = vand.u32 %v2979, 2147483648
    %v2992 = vor.u32 1.1754944e-38, %v2991
    %v2993 = vsel %vm2990, %v2992, %v2988
    %v2994 = vmul.f32 %v2969, %v2993
    %v2995 = vmin.f32 %v2994, 1.0
    %v2996 = vmax.f32 %v2995, -1.0
    %v2997 = vmul.f32 %v2396, %v2396
    %v2998 = vmin.f32 16.0, %v2997
    %v2999 = vmul.f32 %v2998, 2.1237322e-06
    %v3000 = vadd.f32 %v2999, 0.00028619796
    %v3001 = vmul.f32 %v2998, %v3000
    %v3002 = vadd.f32 %v3001, 0.0036580483
    %v3003 = vmul.f32 %v2998, %v3002
    %v3004 = vadd.f32 %v3003, 0.05243302
    %v3005 = vmul.f32 %v2998, %v3004
    %v3006 = vadd.f32 %v3005, 0.18741608
    %v3007 = vmul.f32 %v2998, %v3006
    %v3008 = vadd.f32 %v3007, 1.1283791
    %v3009 = vmul.f32 %v2396, %v3008
    %v3010 = vmul.f32 %v2998, 3.8918573e-05
    %v3011 = vadd.f32 %v3010, 0.001143296
    %v3012 = vmul.f32 %v2998, %v3011
    %v3013 = vadd.f32 %v3012, 0.014752088
    %v3014 = vmul.f32 %v2998, %v3013
    %v3015 = vadd.f32 %v3014, 0.112945676
    %v3016 = vmul.f32 %v2998, %v3015
    %v3017 = vadd.f32 %v3016, 0.4994258
    %v3018 = vmul.f32 %v2998, %v3017
    %v3019 = vadd.f32 %v3018, 1.0
    %v3020 = vrcp.pop %v3019
    %v3021 = vmul.f32 %v3019, %v3020
    %v3022 = vsub.f32 1.0, %v3021
    %v3023 = vmul.f32 %v3020, %v3022
    %v3024 = vadd.f32 %v3020, %v3023
    %vm3025 = vweird.f32 %v3019
    %vm3026 = vweird.f32 %v3020
    %vm3027 = vmor %vm3025, %vm3026
    %v3028 = vsel %vm3027, %v3020, %v3024
    %v3029 = vand.u32 2147483647, %v3019
    %vm3030 = vcmp.eq.f32.partialorder %v3029, 8.507059e+37
    %v3031 = vand.u32 %v3019, 2147483648
    %v3032 = vor.u32 1.1754944e-38, %v3031
    %v3033 = vsel %vm3030, %v3032, %v3028
    %v3034 = vmul.f32 %v3009, %v3033
    %v3035 = vmin.f32 %v3034, 1.0
    %v3036 = vmax.f32 %v3035, -1.0
    %v3037 = vadd.f32 %v2436, 1.0
    %v3038 = vadd.f32 %v2476, 1.0
    %v3039 = vadd.f32 %v2516, 1.0
    %v3040 = vadd.f32 %v2556, 1.0
    %v3041 = vadd.f32 %v2596, 1.0
    %v3042 = vadd.f32 %v2636, 1.0
    %v3043 = vadd.f32 %v2676, 1.0
    %v3044 = vadd.f32 %v2716, 1.0
    %v3045 = vadd.f32 %v2756, 1.0
    %v3046 = vadd.f32 %v2796, 1.0
    %v3047 = vadd.f32 %v2836, 1.0
    %v3048 = vadd.f32 %v2876, 1.0
    %v3049 = vadd.f32 %v2916, 1.0
    %v3050 = vadd.f32 %v2956, 1.0
    %v3051 = vadd.f32 %v2996, 1.0
    %v3052 = vadd.f32 %v3036, 1.0
    %v3053 = vmul.f32 %v2365, %v3037
    %v3054 = vmul.f32 %v2366, %v3038
    %v3055 = vmul.f32 %v2367, %v3039
    %v3056 = vmul.f32 %v2368, %v3040
    %v3057 = vmul.f32 %v2369, %v3041
    %v3058 = vmul.f32 %v2370, %v3042
    %v3059 = vmul.f32 %v2371, %v3043
    %v3060 = vmul.f32 %v2372, %v3044
    %v3061 = vmul.f32 %v2373, %v3045
    %v3062 = vmul.f32 %v2374, %v3046
    %v3063 = vmul.f32 %v2375, %v3047
    %v3064 = vmul.f32 %v2376, %v3048
    %v3065 = vmul.f32 %v2377, %v3049
    %v3066 = vmul.f32 %v2378, %v3050
    %v3067 = vmul.f32 %v2379, %v3051
    %v3068 = vmul.f32 %v2380, %v3052
    %v3069 = vpack.c.bf16 %v3053, %v3053
    %v3070 = vpack.c.bf16 %v3054, %v3054
    %v3071 = vpack.c.bf16 %v3055, %v3055
    %v3072 = vpack.c.bf16 %v3056, %v3056
    %v3073 = vpack.c.bf16 %v3057, %v3057
    %v3074 = vpack.c.bf16 %v3058, %v3058
    %v3075 = vpack.c.bf16 %v3059, %v3059
    %v3076 = vpack.c.bf16 %v3060, %v3060
    %v3077 = vpack.c.bf16 %v3061, %v3061
    %v3078 = vpack.c.bf16 %v3062, %v3062
    %v3079 = vpack.c.bf16 %v3063, %v3063
    %v3080 = vpack.c.bf16 %v3064, %v3064
    %v3081 = vpack.c.bf16 %v3065, %v3065
    %v3082 = vpack.c.bf16 %v3066, %v3066
    %v3083 = vpack.c.bf16 %v3067, %v3067
    %v3084 = vpack.c.bf16 %v3068, %v3068
    %s3085 = scalar_lea.vmem [#allocation8], 256
    %v3086 = vld [vmem:[%s3085] sm:$0xff]
    %v3087 = vld [vmem:[%s3085 + $0x8] sm:$0xff]
    %v3088 = vld [vmem:[%s3085 + $0x10] sm:$0xff]
    %v3089 = vld [vmem:[%s3085 + $0x18] sm:$0xff]
    %v3090 = vld [vmem:[%s3085 + $0x20] sm:$0xff]
    %v3091 = vld [vmem:[%s3085 + $0x28] sm:$0xff]
    %v3092 = vld [vmem:[%s3085 + $0x30] sm:$0xff]
    %v3093 = vld [vmem:[%s3085 + $0x38] sm:$0xff]
    %v3094 = vld [vmem:[%s3085 + $0x40] sm:$0xff]
    %v3095 = vld [vmem:[%s3085 + $0x48] sm:$0xff]
    %v3096 = vld [vmem:[%s3085 + $0x50] sm:$0xff]
    %v3097 = vld [vmem:[%s3085 + $0x58] sm:$0xff]
    %v3098 = vld [vmem:[%s3085 + $0x60] sm:$0xff]
    %v3099 = vld [vmem:[%s3085 + $0x68] sm:$0xff]
    %v3100 = vld [vmem:[%s3085 + $0x70] sm:$0xff]
    %v3101 = vld [vmem:[%s3085 + $0x78] sm:$0xff]
    %v3102 = vld [vmem:[%s3085 + $0x80] sm:$0xff]
    %v3103 = vld [vmem:[%s3085 + $0x88] sm:$0xff]
    %v3104 = vld [vmem:[%s3085 + $0x90] sm:$0xff]
    %v3105 = vld [vmem:[%s3085 + $0x98] sm:$0xff]
    %v3106 = vld [vmem:[%s3085 + $0xa0] sm:$0xff]
    %v3107 = vld [vmem:[%s3085 + $0xa8] sm:$0xff]
    %v3108 = vld [vmem:[%s3085 + $0xb0] sm:$0xff]
    %v3109 = vld [vmem:[%s3085 + $0xb8] sm:$0xff]
    %v3110 = vld [vmem:[%s3085 + $0xc0] sm:$0xff]
    %v3111 = vld [vmem:[%s3085 + $0xc8] sm:$0xff]
    %v3112 = vld [vmem:[%s3085 + $0xd0] sm:$0xff]
    %v3113 = vld [vmem:[%s3085 + $0xd8] sm:$0xff]
    %v3114 = vld [vmem:[%s3085 + $0xe0] sm:$0xff]
    %v3115 = vld [vmem:[%s3085 + $0xe8] sm:$0xff]
    %v3116 = vld [vmem:[%s3085 + $0xf0] sm:$0xff]
    %v3117 = vld [vmem:[%s3085 + $0xf8] sm:$0xff]
    %v3118 = vperm.slane %v1864, 3
    %v3151 = vunpack.c.l.b16 %v3086
    %v3152 = vunpack.c.h.b16 %v3086
    %v3153 = vunpack.c.l.b16 %v3087
    %v3154 = vunpack.c.h.b16 %v3087
    %v3155 = vunpack.c.l.b16 %v3088
    %v3156 = vunpack.c.h.b16 %v3088
    %v3157 = vunpack.c.l.b16 %v3089
    %v3158 = vunpack.c.h.b16 %v3089
    %v3159 = vunpack.c.l.b16 %v3090
    %v3160 = vunpack.c.h.b16 %v3090
    %v3161 = vunpack.c.l.b16 %v3091
    %v3162 = vunpack.c.h.b16 %v3091
    %v3163 = vunpack.c.l.b16 %v3092
    %v3164 = vunpack.c.h.b16 %v3092
    %v3165 = vunpack.c.l.b16 %v3093
    %v3166 = vunpack.c.h.b16 %v3093
    %v3167 = vunpack.c.l.b16 %v3094
    %v3168 = vunpack.c.h.b16 %v3094
    %v3169 = vunpack.c.l.b16 %v3095
    %v3170 = vunpack.c.h.b16 %v3095
    %v3171 = vunpack.c.l.b16 %v3096
    %v3172 = vunpack.c.h.b16 %v3096
    %v3173 = vunpack.c.l.b16 %v3097
    %v3174 = vunpack.c.h.b16 %v3097
    %v3175 = vunpack.c.l.b16 %v3098
    %v3176 = vunpack.c.h.b16 %v3098
    %v3177 = vunpack.c.l.b16 %v3099
    %v3178 = vunpack.c.h.b16 %v3099
    %v3179 = vunpack.c.l.b16 %v3100
    %v3180 = vunpack.c.h.b16 %v3100
    %v3181 = vunpack.c.l.b16 %v3101
    %v3182 = vunpack.c.h.b16 %v3101
    %v3183 = vunpack.c.l.b16 %v3102
    %v3184 = vunpack.c.h.b16 %v3102
    %v3185 = vunpack.c.l.b16 %v3103
    %v3186 = vunpack.c.h.b16 %v3103
    %v3187 = vunpack.c.l.b16 %v3104
    %v3188 = vunpack.c.h.b16 %v3104
    %v3189 = vunpack.c.l.b16 %v3105
    %v3190 = vunpack.c.h.b16 %v3105
    %v3191 = vunpack.c.l.b16 %v3106
    %v3192 = vunpack.c.h.b16 %v3106
    %v3193 = vunpack.c.l.b16 %v3107
    %v3194 = vunpack.c.h.b16 %v3107
    %v3195 = vunpack.c.l.b16 %v3108
    %v3196 = vunpack.c.h.b16 %v3108
    %v3197 = vunpack.c.l.b16 %v3109
    %v3198 = vunpack.c.h.b16 %v3109
    %v3199 = vunpack.c.l.b16 %v3110
    %v3200 = vunpack.c.h.b16 %v3110
    %v3201 = vunpack.c.l.b16 %v3111
    %v3202 = vunpack.c.h.b16 %v3111
    %v3203 = vunpack.c.l.b16 %v3112
    %v3204 = vunpack.c.h.b16 %v3112
    %v3205 = vunpack.c.l.b16 %v3113
    %v3206 = vunpack.c.h.b16 %v3113
    %v3207 = vunpack.c.l.b16 %v3114
    %v3208 = vunpack.c.h.b16 %v3114
    %v3209 = vunpack.c.l.b16 %v3115
    %v3210 = vunpack.c.h.b16 %v3115
    %v3211 = vunpack.c.l.b16 %v3116
    %v3212 = vunpack.c.h.b16 %v3116
    %v3213 = vunpack.c.l.b16 %v3117
    %v3214 = vunpack.c.h.b16 %v3117
    %v3215 = vpack.c.b16 %v3167, %v3151
    %v3216 = vpack.c.b16 %v3168, %v3152
    %v3217 = vpack.c.b16 %v3169, %v3153
    %v3218 = vpack.c.b16 %v3170, %v3154
    %v3219 = vpack.c.b16 %v3171, %v3155
    %v3220 = vpack.c.b16 %v3172, %v3156
    %v3221 = vpack.c.b16 %v3173, %v3157
    %v3222 = vpack.c.b16 %v3174, %v3158
    %v3223 = vpack.c.b16 %v3175, %v3159
    %v3224 = vpack.c.b16 %v3176, %v3160
    %v3225 = vpack.c.b16 %v3177, %v3161
    %v3226 = vpack.c.b16 %v3178, %v3162
    %v3227 = vpack.c.b16 %v3179, %v3163
    %v3228 = vpack.c.b16 %v3180, %v3164
    %v3229 = vpack.c.b16 %v3181, %v3165
    %v3230 = vpack.c.b16 %v3182, %v3166
    %v3231 = vpack.c.b16 %v3199, %v3183
    %v3232 = vpack.c.b16 %v3200, %v3184
    %v3233 = vpack.c.b16 %v3201, %v3185
    %v3234 = vpack.c.b16 %v3202, %v3186
    %v3235 = vpack.c.b16 %v3203, %v3187
    %v3236 = vpack.c.b16 %v3204, %v3188
    %v3237 = vpack.c.b16 %v3205, %v3189
    %v3238 = vpack.c.b16 %v3206, %v3190
    %v3239 = vpack.c.b16 %v3207, %v3191
    %v3240 = vpack.c.b16 %v3208, %v3192
    %v3241 = vpack.c.b16 %v3209, %v3193
    %v3242 = vpack.c.b16 %v3210, %v3194
    %v3243 = vpack.c.b16 %v3211, %v3195
    %v3244 = vpack.c.b16 %v3212, %v3196
    %v3245 = vpack.c.b16 %v3213, %v3197
    %v3246 = vpack.c.b16 %v3214, %v3198
    %3279 = vmatpush.bf16.xpose.msra.mxu0 0
    %3280 = vmatpush.bf16.xpose.msra.mxu0 0
    %3281 = vmatpush.bf16.xpose.msra.mxu0 0
    %3282 = vmatpush.bf16.xpose.msra.mxu0 0
    %3283 = vmatpush.bf16.xpose.msra.mxu0 0
    %3284 = vmatpush.bf16.xpose.msra.mxu0 0
    %3285 = vmatpush.bf16.xpose.msra.mxu0 %v3231
    %3286 = vmatpush.bf16.xpose.msra.mxu0 %v3215
    %3287 = vmatmul.bf16.gmra.mxu0 %v3069
    %v3288 = vpop.f32.mrf.mxu0
    %v3289 = vadd.f32 %v3118, %v3288
    %v3290 = vpop.f32.mrf.mxu0
    %3291 = vdwg.mxu0
    %3292 = vmatpush.bf16.xpose.msra.mxu0 0
    %3293 = vmatpush.bf16.xpose.msra.mxu0 0
    %3294 = vmatpush.bf16.xpose.msra.mxu0 0
    %3295 = vmatpush.bf16.xpose.msra.mxu0 0
    %3296 = vmatpush.bf16.xpose.msra.mxu0 0
    %3297 = vmatpush.bf16.xpose.msra.mxu0 0
    %3298 = vmatpush.bf16.xpose.msra.mxu0 %v3232
    %3299 = vmatpush.bf16.xpose.msra.mxu0 %v3216
    %3300 = vmatmul.bf16.gmra.mxu0 %v3070
    %v3301 = vpop.f32.mrf.mxu0
    %v3302 = vadd.f32 %v3289, %v3301
    %v3303 = vpop.f32.mrf.mxu0
    %3304 = vdwg.mxu0
    %3305 = vmatpush.bf16.xpose.msra.mxu0 0
    %3306 = vmatpush.bf16.xpose.msra.mxu0 0
    %3307 = vmatpush.bf16.xpose.msra.mxu0 0
    %3308 = vmatpush.bf16.xpose.msra.mxu0 0
    %3309 = vmatpush.bf16.xpose.msra.mxu0 0
    %3310 = vmatpush.bf16.xpose.msra.mxu0 0
    %3311 = vmatpush.bf16.xpose.msra.mxu0 %v3233
    %3312 = vmatpush.bf16.xpose.msra.mxu0 %v3217
    %3313 = vmatmul.bf16.gmra.mxu0 %v3071
    %v3314 = vpop.f32.mrf.mxu0
    %v3315 = vadd.f32 %v3302, %v3314
    %v3316 = vpop.f32.mrf.mxu0
    %3317 = vdwg.mxu0
    %3318 = vmatpush.bf16.xpose.msra.mxu0 0
    %3319 = vmatpush.bf16.xpose.msra.mxu0 0
    %3320 = vmatpush.bf16.xpose.msra.mxu0 0
    %3321 = vmatpush.bf16.xpose.msra.mxu0 0
    %3322 = vmatpush.bf16.xpose.msra.mxu0 0
    %3323 = vmatpush.bf16.xpose.msra.mxu0 0
    %3324 = vmatpush.bf16.xpose.msra.mxu0 %v3234
    %3325 = vmatpush.bf16.xpose.msra.mxu0 %v3218
    %3326 = vmatmul.bf16.gmra.mxu0 %v3072
    %v3327 = vpop.f32.mrf.mxu0
    %v3328 = vadd.f32 %v3315, %v3327
    %v3329 = vpop.f32.mrf.mxu0
    %3330 = vdwg.mxu0
    %3331 = vmatpush.bf16.xpose.msra.mxu0 0
    %3332 = vmatpush.bf16.xpose.msra.mxu0 0
    %3333 = vmatpush.bf16.xpose.msra.mxu0 0
    %3334 = vmatpush.bf16.xpose.msra.mxu0 0
    %3335 = vmatpush.bf16.xpose.msra.mxu0 0
    %3336 = vmatpush.bf16.xpose.msra.mxu0 0
    %3337 = vmatpush.bf16.xpose.msra.mxu0 %v3235
    %3338 = vmatpush.bf16.xpose.msra.mxu0 %v3219
    %3339 = vmatmul.bf16.gmra.mxu0 %v3073
    %v3340 = vpop.f32.mrf.mxu0
    %v3341 = vadd.f32 %v3328, %v3340
    %v3342 = vpop.f32.mrf.mxu0
    %3343 = vdwg.mxu0
    %3344 = vmatpush.bf16.xpose.msra.mxu0 0
    %3345 = vmatpush.bf16.xpose.msra.mxu0 0
    %3346 = vmatpush.bf16.xpose.msra.mxu0 0
    %3347 = vmatpush.bf16.xpose.msra.mxu0 0
    %3348 = vmatpush.bf16.xpose.msra.mxu0 0
    %3349 = vmatpush.bf16.xpose.msra.mxu0 0
    %3350 = vmatpush.bf16.xpose.msra.mxu0 %v3236
    %3351 = vmatpush.bf16.xpose.msra.mxu0 %v3220
    %3352 = vmatmul.bf16.gmra.mxu0 %v3074
    %v3353 = vpop.f32.mrf.mxu0
    %v3354 = vadd.f32 %v3341, %v3353
    %v3355 = vpop.f32.mrf.mxu0
    %3356 = vdwg.mxu0
    %3357 = vmatpush.bf16.xpose.msra.mxu0 0
    %3358 = vmatpush.bf16.xpose.msra.mxu0 0
    %3359 = vmatpush.bf16.xpose.msra.mxu0 0
    %3360 = vmatpush.bf16.xpose.msra.mxu0 0
    %3361 = vmatpush.bf16.xpose.msra.mxu0 0
    %3362 = vmatpush.bf16.xpose.msra.mxu0 0
    %3363 = vmatpush.bf16.xpose.msra.mxu0 %v3237
    %3364 = vmatpush.bf16.xpose.msra.mxu0 %v3221
    %3365 = vmatmul.bf16.gmra.mxu0 %v3075
    %v3366 = vpop.f32.mrf.mxu0
    %v3367 = vadd.f32 %v3354, %v3366
    %v3368 = vpop.f32.mrf.mxu0
    %3369 = vdwg.mxu0
    %3370 = vmatpush.bf16.xpose.msra.mxu0 0
    %3371 = vmatpush.bf16.xpose.msra.mxu0 0
    %3372 = vmatpush.bf16.xpose.msra.mxu0 0
    %3373 = vmatpush.bf16.xpose.msra.mxu0 0
    %3374 = vmatpush.bf16.xpose.msra.mxu0 0
    %3375 = vmatpush.bf16.xpose.msra.mxu0 0
    %3376 = vmatpush.bf16.xpose.msra.mxu0 %v3238
    %3377 = vmatpush.bf16.xpose.msra.mxu0 %v3222
    %3378 = vmatmul.bf16.gmra.mxu0 %v3076
    %v3379 = vpop.f32.mrf.mxu0
    %v3380 = vadd.f32 %v3367, %v3379
    %v3381 = vpop.f32.mrf.mxu0
    %3382 = vdwg.mxu0
    %3383 = vmatpush.bf16.xpose.msra.mxu0 0
    %3384 = vmatpush.bf16.xpose.msra.mxu0 0
    %3385 = vmatpush.bf16.xpose.msra.mxu0 0
    %3386 = vmatpush.bf16.xpose.msra.mxu0 0
    %3387 = vmatpush.bf16.xpose.msra.mxu0 0
    %3388 = vmatpush.bf16.xpose.msra.mxu0 0
    %3389 = vmatpush.bf16.xpose.msra.mxu0 %v3239
    %3390 = vmatpush.bf16.xpose.msra.mxu0 %v3223
    %3391 = vmatmul.bf16.gmra.mxu0 %v3077
    %v3392 = vpop.f32.mrf.mxu0
    %v3393 = vadd.f32 %v3380, %v3392
    %v3394 = vpop.f32.mrf.mxu0
    %3395 = vdwg.mxu0
    %3396 = vmatpush.bf16.xpose.msra.mxu0 0
    %3397 = vmatpush.bf16.xpose.msra.mxu0 0
    %3398 = vmatpush.bf16.xpose.msra.mxu0 0
    %3399 = vmatpush.bf16.xpose.msra.mxu0 0
    %3400 = vmatpush.bf16.xpose.msra.mxu0 0
    %3401 = vmatpush.bf16.xpose.msra.mxu0 0
    %3402 = vmatpush.bf16.xpose.msra.mxu0 %v3240
    %3403 = vmatpush.bf16.xpose.msra.mxu0 %v3224
    %3404 = vmatmul.bf16.gmra.mxu0 %v3078
    %v3405 = vpop.f32.mrf.mxu0
    %v3406 = vadd.f32 %v3393, %v3405
    %v3407 = vpop.f32.mrf.mxu0
    %3408 = vdwg.mxu0
    %3409 = vmatpush.bf16.xpose.msra.mxu0 0
    %3410 = vmatpush.bf16.xpose.msra.mxu0 0
    %3411 = vmatpush.bf16.xpose.msra.mxu0 0
    %3412 = vmatpush.bf16.xpose.msra.mxu0 0
    %3413 = vmatpush.bf16.xpose.msra.mxu0 0
    %3414 = vmatpush.bf16.xpose.msra.mxu0 0
    %3415 = vmatpush.bf16.xpose.msra.mxu0 %v3241
    %3416 = vmatpush.bf16.xpose.msra.mxu0 %v3225
    %3417 = vmatmul.bf16.gmra.mxu0 %v3079
    %v3418 = vpop.f32.mrf.mxu0
    %v3419 = vadd.f32 %v3406, %v3418
    %v3420 = vpop.f32.mrf.mxu0
    %3421 = vdwg.mxu0
    %3422 = vmatpush.bf16.xpose.msra.mxu0 0
    %3423 = vmatpush.bf16.xpose.msra.mxu0 0
    %3424 = vmatpush.bf16.xpose.msra.mxu0 0
    %3425 = vmatpush.bf16.xpose.msra.mxu0 0
    %3426 = vmatpush.bf16.xpose.msra.mxu0 0
    %3427 = vmatpush.bf16.xpose.msra.mxu0 0
    %3428 = vmatpush.bf16.xpose.msra.mxu0 %v3242
    %3429 = vmatpush.bf16.xpose.msra.mxu0 %v3226
    %3430 = vmatmul.bf16.gmra.mxu0 %v3080
    %v3431 = vpop.f32.mrf.mxu0
    %v3432 = vadd.f32 %v3419, %v3431
    %v3433 = vpop.f32.mrf.mxu0
    %3434 = vdwg.mxu0
    %3435 = vmatpush.bf16.xpose.msra.mxu0 0
    %3436 = vmatpush.bf16.xpose.msra.mxu0 0
    %3437 = vmatpush.bf16.xpose.msra.mxu0 0
    %3438 = vmatpush.bf16.xpose.msra.mxu0 0
    %3439 = vmatpush.bf16.xpose.msra.mxu0 0
    %3440 = vmatpush.bf16.xpose.msra.mxu0 0
    %3441 = vmatpush.bf16.xpose.msra.mxu0 %v3243
    %3442 = vmatpush.bf16.xpose.msra.mxu0 %v3227
    %3443 = vmatmul.bf16.gmra.mxu0 %v3081
    %v3444 = vpop.f32.mrf.mxu0
    %v3445 = vadd.f32 %v3432, %v3444
    %v3446 = vpop.f32.mrf.mxu0
    %3447 = vdwg.mxu0
    %3448 = vmatpush.bf16.xpose.msra.mxu0 0
    %3449 = vmatpush.bf16.xpose.msra.mxu0 0
    %3450 = vmatpush.bf16.xpose.msra.mxu0 0
    %3451 = vmatpush.bf16.xpose.msra.mxu0 0
    %3452 = vmatpush.bf16.xpose.msra.mxu0 0
    %3453 = vmatpush.bf16.xpose.msra.mxu0 0
    %3454 = vmatpush.bf16.xpose.msra.mxu0 %v3244
    %3455 = vmatpush.bf16.xpose.msra.mxu0 %v3228
    %3456 = vmatmul.bf16.gmra.mxu0 %v3082
    %v3457 = vpop.f32.mrf.mxu0
    %v3458 = vadd.f32 %v3445, %v3457
    %v3459 = vpop.f32.mrf.mxu0
    %3460 = vdwg.mxu0
    %3461 = vmatpush.bf16.xpose.msra.mxu0 0
    %3462 = vmatpush.bf16.xpose.msra.mxu0 0
    %3463 = vmatpush.bf16.xpose.msra.mxu0 0
    %3464 = vmatpush.bf16.xpose.msra.mxu0 0
    %3465 = vmatpush.bf16.xpose.msra.mxu0 0
    %3466 = vmatpush.bf16.xpose.msra.mxu0 0
    %3467 = vmatpush.bf16.xpose.msra.mxu0 %v3245
    %3468 = vmatpush.bf16.xpose.msra.mxu0 %v3229
    %3469 = vmatmul.bf16.gmra.mxu0 %v3083
    %v3470 = vpop.f32.mrf.mxu0
    %v3471 = vadd.f32 %v3458, %v3470
    %v3472 = vpop.f32.mrf.mxu0
    %3473 = vdwg.mxu0
    %3474 = vmatpush.bf16.xpose.msra.mxu0 0
    %3475 = vmatpush.bf16.xpose.msra.mxu0 0
    %3476 = vmatpush.bf16.xpose.msra.mxu0 0
    %3477 = vmatpush.bf16.xpose.msra.mxu0 0
    %3478 = vmatpush.bf16.xpose.msra.mxu0 0
    %3479 = vmatpush.bf16.xpose.msra.mxu0 0
    %3480 = vmatpush.bf16.xpose.msra.mxu0 %v3246
    %3481 = vmatpush.bf16.xpose.msra.mxu0 %v3230
    %3482 = vmatmul.bf16.gmra.mxu0 %v3084
    %v3483 = vpop.f32.mrf.mxu0
    %v3484 = vadd.f32 %v3471, %v3483
    %v3485 = vpop.f32.mrf.mxu0
    %3486 = vdwg.mxu0
    %v3487 = vsel %vm169, %v3484, 0.0
    %3488 = vadd.xlane.f32.xlu0 %v3487
    %v3489 = vpop.xlane.xlu0 %3488
    %v3490 = vmul.f32 %v3489, %v195
    %v3491 = vsub.f32 %v3484, %v3490
    %v3492 = vmul.f32 %v3491, %v3491
    %v3493 = vsel %vm169, %v3492, 0.0
    %3494 = vadd.xlane.f32.xlu0 %v3493
    %v3495 = vpop.xlane.xlu0 %3494
    %v3496 = vmul.f32 %v3495, %v195
    %v3497 = vadd.f32 %v3496, 1e-05
    %v3498 = vrsqrt.pop %v3497
    %v3499 = vmul.f32 %v3498, %v3497
    %v3500 = vmul.f32 %v3499, %v3498
    %v3501 = vmul.f32 0.5, %v3500
    %v3502 = vsub.f32 1.5, %v3501
    %v3503 = vmul.f32 %v3498, %v3502
    %vm3504 = vweird.f32 %v3497
    %vm3505 = vweird.f32 %v3498
    %vm3506 = vmor %vm3504, %vm3505
    %v3507 = vsel %vm3506, %v3498, %v3503
    %v3508 = vmul.f32 %v3491, %v3507
    %v3509 = vperm.slane %v1864, 4
    %v3510 = vmul.f32 %v3508, %v3509
    %v3511 = vperm.slane %v1864, 5
    %v3512 = vadd.f32 %v3510, %v3511
    %v3513 = vmul.f32 %v3512, 0.5
    %v3514 = vmul.f32 %v3512, 0.70710677
    %v3515 = vmul.f32 %v3514, %v3514
    %v3516 = vmin.f32 16.0, %v3515
    %v3517 = vmul.f32 %v3516, 2.1237322e-06
    %v3518 = vadd.f32 %v3517, 0.00028619796
    %v3519 = vmul.f32 %v3516, %v3518
    %v3520 = vadd.f32 %v3519, 0.0036580483
    %v3521 = vmul.f32 %v3516, %v3520
    %v3522 = vadd.f32 %v3521, 0.05243302
    %v3523 = vmul.f32 %v3516, %v3522
    %v3524 = vadd.f32 %v3523, 0.18741608
    %v3525 = vmul.f32 %v3516, %v3524
    %v3526 = vadd.f32 %v3525, 1.1283791
    %v3527 = vmul.f32 %v3514, %v3526
    %v3528 = vmul.f32 %v3516, 3.8918573e-05
    %v3529 = vadd.f32 %v3528, 0.001143296
    %v3530 = vmul.f32 %v3516, %v3529
    %v3531 = vadd.f32 %v3530, 0.014752088
    %v3532 = vmul.f32 %v3516, %v3531
    %v3533 = vadd.f32 %v3532, 0.112945676
    %v3534 = vmul.f32 %v3516, %v3533
    %v3535 = vadd.f32 %v3534, 0.4994258
    %v3536 = vmul.f32 %v3516, %v3535
    %v3537 = vadd.f32 %v3536, 1.0
    %v3538 = vrcp.pop %v3537
    %v3539 = vmul.f32 %v3537, %v3538
    %v3540 = vsub.f32 1.0, %v3539
    %v3541 = vmul.f32 %v3538, %v3540
    %v3542 = vadd.f32 %v3538, %v3541
    %vm3543 = vweird.f32 %v3537
    %vm3544 = vweird.f32 %v3538
    %vm3545 = vmor %vm3543, %vm3544
    %v3546 = vsel %vm3545, %v3538, %v3542
    %v3547 = vand.u32 2147483647, %v3537
    %vm3548 = vcmp.eq.f32.partialorder %v3547, 8.507059e+37
    %v3549 = vand.u32 %v3537, 2147483648
    %v3550 = vor.u32 1.1754944e-38, %v3549
    %v3551 = vsel %vm3548, %v3550, %v3546
    %v3552 = vmul.f32 %v3527, %v3551
    %v3553 = vmin.f32 %v3552, 1.0
    %v3554 = vmax.f32 %v3553, -1.0
    %v3555 = vadd.f32 %v3554, 1.0
    %v3556 = vmul.f32 %v3513, %v3555
    %v3557 = vadd.f32 %v1921, %v3556
    %v3558 = vmul.f32 %v3557, 0.5
    %v3559 = vadd.f32 %v3558, %v1893
    %v3560 = vmul.f32 %v3559, 0.5
    %v3561 = vperm.slane %v1864, 6
    %v3562 = vmul.f32 %v3560, %v3561
    %v3563 = vsel %vm169, %v3562, 0.0
    %3564 = vadd.xlane.f32.xlu0 %v3563
    %v3565 = vpop.xlane.xlu0 %3564
    %s3566 = sld [smem:[#allocation13 + $0x80]]
    %v3567 = vstv %s3566
    %v3568 = vadd.f32 %v3565, %v3567
    %s3569 = scalar_lea.vmem [#allocation11], 16
    %v3570 = vld [vmem:[%s3569] sm:$0x7f]
    %s3571 = scalar_lea.vmem [#allocation5], 32
    %v3572 = vld [vmem:[%s3571] sm:$0xf]
    %v3573 = vld [vmem:[%s3571 + $0x4] sm:$0xf]
    %v3574 = vld [vmem:[%s3571 + $0x8] sm:$0xf]
    %v3575 = vld [vmem:[%s3571 + $0xc] sm:$0xf]
    %v3576 = vperm.slane %v3570, 0
    %v3581 = vunpack.c.l.b16 %v3572
    %v3582 = vunpack.c.l.b16 %v3573
    %v3583 = vunpack.c.l.b16 %v3574
    %v3584 = vunpack.c.l.b16 %v3575
    %v3585 = vpack.c.b16 %v3582, %v3581
    %v3586 = vpack.c.b16 %v3584, %v3583
    %3589 = vmatpush.bf16.msra.mxu0 0
    %3590 = vmatpush.bf16.msra.mxu0 0
    %3591 = vmatpush.bf16.msra.mxu0 0
    %3592 = vmatpush.bf16.msra.mxu0 0
    %3593 = vmatpush.bf16.msra.mxu0 0
    %3594 = vmatpush.bf16.msra.mxu0 0
    %3595 = vmatpush.bf16.msra.mxu0 %v3586
    %3596 = vmatpush.bf16.msra.mxu0 %v3585
    %3597 = vmatmul.bf16.gmra.mxu0 %v171
    %v3598 = vpop.f32.mrf.mxu0
    %v3599 = vadd.f32 %v3576, %v3598
    %v3600 = vpop.f32.mrf.mxu0
    %3601 = vdwg.mxu0
    %v3602 = vsel %vm169, %v3599, 0.0
    %3603 = vadd.xlane.f32.xlu0 %v3602
    %v3604 = vpop.xlane.xlu0 %3603
    %v3605 = vmul.f32 %v3604, %v195
    %v3606 = vsub.f32 %v3599, %v3605
    %v3607 = vmul.f32 %v3606, %v3606
    %v3608 = vsel %vm169, %v3607, 0.0
    %3609 = vadd.xlane.f32.xlu0 %v3608
    %v3610 = vpop.xlane.xlu0 %3609
    %v3611 = vmul.f32 %v3610, %v195
    %v3612 = vadd.f32 %v3611, 1e-05
    %v3613 = vrsqrt.pop %v3612
    %v3614 = vmul.f32 %v3613, %v3612
    %v3615 = vmul.f32 %v3614, %v3613
    %v3616 = vmul.f32 0.5, %v3615
    %v3617 = vsub.f32 1.5, %v3616
    %v3618 = vmul.f32 %v3613, %v3617
    %vm3619 = vweird.f32 %v3612
    %vm3620 = vweird.f32 %v3613
    %vm3621 = vmor %vm3619, %vm3620
    %v3622 = vsel %vm3621, %v3613, %v3618
    %v3623 = vmul.f32 %v3606, %v3622
    %v3624 = vperm.slane %v3570, 1
    %v3625 = vmul.f32 %v3623, %v3624
    %v3626 = vperm.slane %v3570, 2
    %v3627 = vadd.f32 %v3625, %v3626
    %v3628 = vpack.c.bf16 %v3627, %v3627
    %s3629 = scalar_lea.vmem [#allocation7], 512
    %v3630 = vld [vmem:[%s3629] sm:$0xff]
    %v3631 = vld [vmem:[%s3629 + $0x8] sm:$0xff]
    %v3632 = vld [vmem:[%s3629 + $0x10] sm:$0xff]
    %v3633 = vld [vmem:[%s3629 + $0x18] sm:$0xff]
    %v3634 = vld [vmem:[%s3629 + $0x20] sm:$0xff]
    %v3635 = vld [vmem:[%s3629 + $0x28] sm:$0xff]
    %v3636 = vld [vmem:[%s3629 + $0x30] sm:$0xff]
    %v3637 = vld [vmem:[%s3629 + $0x38] sm:$0xff]
    %v3638 = vld [vmem:[%s3629 + $0x40] sm:$0xff]
    %v3639 = vld [vmem:[%s3629 + $0x48] sm:$0xff]
    %v3640 = vld [vmem:[%s3629 + $0x50] sm:$0xff]
    %v3641 = vld [vmem:[%s3629 + $0x58] sm:$0xff]
    %v3642 = vld [vmem:[%s3629 + $0x60] sm:$0xff]
    %v3643 = vld [vmem:[%s3629 + $0x68] sm:$0xff]
    %v3644 = vld [vmem:[%s3629 + $0x70] sm:$0xff]
    %v3645 = vld [vmem:[%s3629 + $0x78] sm:$0xff]
    %v3646 = vld [vmem:[%s3629 + $0x80] sm:$0xff]
    %v3647 = vld [vmem:[%s3629 + $0x88] sm:$0xff]
    %v3648 = vld [vmem:[%s3629 + $0x90] sm:$0xff]
    %v3649 = vld [vmem:[%s3629 + $0x98] sm:$0xff]
    %v3650 = vld [vmem:[%s3629 + $0xa0] sm:$0xff]
    %v3651 = vld [vmem:[%s3629 + $0xa8] sm:$0xff]
    %v3652 = vld [vmem:[%s3629 + $0xb0] sm:$0xff]
    %v3653 = vld [vmem:[%s3629 + $0xb8] sm:$0xff]
    %v3654 = vld [vmem:[%s3629 + $0xc0] sm:$0xff]
    %v3655 = vld [vmem:[%s3629 + $0xc8] sm:$0xff]
    %v3656 = vld [vmem:[%s3629 + $0xd0] sm:$0xff]
    %v3657 = vld [vmem:[%s3629 + $0xd8] sm:$0xff]
    %v3658 = vld [vmem:[%s3629 + $0xe0] sm:$0xff]
    %v3659 = vld [vmem:[%s3629 + $0xe8] sm:$0xff]
    %v3660 = vld [vmem:[%s3629 + $0xf0] sm:$0xff]
    %v3661 = vld [vmem:[%s3629 + $0xf8] sm:$0xff]
    %s3662 = scalar_lea.vmem [#allocation10], 2
    %v3663 = vld [vmem:[%s3662] ss:$4 sm:$0xff]
    %s3664 = scalar_lea.vmem [#allocation10], 34
    %v3665 = vld [vmem:[%s3664] ss:$4 sm:$0xff]
    %v3668 = vperm.slane %v3663, 0
    %v3669 = vperm.slane %v3663, 1
    %v3670 = vperm.slane %v3663, 2
    %v3671 = vperm.slane %v3663, 3
    %v3672 = vperm.slane %v3663, 4
    %v3673 = vperm.slane %v3663, 5
    %v3674 = vperm.slane %v3663, 6
    %v3675 = vperm.slane %v3663, 7
    %v3676 = vperm.slane %v3665, 0
    %v3677 = vperm.slane %v3665, 1
    %v3678 = vperm.slane %v3665, 2
    %v3679 = vperm.slane %v3665, 3
    %v3680 = vperm.slane %v3665, 4
    %v3681 = vperm.slane %v3665, 5
    %v3682 = vperm.slane %v3665, 6
    %v3683 = vperm.slane %v3665, 7
    %v3732 = vunpack.c.l.b16 %v3630
    %v3733 = vunpack.c.h.b16 %v3630
    %v3734 = vunpack.c.l.b16 %v3631
    %v3735 = vunpack.c.h.b16 %v3631
    %v3736 = vunpack.c.l.b16 %v3632
    %v3737 = vunpack.c.h.b16 %v3632
    %v3738 = vunpack.c.l.b16 %v3633
    %v3739 = vunpack.c.h.b16 %v3633
    %v3740 = vunpack.c.l.b16 %v3634
    %v3741 = vunpack.c.h.b16 %v3634
    %v3742 = vunpack.c.l.b16 %v3635
    %v3743 = vunpack.c.h.b16 %v3635
    %v3744 = vunpack.c.l.b16 %v3636
    %v3745 = vunpack.c.h.b16 %v3636
    %v3746 = vunpack.c.l.b16 %v3637
    %v3747 = vunpack.c.h.b16 %v3637
    %v3748 = vunpack.c.l.b16 %v3638
    %v3749 = vunpack.c.h.b16 %v3638
    %v3750 = vunpack.c.l.b16 %v3639
    %v3751 = vunpack.c.h.b16 %v3639
    %v3752 = vunpack.c.l.b16 %v3640
    %v3753 = vunpack.c.h.b16 %v3640
    %v3754 = vunpack.c.l.b16 %v3641
    %v3755 = vunpack.c.h.b16 %v3641
    %v3756 = vunpack.c.l.b16 %v3642
    %v3757 = vunpack.c.h.b16 %v3642
    %v3758 = vunpack.c.l.b16 %v3643
    %v3759 = vunpack.c.h.b16 %v3643
    %v3760 = vunpack.c.l.b16 %v3644
    %v3761 = vunpack.c.h.b16 %v3644
    %v3762 = vunpack.c.l.b16 %v3645
    %v3763 = vunpack.c.h.b16 %v3645
    %v3764 = vunpack.c.l.b16 %v3646
    %v3765 = vunpack.c.h.b16 %v3646
    %v3766 = vunpack.c.l.b16 %v3647
    %v3767 = vunpack.c.h.b16 %v3647
    %v3768 = vunpack.c.l.b16 %v3648
    %v3769 = vunpack.c.h.b16 %v3648
    %v3770 = vunpack.c.l.b16 %v3649
    %v3771 = vunpack.c.h.b16 %v3649
    %v3772 = vunpack.c.l.b16 %v3650
    %v3773 = vunpack.c.h.b16 %v3650
    %v3774 = vunpack.c.l.b16 %v3651
    %v3775 = vunpack.c.h.b16 %v3651
    %v3776 = vunpack.c.l.b16 %v3652
    %v3777 = vunpack.c.h.b16 %v3652
    %v3778 = vunpack.c.l.b16 %v3653
    %v3779 = vunpack.c.h.b16 %v3653
    %v3780 = vunpack.c.l.b16 %v3654
    %v3781 = vunpack.c.h.b16 %v3654
    %v3782 = vunpack.c.l.b16 %v3655
    %v3783 = vunpack.c.h.b16 %v3655
    %v3784 = vunpack.c.l.b16 %v3656
    %v3785 = vunpack.c.h.b16 %v3656
    %v3786 = vunpack.c.l.b16 %v3657
    %v3787 = vunpack.c.h.b16 %v3657
    %v3788 = vunpack.c.l.b16 %v3658
    %v3789 = vunpack.c.h.b16 %v3658
    %v3790 = vunpack.c.l.b16 %v3659
    %v3791 = vunpack.c.h.b16 %v3659
    %v3792 = vunpack.c.l.b16 %v3660
    %v3793 = vunpack.c.h.b16 %v3660
    %v3794 = vunpack.c.l.b16 %v3661
    %v3795 = vunpack.c.h.b16 %v3661
    %v3796 = vpack.c.b16 %v3748, %v3732
    %v3797 = vpack.c.b16 %v3749, %v3733
    %v3798 = vpack.c.b16 %v3750, %v3734
    %v3799 = vpack.c.b16 %v3751, %v3735
    %v3800 = vpack.c.b16 %v3752, %v3736
    %v3801 = vpack.c.b16 %v3753, %v3737
    %v3802 = vpack.c.b16 %v3754, %v3738
    %v3803 = vpack.c.b16 %v3755, %v3739
    %v3804 = vpack.c.b16 %v3756, %v3740
    %v3805 = vpack.c.b16 %v3757, %v3741
    %v3806 = vpack.c.b16 %v3758, %v3742
    %v3807 = vpack.c.b16 %v3759, %v3743
    %v3808 = vpack.c.b16 %v3760, %v3744
    %v3809 = vpack.c.b16 %v3761, %v3745
    %v3810 = vpack.c.b16 %v3762, %v3746
    %v3811 = vpack.c.b16 %v3763, %v3747
    %v3812 = vpack.c.b16 %v3780, %v3764
    %v3813 = vpack.c.b16 %v3781, %v3765
    %v3814 = vpack.c.b16 %v3782, %v3766
    %v3815 = vpack.c.b16 %v3783, %v3767
    %v3816 = vpack.c.b16 %v3784, %v3768
    %v3817 = vpack.c.b16 %v3785, %v3769
    %v3818 = vpack.c.b16 %v3786, %v3770
    %v3819 = vpack.c.b16 %v3787, %v3771
    %v3820 = vpack.c.b16 %v3788, %v3772
    %v3821 = vpack.c.b16 %v3789, %v3773
    %v3822 = vpack.c.b16 %v3790, %v3774
    %v3823 = vpack.c.b16 %v3791, %v3775
    %v3824 = vpack.c.b16 %v3792, %v3776
    %v3825 = vpack.c.b16 %v3793, %v3777
    %v3826 = vpack.c.b16 %v3794, %v3778
    %v3827 = vpack.c.b16 %v3795, %v3779
    %v3861 = vsel %vm169, %v3628, 0
    %3863 = vmatpush.bf16.msra.mxu0 0
    %3864 = vmatpush.bf16.msra.mxu0 0
    %3865 = vmatpush.bf16.msra.mxu0 0
    %3866 = vmatpush.bf16.msra.mxu0 0
    %3867 = vmatpush.bf16.msra.mxu0 0
    %3868 = vmatpush.bf16.msra.mxu0 0
    %3869 = vmatpush.bf16.msra.mxu0 %v3812
    %3870 = vmatpush.bf16.msra.mxu0 %v3796
    %3871 = vmatmul.bf16.gmra.mxu0 %v3861
    %v3872 = vpop.f32.mrf.mxu0
    %v3873 = vadd.f32 %v3668, %v3872
    %v3874 = vpop.f32.mrf.mxu0
    %3875 = vdwg.mxu0
    %3876 = vmatpush.bf16.msra.mxu0 0
    %3877 = vmatpush.bf16.msra.mxu0 0
    %3878 = vmatpush.bf16.msra.mxu0 0
    %3879 = vmatpush.bf16.msra.mxu0 0
    %3880 = vmatpush.bf16.msra.mxu0 0
    %3881 = vmatpush.bf16.msra.mxu0 0
    %3882 = vmatpush.bf16.msra.mxu0 %v3813
    %3883 = vmatpush.bf16.msra.mxu0 %v3797
    %3884 = vmatmul.bf16.gmra.mxu0 %v3861
    %v3885 = vpop.f32.mrf.mxu0
    %v3886 = vadd.f32 %v3669, %v3885
    %v3887 = vpop.f32.mrf.mxu0
    %3888 = vdwg.mxu0
    %3889 = vmatpush.bf16.msra.mxu0 0
    %3890 = vmatpush.bf16.msra.mxu0 0
    %3891 = vmatpush.bf16.msra.mxu0 0
    %3892 = vmatpush.bf16.msra.mxu0 0
    %3893 = vmatpush.bf16.msra.mxu0 0
    %3894 = vmatpush.bf16.msra.mxu0 0
    %3895 = vmatpush.bf16.msra.mxu0 %v3814
    %3896 = vmatpush.bf16.msra.mxu0 %v3798
    %3897 = vmatmul.bf16.gmra.mxu0 %v3861
    %v3898 = vpop.f32.mrf.mxu0
    %v3899 = vadd.f32 %v3670, %v3898
    %v3900 = vpop.f32.mrf.mxu0
    %3901 = vdwg.mxu0
    %3902 = vmatpush.bf16.msra.mxu0 0
    %3903 = vmatpush.bf16.msra.mxu0 0
    %3904 = vmatpush.bf16.msra.mxu0 0
    %3905 = vmatpush.bf16.msra.mxu0 0
    %3906 = vmatpush.bf16.msra.mxu0 0
    %3907 = vmatpush.bf16.msra.mxu0 0
    %3908 = vmatpush.bf16.msra.mxu0 %v3815
    %3909 = vmatpush.bf16.msra.mxu0 %v3799
    %3910 = vmatmul.bf16.gmra.mxu0 %v3861
    %v3911 = vpop.f32.mrf.mxu0
    %v3912 = vadd.f32 %v3671, %v3911
    %v3913 = vpop.f32.mrf.mxu0
    %3914 = vdwg.mxu0
    %3915 = vmatpush.bf16.msra.mxu0 0
    %3916 = vmatpush.bf16.msra.mxu0 0
    %3917 = vmatpush.bf16.msra.mxu0 0
    %3918 = vmatpush.bf16.msra.mxu0 0
    %3919 = vmatpush.bf16.msra.mxu0 0
    %3920 = vmatpush.bf16.msra.mxu0 0
    %3921 = vmatpush.bf16.msra.mxu0 %v3816
    %3922 = vmatpush.bf16.msra.mxu0 %v3800
    %3923 = vmatmul.bf16.gmra.mxu0 %v3861
    %v3924 = vpop.f32.mrf.mxu0
    %v3925 = vadd.f32 %v3672, %v3924
    %v3926 = vpop.f32.mrf.mxu0
    %3927 = vdwg.mxu0
    %3928 = vmatpush.bf16.msra.mxu0 0
    %3929 = vmatpush.bf16.msra.mxu0 0
    %3930 = vmatpush.bf16.msra.mxu0 0
    %3931 = vmatpush.bf16.msra.mxu0 0
    %3932 = vmatpush.bf16.msra.mxu0 0
    %3933 = vmatpush.bf16.msra.mxu0 0
    %3934 = vmatpush.bf16.msra.mxu0 %v3817
    %3935 = vmatpush.bf16.msra.mxu0 %v3801
    %3936 = vmatmul.bf16.gmra.mxu0 %v3861
    %v3937 = vpop.f32.mrf.mxu0
    %v3938 = vadd.f32 %v3673, %v3937
    %v3939 = vpop.f32.mrf.mxu0
    %3940 = vdwg.mxu0
    %3941 = vmatpush.bf16.msra.mxu0 0
    %3942 = vmatpush.bf16.msra.mxu0 0
    %3943 = vmatpush.bf16.msra.mxu0 0
    %3944 = vmatpush.bf16.msra.mxu0 0
    %3945 = vmatpush.bf16.msra.mxu0 0
    %3946 = vmatpush.bf16.msra.mxu0 0
    %3947 = vmatpush.bf16.msra.mxu0 %v3818
    %3948 = vmatpush.bf16.msra.mxu0 %v3802
    %3949 = vmatmul.bf16.gmra.mxu0 %v3861
    %v3950 = vpop.f32.mrf.mxu0
    %v3951 = vadd.f32 %v3674, %v3950
    %v3952 = vpop.f32.mrf.mxu0
    %3953 = vdwg.mxu0
    %3954 = vmatpush.bf16.msra.mxu0 0
    %3955 = vmatpush.bf16.msra.mxu0 0
    %3956 = vmatpush.bf16.msra.mxu0 0
    %3957 = vmatpush.bf16.msra.mxu0 0
    %3958 = vmatpush.bf16.msra.mxu0 0
    %3959 = vmatpush.bf16.msra.mxu0 0
    %3960 = vmatpush.bf16.msra.mxu0 %v3819
    %3961 = vmatpush.bf16.msra.mxu0 %v3803
    %3962 = vmatmul.bf16.gmra.mxu0 %v3861
    %v3963 = vpop.f32.mrf.mxu0
    %v3964 = vadd.f32 %v3675, %v3963
    %v3965 = vpop.f32.mrf.mxu0
    %3966 = vdwg.mxu0
    %3967 = vmatpush.bf16.msra.mxu0 0
    %3968 = vmatpush.bf16.msra.mxu0 0
    %3969 = vmatpush.bf16.msra.mxu0 0
    %3970 = vmatpush.bf16.msra.mxu0 0
    %3971 = vmatpush.bf16.msra.mxu0 0
    %3972 = vmatpush.bf16.msra.mxu0 0
    %3973 = vmatpush.bf16.msra.mxu0 %v3820
    %3974 = vmatpush.bf16.msra.mxu0 %v3804
    %3975 = vmatmul.bf16.gmra.mxu0 %v3861
    %v3976 = vpop.f32.mrf.mxu0
    %v3977 = vadd.f32 %v3676, %v3976
    %v3978 = vpop.f32.mrf.mxu0
    %3979 = vdwg.mxu0
    %3980 = vmatpush.bf16.msra.mxu0 0
    %3981 = vmatpush.bf16.msra.mxu0 0
    %3982 = vmatpush.bf16.msra.mxu0 0
    %3983 = vmatpush.bf16.msra.mxu0 0
    %3984 = vmatpush.bf16.msra.mxu0 0
    %3985 = vmatpush.bf16.msra.mxu0 0
    %3986 = vmatpush.bf16.msra.mxu0 %v3821
    %3987 = vmatpush.bf16.msra.mxu0 %v3805
    %3988 = vmatmul.bf16.gmra.mxu0 %v3861
    %v3989 = vpop.f32.mrf.mxu0
    %v3990 = vadd.f32 %v3677, %v3989
    %v3991 = vpop.f32.mrf.mxu0
    %3992 = vdwg.mxu0
    %3993 = vmatpush.bf16.msra.mxu0 0
    %3994 = vmatpush.bf16.msra.mxu0 0
    %3995 = vmatpush.bf16.msra.mxu0 0
    %3996 = vmatpush.bf16.msra.mxu0 0
    %3997 = vmatpush.bf16.msra.mxu0 0
    %3998 = vmatpush.bf16.msra.mxu0 0
    %3999 = vmatpush.bf16.msra.mxu0 %v3822
    %4000 = vmatpush.bf16.msra.mxu0 %v3806
    %4001 = vmatmul.bf16.gmra.mxu0 %v3861
    %v4002 = vpop.f32.mrf.mxu0
    %v4003 = vadd.f32 %v3678, %v4002
    %v4004 = vpop.f32.mrf.mxu0
    %4005 = vdwg.mxu0
    %4006 = vmatpush.bf16.msra.mxu0 0
    %4007 = vmatpush.bf16.msra.mxu0 0
    %4008 = vmatpush.bf16.msra.mxu0 0
    %4009 = vmatpush.bf16.msra.mxu0 0
    %4010 = vmatpush.bf16.msra.mxu0 0
    %4011 = vmatpush.bf16.msra.mxu0 0
    %4012 = vmatpush.bf16.msra.mxu0 %v3823
    %4013 = vmatpush.bf16.msra.mxu0 %v3807
    %4014 = vmatmul.bf16.gmra.mxu0 %v3861
    %v4015 = vpop.f32.mrf.mxu0
    %v4016 = vadd.f32 %v3679, %v4015
    %v4017 = vpop.f32.mrf.mxu0
    %4018 = vdwg.mxu0
    %4019 = vmatpush.bf16.msra.mxu0 0
    %4020 = vmatpush.bf16.msra.mxu0 0
    %4021 = vmatpush.bf16.msra.mxu0 0
    %4022 = vmatpush.bf16.msra.mxu0 0
    %4023 = vmatpush.bf16.msra.mxu0 0
    %4024 = vmatpush.bf16.msra.mxu0 0
    %4025 = vmatpush.bf16.msra.mxu0 %v3824
    %4026 = vmatpush.bf16.msra.mxu0 %v3808
    %4027 = vmatmul.bf16.gmra.mxu0 %v3861
    %v4028 = vpop.f32.mrf.mxu0
    %v4029 = vadd.f32 %v3680, %v4028
    %v4030 = vpop.f32.mrf.mxu0
    %4031 = vdwg.mxu0
    %4032 = vmatpush.bf16.msra.mxu0 0
    %4033 = vmatpush.bf16.msra.mxu0 0
    %4034 = vmatpush.bf16.msra.mxu0 0
    %4035 = vmatpush.bf16.msra.mxu0 0
    %4036 = vmatpush.bf16.msra.mxu0 0
    %4037 = vmatpush.bf16.msra.mxu0 0
    %4038 = vmatpush.bf16.msra.mxu0 %v3825
    %4039 = vmatpush.bf16.msra.mxu0 %v3809
    %4040 = vmatmul.bf16.gmra.mxu0 %v3861
    %v4041 = vpop.f32.mrf.mxu0
    %v4042 = vadd.f32 %v3681, %v4041
    %v4043 = vpop.f32.mrf.mxu0
    %4044 = vdwg.mxu0
    %4045 = vmatpush.bf16.msra.mxu0 0
    %4046 = vmatpush.bf16.msra.mxu0 0
    %4047 = vmatpush.bf16.msra.mxu0 0
    %4048 = vmatpush.bf16.msra.mxu0 0
    %4049 = vmatpush.bf16.msra.mxu0 0
    %4050 = vmatpush.bf16.msra.mxu0 0
    %4051 = vmatpush.bf16.msra.mxu0 %v3826
    %4052 = vmatpush.bf16.msra.mxu0 %v3810
    %4053 = vmatmul.bf16.gmra.mxu0 %v3861
    %v4054 = vpop.f32.mrf.mxu0
    %v4055 = vadd.f32 %v3682, %v4054
    %v4056 = vpop.f32.mrf.mxu0
    %4057 = vdwg.mxu0
    %4058 = vmatpush.bf16.msra.mxu0 0
    %4059 = vmatpush.bf16.msra.mxu0 0
    %4060 = vmatpush.bf16.msra.mxu0 0
    %4061 = vmatpush.bf16.msra.mxu0 0
    %4062 = vmatpush.bf16.msra.mxu0 0
    %4063 = vmatpush.bf16.msra.mxu0 0
    %4064 = vmatpush.bf16.msra.mxu0 %v3827
    %4065 = vmatpush.bf16.msra.mxu0 %v3811
    %4066 = vmatmul.bf16.gmra.mxu0 %v3861
    %v4067 = vpop.f32.mrf.mxu0
    %v4068 = vadd.f32 %v3683, %v4067
    %v4069 = vpop.f32.mrf.mxu0
    %4070 = vdwg.mxu0
    %v4071 = vmul.f32 %v3873, 0.5
    %v4072 = vmul.f32 %v3886, 0.5
    %v4073 = vmul.f32 %v3899, 0.5
    %v4074 = vmul.f32 %v3912, 0.5
    %v4075 = vmul.f32 %v3925, 0.5
    %v4076 = vmul.f32 %v3938, 0.5
    %v4077 = vmul.f32 %v3951, 0.5
    %v4078 = vmul.f32 %v3964, 0.5
    %v4079 = vmul.f32 %v3977, 0.5
    %v4080 = vmul.f32 %v3990, 0.5
    %v4081 = vmul.f32 %v4003, 0.5
    %v4082 = vmul.f32 %v4016, 0.5
    %v4083 = vmul.f32 %v4029, 0.5
    %v4084 = vmul.f32 %v4042, 0.5
    %v4085 = vmul.f32 %v4055, 0.5
    %v4086 = vmul.f32 %v4068, 0.5
    %v4087 = vmul.f32 %v3873, 0.70710677
    %v4088 = vmul.f32 %v3886, 0.70710677
    %v4089 = vmul.f32 %v3899, 0.70710677
    %v4090 = vmul.f32 %v3912, 0.70710677
    %v4091 = vmul.f32 %v3925, 0.70710677
    %v4092 = vmul.f32 %v3938, 0.70710677
    %v4093 = vmul.f32 %v3951, 0.70710677
    %v4094 = vmul.f32 %v3964, 0.70710677
    %v4095 = vmul.f32 %v3977, 0.70710677
    %v4096 = vmul.f32 %v3990, 0.70710677
    %v4097 = vmul.f32 %v4003, 0.70710677
    %v4098 = vmul.f32 %v4016, 0.70710677
    %v4099 = vmul.f32 %v4029, 0.70710677
    %v4100 = vmul.f32 %v4042, 0.70710677
    %v4101 = vmul.f32 %v4055, 0.70710677
    %v4102 = vmul.f32 %v4068, 0.70710677
    %v4103 = vmul.f32 %v4087, %v4087
    %v4104 = vmin.f32 16.0, %v4103
    %v4105 = vmul.f32 %v4104, 2.1237322e-06
    %v4106 = vadd.f32 %v4105, 0.00028619796
    %v4107 = vmul.f32 %v4104, %v4106
    %v4108 = vadd.f32 %v4107, 0.0036580483
    %v4109 = vmul.f32 %v4104, %v4108
    %v4110 = vadd.f32 %v4109, 0.05243302
    %v4111 = vmul.f32 %v4104, %v4110
    %v4112 = vadd.f32 %v4111, 0.18741608
    %v4113 = vmul.f32 %v4104, %v4112
    %v4114 = vadd.f32 %v4113, 1.1283791
    %v4115 = vmul.f32 %v4087, %v4114
    %v4116 = vmul.f32 %v4104, 3.8918573e-05
    %v4117 = vadd.f32 %v4116, 0.001143296
    %v4118 = vmul.f32 %v4104, %v4117
    %v4119 = vadd.f32 %v4118, 0.014752088
    %v4120 = vmul.f32 %v4104, %v4119
    %v4121 = vadd.f32 %v4120, 0.112945676
    %v4122 = vmul.f32 %v4104, %v4121
    %v4123 = vadd.f32 %v4122, 0.4994258
    %v4124 = vmul.f32 %v4104, %v4123
    %v4125 = vadd.f32 %v4124, 1.0
    %v4126 = vrcp.pop %v4125
    %v4127 = vmul.f32 %v4125, %v4126
    %v4128 = vsub.f32 1.0, %v4127
    %v4129 = vmul.f32 %v4126, %v4128
    %v4130 = vadd.f32 %v4126, %v4129
    %vm4131 = vweird.f32 %v4125
    %vm4132 = vweird.f32 %v4126
    %vm4133 = vmor %vm4131, %vm4132
    %v4134 = vsel %vm4133, %v4126, %v4130
    %v4135 = vand.u32 2147483647, %v4125
    %vm4136 = vcmp.eq.f32.partialorder %v4135, 8.507059e+37
    %v4137 = vand.u32 %v4125, 2147483648
    %v4138 = vor.u32 1.1754944e-38, %v4137
    %v4139 = vsel %vm4136, %v4138, %v4134
    %v4140 = vmul.f32 %v4115, %v4139
    %v4141 = vmin.f32 %v4140, 1.0
    %v4142 = vmax.f32 %v4141, -1.0
    %v4143 = vmul.f32 %v4088, %v4088
    %v4144 = vmin.f32 16.0, %v4143
    %v4145 = vmul.f32 %v4144, 2.1237322e-06
    %v4146 = vadd.f32 %v4145, 0.00028619796
    %v4147 = vmul.f32 %v4144, %v4146
    %v4148 = vadd.f32 %v4147, 0.0036580483
    %v4149 = vmul.f32 %v4144, %v4148
    %v4150 = vadd.f32 %v4149, 0.05243302
    %v4151 = vmul.f32 %v4144, %v4150
    %v4152 = vadd.f32 %v4151, 0.18741608
    %v4153 = vmul.f32 %v4144, %v4152
    %v4154 = vadd.f32 %v4153, 1.1283791
    %v4155 = vmul.f32 %v4088, %v4154
    %v4156 = vmul.f32 %v4144, 3.8918573e-05
    %v4157 = vadd.f32 %v4156, 0.001143296
    %v4158 = vmul.f32 %v4144, %v4157
    %v4159 = vadd.f32 %v4158, 0.014752088
    %v4160 = vmul.f32 %v4144, %v4159
    %v4161 = vadd.f32 %v4160, 0.112945676
    %v4162 = vmul.f32 %v4144, %v4161
    %v4163 = vadd.f32 %v4162, 0.4994258
    %v4164 = vmul.f32 %v4144, %v4163
    %v4165 = vadd.f32 %v4164, 1.0
    %v4166 = vrcp.pop %v4165
    %v4167 = vmul.f32 %v4165, %v4166
    %v4168 = vsub.f32 1.0, %v4167
    %v4169 = vmul.f32 %v4166, %v4168
    %v4170 = vadd.f32 %v4166, %v4169
    %vm4171 = vweird.f32 %v4165
    %vm4172 = vweird.f32 %v4166
    %vm4173 = vmor %vm4171, %vm4172
    %v4174 = vsel %vm4173, %v4166, %v4170
    %v4175 = vand.u32 2147483647, %v4165
    %vm4176 = vcmp.eq.f32.partialorder %v4175, 8.507059e+37
    %v4177 = vand.u32 %v4165, 2147483648
    %v4178 = vor.u32 1.1754944e-38, %v4177
    %v4179 = vsel %vm4176, %v4178, %v4174
    %v4180 = vmul.f32 %v4155, %v4179
    %v4181 = vmin.f32 %v4180, 1.0
    %v4182 = vmax.f32 %v4181, -1.0
    %v4183 = vmul.f32 %v4089, %v4089
    %v4184 = vmin.f32 16.0, %v4183
    %v4185 = vmul.f32 %v4184, 2.1237322e-06
    %v4186 = vadd.f32 %v4185, 0.00028619796
    %v4187 = vmul.f32 %v4184, %v4186
    %v4188 = vadd.f32 %v4187, 0.0036580483
    %v4189 = vmul.f32 %v4184, %v4188
    %v4190 = vadd.f32 %v4189, 0.05243302
    %v4191 = vmul.f32 %v4184, %v4190
    %v4192 = vadd.f32 %v4191, 0.18741608
    %v4193 = vmul.f32 %v4184, %v4192
    %v4194 = vadd.f32 %v4193, 1.1283791
    %v4195 = vmul.f32 %v4089, %v4194
    %v4196 = vmul.f32 %v4184, 3.8918573e-05
    %v4197 = vadd.f32 %v4196, 0.001143296
    %v4198 = vmul.f32 %v4184, %v4197
    %v4199 = vadd.f32 %v4198, 0.014752088
    %v4200 = vmul.f32 %v4184, %v4199
    %v4201 = vadd.f32 %v4200, 0.112945676
    %v4202 = vmul.f32 %v4184, %v4201
    %v4203 = vadd.f32 %v4202, 0.4994258
    %v4204 = vmul.f32 %v4184, %v4203
    %v4205 = vadd.f32 %v4204, 1.0
    %v4206 = vrcp.pop %v4205
    %v4207 = vmul.f32 %v4205, %v4206
    %v4208 = vsub.f32 1.0, %v4207
    %v4209 = vmul.f32 %v4206, %v4208
    %v4210 = vadd.f32 %v4206, %v4209
    %vm4211 = vweird.f32 %v4205
    %vm4212 = vweird.f32 %v4206
    %vm4213 = vmor %vm4211, %vm4212
    %v4214 = vsel %vm4213, %v4206, %v4210
    %v4215 = vand.u32 2147483647, %v4205
    %vm4216 = vcmp.eq.f32.partialorder %v4215, 8.507059e+37
    %v4217 = vand.u32 %v4205, 2147483648
    %v4218 = vor.u32 1.1754944e-38, %v4217
    %v4219 = vsel %vm4216, %v4218, %v4214
    %v4220 = vmul.f32 %v4195, %v4219
    %v4221 = vmin.f32 %v4220, 1.0
    %v4222 = vmax.f32 %v4221, -1.0
    %v4223 = vmul.f32 %v4090, %v4090
    %v4224 = vmin.f32 16.0, %v4223
    %v4225 = vmul.f32 %v4224, 2.1237322e-06
    %v4226 = vadd.f32 %v4225, 0.00028619796
    %v4227 = vmul.f32 %v4224, %v4226
    %v4228 = vadd.f32 %v4227, 0.0036580483
    %v4229 = vmul.f32 %v4224, %v4228
    %v4230 = vadd.f32 %v4229, 0.05243302
    %v4231 = vmul.f32 %v4224, %v4230
    %v4232 = vadd.f32 %v4231, 0.18741608
    %v4233 = vmul.f32 %v4224, %v4232
    %v4234 = vadd.f32 %v4233, 1.1283791
    %v4235 = vmul.f32 %v4090, %v4234
    %v4236 = vmul.f32 %v4224, 3.8918573e-05
    %v4237 = vadd.f32 %v4236, 0.001143296
    %v4238 = vmul.f32 %v4224, %v4237
    %v4239 = vadd.f32 %v4238, 0.014752088
    %v4240 = vmul.f32 %v4224, %v4239
    %v4241 = vadd.f32 %v4240, 0.112945676
    %v4242 = vmul.f32 %v4224, %v4241
    %v4243 = vadd.f32 %v4242, 0.4994258
    %v4244 = vmul.f32 %v4224, %v4243
    %v4245 = vadd.f32 %v4244, 1.0
    %v4246 = vrcp.pop %v4245
    %v4247 = vmul.f32 %v4245, %v4246
    %v4248 = vsub.f32 1.0, %v4247
    %v4249 = vmul.f32 %v4246, %v4248
    %v4250 = vadd.f32 %v4246, %v4249
    %vm4251 = vweird.f32 %v4245
    %vm4252 = vweird.f32 %v4246
    %vm4253 = vmor %vm4251, %vm4252
    %v4254 = vsel %vm4253, %v4246, %v4250
    %v4255 = vand.u32 2147483647, %v4245
    %vm4256 = vcmp.eq.f32.partialorder %v4255, 8.507059e+37
    %v4257 = vand.u32 %v4245, 2147483648
    %v4258 = vor.u32 1.1754944e-38, %v4257
    %v4259 = vsel %vm4256, %v4258, %v4254
    %v4260 = vmul.f32 %v4235, %v4259
    %v4261 = vmin.f32 %v4260, 1.0
    %v4262 = vmax.f32 %v4261, -1.0
    %v4263 = vmul.f32 %v4091, %v4091
    %v4264 = vmin.f32 16.0, %v4263
    %v4265 = vmul.f32 %v4264, 2.1237322e-06
    %v4266 = vadd.f32 %v4265, 0.00028619796
    %v4267 = vmul.f32 %v4264, %v4266
    %v4268 = vadd.f32 %v4267, 0.0036580483
    %v4269 = vmul.f32 %v4264, %v4268
    %v4270 = vadd.f32 %v4269, 0.05243302
    %v4271 = vmul.f32 %v4264, %v4270
    %v4272 = vadd.f32 %v4271, 0.18741608
    %v4273 = vmul.f32 %v4264, %v4272
    %v4274 = vadd.f32 %v4273, 1.1283791
    %v4275 = vmul.f32 %v4091, %v4274
    %v4276 = vmul.f32 %v4264, 3.8918573e-05
    %v4277 = vadd.f32 %v4276, 0.001143296
    %v4278 = vmul.f32 %v4264, %v4277
    %v4279 = vadd.f32 %v4278, 0.014752088
    %v4280 = vmul.f32 %v4264, %v4279
    %v4281 = vadd.f32 %v4280, 0.112945676
    %v4282 = vmul.f32 %v4264, %v4281
    %v4283 = vadd.f32 %v4282, 0.4994258
    %v4284 = vmul.f32 %v4264, %v4283
    %v4285 = vadd.f32 %v4284, 1.0
    %v4286 = vrcp.pop %v4285
    %v4287 = vmul.f32 %v4285, %v4286
    %v4288 = vsub.f32 1.0, %v4287
    %v4289 = vmul.f32 %v4286, %v4288
    %v4290 = vadd.f32 %v4286, %v4289
    %vm4291 = vweird.f32 %v4285
    %vm4292 = vweird.f32 %v4286
    %vm4293 = vmor %vm4291, %vm4292
    %v4294 = vsel %vm4293, %v4286, %v4290
    %v4295 = vand.u32 2147483647, %v4285
    %vm4296 = vcmp.eq.f32.partialorder %v4295, 8.507059e+37
    %v4297 = vand.u32 %v4285, 2147483648
    %v4298 = vor.u32 1.1754944e-38, %v4297
    %v4299 = vsel %vm4296, %v4298, %v4294
    %v4300 = vmul.f32 %v4275, %v4299
    %v4301 = vmin.f32 %v4300, 1.0
    %v4302 = vmax.f32 %v4301, -1.0
    %v4303 = vmul.f32 %v4092, %v4092
    %v4304 = vmin.f32 16.0, %v4303
    %v4305 = vmul.f32 %v4304, 2.1237322e-06
    %v4306 = vadd.f32 %v4305, 0.00028619796
    %v4307 = vmul.f32 %v4304, %v4306
    %v4308 = vadd.f32 %v4307, 0.0036580483
    %v4309 = vmul.f32 %v4304, %v4308
    %v4310 = vadd.f32 %v4309, 0.05243302
    %v4311 = vmul.f32 %v4304, %v4310
    %v4312 = vadd.f32 %v4311, 0.18741608
    %v4313 = vmul.f32 %v4304, %v4312
    %v4314 = vadd.f32 %v4313, 1.1283791
    %v4315 = vmul.f32 %v4092, %v4314
    %v4316 = vmul.f32 %v4304, 3.8918573e-05
    %v4317 = vadd.f32 %v4316, 0.001143296
    %v4318 = vmul.f32 %v4304, %v4317
    %v4319 = vadd.f32 %v4318, 0.014752088
    %v4320 = vmul.f32 %v4304, %v4319
    %v4321 = vadd.f32 %v4320, 0.112945676
    %v4322 = vmul.f32 %v4304, %v4321
    %v4323 = vadd.f32 %v4322, 0.4994258
    %v4324 = vmul.f32 %v4304, %v4323
    %v4325 = vadd.f32 %v4324, 1.0
    %v4326 = vrcp.pop %v4325
    %v4327 = vmul.f32 %v4325, %v4326
    %v4328 = vsub.f32 1.0, %v4327
    %v4329 = vmul.f32 %v4326, %v4328
    %v4330 = vadd.f32 %v4326, %v4329
    %vm4331 = vweird.f32 %v4325
    %vm4332 = vweird.f32 %v4326
    %vm4333 = vmor %vm4331, %vm4332
    %v4334 = vsel %vm4333, %v4326, %v4330
    %v4335 = vand.u32 2147483647, %v4325
    %vm4336 = vcmp.eq.f32.partialorder %v4335, 8.507059e+37
    %v4337 = vand.u32 %v4325, 2147483648
    %v4338 = vor.u32 1.1754944e-38, %v4337
    %v4339 = vsel %vm4336, %v4338, %v4334
    %v4340 = vmul.f32 %v4315, %v4339
    %v4341 = vmin.f32 %v4340, 1.0
    %v4342 = vmax.f32 %v4341, -1.0
    %v4343 = vmul.f32 %v4093, %v4093
    %v4344 = vmin.f32 16.0, %v4343
    %v4345 = vmul.f32 %v4344, 2.1237322e-06
    %v4346 = vadd.f32 %v4345, 0.00028619796
    %v4347 = vmul.f32 %v4344, %v4346
    %v4348 = vadd.f32 %v4347, 0.0036580483
    %v4349 = vmul.f32 %v4344, %v4348
    %v4350 = vadd.f32 %v4349, 0.05243302
    %v4351 = vmul.f32 %v4344, %v4350
    %v4352 = vadd.f32 %v4351, 0.18741608
    %v4353 = vmul.f32 %v4344, %v4352
    %v4354 = vadd.f32 %v4353, 1.1283791
    %v4355 = vmul.f32 %v4093, %v4354
    %v4356 = vmul.f32 %v4344, 3.8918573e-05
    %v4357 = vadd.f32 %v4356, 0.001143296
    %v4358 = vmul.f32 %v4344, %v4357
    %v4359 = vadd.f32 %v4358, 0.014752088
    %v4360 = vmul.f32 %v4344, %v4359
    %v4361 = vadd.f32 %v4360, 0.112945676
    %v4362 = vmul.f32 %v4344, %v4361
    %v4363 = vadd.f32 %v4362, 0.4994258
    %v4364 = vmul.f32 %v4344, %v4363
    %v4365 = vadd.f32 %v4364, 1.0
    %v4366 = vrcp.pop %v4365
    %v4367 = vmul.f32 %v4365, %v4366
    %v4368 = vsub.f32 1.0, %v4367
    %v4369 = vmul.f32 %v4366, %v4368
    %v4370 = vadd.f32 %v4366, %v4369
    %vm4371 = vweird.f32 %v4365
    %vm4372 = vweird.f32 %v4366
    %vm4373 = vmor %vm4371, %vm4372
    %v4374 = vsel %vm4373, %v4366, %v4370
    %v4375 = vand.u32 2147483647, %v4365
    %vm4376 = vcmp.eq.f32.partialorder %v4375, 8.507059e+37
    %v4377 = vand.u32 %v4365, 2147483648
    %v4378 = vor.u32 1.1754944e-38, %v4377
    %v4379 = vsel %vm4376, %v4378, %v4374
    %v4380 = vmul.f32 %v4355, %v4379
    %v4381 = vmin.f32 %v4380, 1.0
    %v4382 = vmax.f32 %v4381, -1.0
    %v4383 = vmul.f32 %v4094, %v4094
    %v4384 = vmin.f32 16.0, %v4383
    %v4385 = vmul.f32 %v4384, 2.1237322e-06
    %v4386 = vadd.f32 %v4385, 0.00028619796
    %v4387 = vmul.f32 %v4384, %v4386
    %v4388 = vadd.f32 %v4387, 0.0036580483
    %v4389 = vmul.f32 %v4384, %v4388
    %v4390 = vadd.f32 %v4389, 0.05243302
    %v4391 = vmul.f32 %v4384, %v4390
    %v4392 = vadd.f32 %v4391, 0.18741608
    %v4393 = vmul.f32 %v4384, %v4392
    %v4394 = vadd.f32 %v4393, 1.1283791
    %v4395 = vmul.f32 %v4094, %v4394
    %v4396 = vmul.f32 %v4384, 3.8918573e-05
    %v4397 = vadd.f32 %v4396, 0.001143296
    %v4398 = vmul.f32 %v4384, %v4397
    %v4399 = vadd.f32 %v4398, 0.014752088
    %v4400 = vmul.f32 %v4384, %v4399
    %v4401 = vadd.f32 %v4400, 0.112945676
    %v4402 = vmul.f32 %v4384, %v4401
    %v4403 = vadd.f32 %v4402, 0.4994258
    %v4404 = vmul.f32 %v4384, %v4403
    %v4405 = vadd.f32 %v4404, 1.0
    %v4406 = vrcp.pop %v4405
    %v4407 = vmul.f32 %v4405, %v4406
    %v4408 = vsub.f32 1.0, %v4407
    %v4409 = vmul.f32 %v4406, %v4408
    %v4410 = vadd.f32 %v4406, %v4409
    %vm4411 = vweird.f32 %v4405
    %vm4412 = vweird.f32 %v4406
    %vm4413 = vmor %vm4411, %vm4412
    %v4414 = vsel %vm4413, %v4406, %v4410
    %v4415 = vand.u32 2147483647, %v4405
    %vm4416 = vcmp.eq.f32.partialorder %v4415, 8.507059e+37
    %v4417 = vand.u32 %v4405, 2147483648
    %v4418 = vor.u32 1.1754944e-38, %v4417
    %v4419 = vsel %vm4416, %v4418, %v4414
    %v4420 = vmul.f32 %v4395, %v4419
    %v4421 = vmin.f32 %v4420, 1.0
    %v4422 = vmax.f32 %v4421, -1.0
    %v4423 = vmul.f32 %v4095, %v4095
    %v4424 = vmin.f32 16.0, %v4423
    %v4425 = vmul.f32 %v4424, 2.1237322e-06
    %v4426 = vadd.f32 %v4425, 0.00028619796
    %v4427 = vmul.f32 %v4424, %v4426
    %v4428 = vadd.f32 %v4427, 0.0036580483
    %v4429 = vmul.f32 %v4424, %v4428
    %v4430 = vadd.f32 %v4429, 0.05243302
    %v4431 = vmul.f32 %v4424, %v4430
    %v4432 = vadd.f32 %v4431, 0.18741608
    %v4433 = vmul.f32 %v4424, %v4432
    %v4434 = vadd.f32 %v4433, 1.1283791
    %v4435 = vmul.f32 %v4095, %v4434
    %v4436 = vmul.f32 %v4424, 3.8918573e-05
    %v4437 = vadd.f32 %v4436, 0.001143296
    %v4438 = vmul.f32 %v4424, %v4437
    %v4439 = vadd.f32 %v4438, 0.014752088
    %v4440 = vmul.f32 %v4424, %v4439
    %v4441 = vadd.f32 %v4440, 0.112945676
    %v4442 = vmul.f32 %v4424, %v4441
    %v4443 = vadd.f32 %v4442, 0.4994258
    %v4444 = vmul.f32 %v4424, %v4443
    %v4445 = vadd.f32 %v4444, 1.0
    %v4446 = vrcp.pop %v4445
    %v4447 = vmul.f32 %v4445, %v4446
    %v4448 = vsub.f32 1.0, %v4447
    %v4449 = vmul.f32 %v4446, %v4448
    %v4450 = vadd.f32 %v4446, %v4449
    %vm4451 = vweird.f32 %v4445
    %vm4452 = vweird.f32 %v4446
    %vm4453 = vmor %vm4451, %vm4452
    %v4454 = vsel %vm4453, %v4446, %v4450
    %v4455 = vand.u32 2147483647, %v4445
    %vm4456 = vcmp.eq.f32.partialorder %v4455, 8.507059e+37
    %v4457 = vand.u32 %v4445, 2147483648
    %v4458 = vor.u32 1.1754944e-38, %v4457
    %v4459 = vsel %vm4456, %v4458, %v4454
    %v4460 = vmul.f32 %v4435, %v4459
    %v4461 = vmin.f32 %v4460, 1.0
    %v4462 = vmax.f32 %v4461, -1.0
    %v4463 = vmul.f32 %v4096, %v4096
    %v4464 = vmin.f32 16.0, %v4463
    %v4465 = vmul.f32 %v4464, 2.1237322e-06
    %v4466 = vadd.f32 %v4465, 0.00028619796
    %v4467 = vmul.f32 %v4464, %v4466
    %v4468 = vadd.f32 %v4467, 0.0036580483
    %v4469 = vmul.f32 %v4464, %v4468
    %v4470 = vadd.f32 %v4469, 0.05243302
    %v4471 = vmul.f32 %v4464, %v4470
    %v4472 = vadd.f32 %v4471, 0.18741608
    %v4473 = vmul.f32 %v4464, %v4472
    %v4474 = vadd.f32 %v4473, 1.1283791
    %v4475 = vmul.f32 %v4096, %v4474
    %v4476 = vmul.f32 %v4464, 3.8918573e-05
    %v4477 = vadd.f32 %v4476, 0.001143296
    %v4478 = vmul.f32 %v4464, %v4477
    %v4479 = vadd.f32 %v4478, 0.014752088
    %v4480 = vmul.f32 %v4464, %v4479
    %v4481 = vadd.f32 %v4480, 0.112945676
    %v4482 = vmul.f32 %v4464, %v4481
    %v4483 = vadd.f32 %v4482, 0.4994258
    %v4484 = vmul.f32 %v4464, %v4483
    %v4485 = vadd.f32 %v4484, 1.0
    %v4486 = vrcp.pop %v4485
    %v4487 = vmul.f32 %v4485, %v4486
    %v4488 = vsub.f32 1.0, %v4487
    %v4489 = vmul.f32 %v4486, %v4488
    %v4490 = vadd.f32 %v4486, %v4489
    %vm4491 = vweird.f32 %v4485
    %vm4492 = vweird.f32 %v4486
    %vm4493 = vmor %vm4491, %vm4492
    %v4494 = vsel %vm4493, %v4486, %v4490
    %v4495 = vand.u32 2147483647, %v4485
    %vm4496 = vcmp.eq.f32.partialorder %v4495, 8.507059e+37
    %v4497 = vand.u32 %v4485, 2147483648
    %v4498 = vor.u32 1.1754944e-38, %v4497
    %v4499 = vsel %vm4496, %v4498, %v4494
    %v4500 = vmul.f32 %v4475, %v4499
    %v4501 = vmin.f32 %v4500, 1.0
    %v4502 = vmax.f32 %v4501, -1.0
    %v4503 = vmul.f32 %v4097, %v4097
    %v4504 = vmin.f32 16.0, %v4503
    %v4505 = vmul.f32 %v4504, 2.1237322e-06
    %v4506 = vadd.f32 %v4505, 0.00028619796
    %v4507 = vmul.f32 %v4504, %v4506
    %v4508 = vadd.f32 %v4507, 0.0036580483
    %v4509 = vmul.f32 %v4504, %v4508
    %v4510 = vadd.f32 %v4509, 0.05243302
    %v4511 = vmul.f32 %v4504, %v4510
    %v4512 = vadd.f32 %v4511, 0.18741608
    %v4513 = vmul.f32 %v4504, %v4512
    %v4514 = vadd.f32 %v4513, 1.1283791
    %v4515 = vmul.f32 %v4097, %v4514
    %v4516 = vmul.f32 %v4504, 3.8918573e-05
    %v4517 = vadd.f32 %v4516, 0.001143296
    %v4518 = vmul.f32 %v4504, %v4517
    %v4519 = vadd.f32 %v4518, 0.014752088
    %v4520 = vmul.f32 %v4504, %v4519
    %v4521 = vadd.f32 %v4520, 0.112945676
    %v4522 = vmul.f32 %v4504, %v4521
    %v4523 = vadd.f32 %v4522, 0.4994258
    %v4524 = vmul.f32 %v4504, %v4523
    %v4525 = vadd.f32 %v4524, 1.0
    %v4526 = vrcp.pop %v4525
    %v4527 = vmul.f32 %v4525, %v4526
    %v4528 = vsub.f32 1.0, %v4527
    %v4529 = vmul.f32 %v4526, %v4528
    %v4530 = vadd.f32 %v4526, %v4529
    %vm4531 = vweird.f32 %v4525
    %vm4532 = vweird.f32 %v4526
    %vm4533 = vmor %vm4531, %vm4532
    %v4534 = vsel %vm4533, %v4526, %v4530
    %v4535 = vand.u32 2147483647, %v4525
    %vm4536 = vcmp.eq.f32.partialorder %v4535, 8.507059e+37
    %v4537 = vand.u32 %v4525, 2147483648
    %v4538 = vor.u32 1.1754944e-38, %v4537
    %v4539 = vsel %vm4536, %v4538, %v4534
    %v4540 = vmul.f32 %v4515, %v4539
    %v4541 = vmin.f32 %v4540, 1.0
    %v4542 = vmax.f32 %v4541, -1.0
    %v4543 = vmul.f32 %v4098, %v4098
    %v4544 = vmin.f32 16.0, %v4543
    %v4545 = vmul.f32 %v4544, 2.1237322e-06
    %v4546 = vadd.f32 %v4545, 0.00028619796
    %v4547 = vmul.f32 %v4544, %v4546
    %v4548 = vadd.f32 %v4547, 0.0036580483
    %v4549 = vmul.f32 %v4544, %v4548
    %v4550 = vadd.f32 %v4549, 0.05243302
    %v4551 = vmul.f32 %v4544, %v4550
    %v4552 = vadd.f32 %v4551, 0.18741608
    %v4553 = vmul.f32 %v4544, %v4552
    %v4554 = vadd.f32 %v4553, 1.1283791
    %v4555 = vmul.f32 %v4098, %v4554
    %v4556 = vmul.f32 %v4544, 3.8918573e-05
    %v4557 = vadd.f32 %v4556, 0.001143296
    %v4558 = vmul.f32 %v4544, %v4557
    %v4559 = vadd.f32 %v4558, 0.014752088
    %v4560 = vmul.f32 %v4544, %v4559
    %v4561 = vadd.f32 %v4560, 0.112945676
    %v4562 = vmul.f32 %v4544, %v4561
    %v4563 = vadd.f32 %v4562, 0.4994258
    %v4564 = vmul.f32 %v4544, %v4563
    %v4565 = vadd.f32 %v4564, 1.0
    %v4566 = vrcp.pop %v4565
    %v4567 = vmul.f32 %v4565, %v4566
    %v4568 = vsub.f32 1.0, %v4567
    %v4569 = vmul.f32 %v4566, %v4568
    %v4570 = vadd.f32 %v4566, %v4569
    %vm4571 = vweird.f32 %v4565
    %vm4572 = vweird.f32 %v4566
    %vm4573 = vmor %vm4571, %vm4572
    %v4574 = vsel %vm4573, %v4566, %v4570
    %v4575 = vand.u32 2147483647, %v4565
    %vm4576 = vcmp.eq.f32.partialorder %v4575, 8.507059e+37
    %v4577 = vand.u32 %v4565, 2147483648
    %v4578 = vor.u32 1.1754944e-38, %v4577
    %v4579 = vsel %vm4576, %v4578, %v4574
    %v4580 = vmul.f32 %v4555, %v4579
    %v4581 = vmin.f32 %v4580, 1.0
    %v4582 = vmax.f32 %v4581, -1.0
    %v4583 = vmul.f32 %v4099, %v4099
    %v4584 = vmin.f32 16.0, %v4583
    %v4585 = vmul.f32 %v4584, 2.1237322e-06
    %v4586 = vadd.f32 %v4585, 0.00028619796
    %v4587 = vmul.f32 %v4584, %v4586
    %v4588 = vadd.f32 %v4587, 0.0036580483
    %v4589 = vmul.f32 %v4584, %v4588
    %v4590 = vadd.f32 %v4589, 0.05243302
    %v4591 = vmul.f32 %v4584, %v4590
    %v4592 = vadd.f32 %v4591, 0.18741608
    %v4593 = vmul.f32 %v4584, %v4592
    %v4594 = vadd.f32 %v4593, 1.1283791
    %v4595 = vmul.f32 %v4099, %v4594
    %v4596 = vmul.f32 %v4584, 3.8918573e-05
    %v4597 = vadd.f32 %v4596, 0.001143296
    %v4598 = vmul.f32 %v4584, %v4597
    %v4599 = vadd.f32 %v4598, 0.014752088
    %v4600 = vmul.f32 %v4584, %v4599
    %v4601 = vadd.f32 %v4600, 0.112945676
    %v4602 = vmul.f32 %v4584, %v4601
    %v4603 = vadd.f32 %v4602, 0.4994258
    %v4604 = vmul.f32 %v4584, %v4603
    %v4605 = vadd.f32 %v4604, 1.0
    %v4606 = vrcp.pop %v4605
    %v4607 = vmul.f32 %v4605, %v4606
    %v4608 = vsub.f32 1.0, %v4607
    %v4609 = vmul.f32 %v4606, %v4608
    %v4610 = vadd.f32 %v4606, %v4609
    %vm4611 = vweird.f32 %v4605
    %vm4612 = vweird.f32 %v4606
    %vm4613 = vmor %vm4611, %vm4612
    %v4614 = vsel %vm4613, %v4606, %v4610
    %v4615 = vand.u32 2147483647, %v4605
    %vm4616 = vcmp.eq.f32.partialorder %v4615, 8.507059e+37
    %v4617 = vand.u32 %v4605, 2147483648
    %v4618 = vor.u32 1.1754944e-38, %v4617
    %v4619 = vsel %vm4616, %v4618, %v4614
    %v4620 = vmul.f32 %v4595, %v4619
    %v4621 = vmin.f32 %v4620, 1.0
    %v4622 = vmax.f32 %v4621, -1.0
    %v4623 = vmul.f32 %v4100, %v4100
    %v4624 = vmin.f32 16.0, %v4623
    %v4625 = vmul.f32 %v4624, 2.1237322e-06
    %v4626 = vadd.f32 %v4625, 0.00028619796
    %v4627 = vmul.f32 %v4624, %v4626
    %v4628 = vadd.f32 %v4627, 0.0036580483
    %v4629 = vmul.f32 %v4624, %v4628
    %v4630 = vadd.f32 %v4629, 0.05243302
    %v4631 = vmul.f32 %v4624, %v4630
    %v4632 = vadd.f32 %v4631, 0.18741608
    %v4633 = vmul.f32 %v4624, %v4632
    %v4634 = vadd.f32 %v4633, 1.1283791
    %v4635 = vmul.f32 %v4100, %v4634
    %v4636 = vmul.f32 %v4624, 3.8918573e-05
    %v4637 = vadd.f32 %v4636, 0.001143296
    %v4638 = vmul.f32 %v4624, %v4637
    %v4639 = vadd.f32 %v4638, 0.014752088
    %v4640 = vmul.f32 %v4624, %v4639
    %v4641 = vadd.f32 %v4640, 0.112945676
    %v4642 = vmul.f32 %v4624, %v4641
    %v4643 = vadd.f32 %v4642, 0.4994258
    %v4644 = vmul.f32 %v4624, %v4643
    %v4645 = vadd.f32 %v4644, 1.0
    %v4646 = vrcp.pop %v4645
    %v4647 = vmul.f32 %v4645, %v4646
    %v4648 = vsub.f32 1.0, %v4647
    %v4649 = vmul.f32 %v4646, %v4648
    %v4650 = vadd.f32 %v4646, %v4649
    %vm4651 = vweird.f32 %v4645
    %vm4652 = vweird.f32 %v4646
    %vm4653 = vmor %vm4651, %vm4652
    %v4654 = vsel %vm4653, %v4646, %v4650
    %v4655 = vand.u32 2147483647, %v4645
    %vm4656 = vcmp.eq.f32.partialorder %v4655, 8.507059e+37
    %v4657 = vand.u32 %v4645, 2147483648
    %v4658 = vor.u32 1.1754944e-38, %v4657
    %v4659 = vsel %vm4656, %v4658, %v4654
    %v4660 = vmul.f32 %v4635, %v4659
    %v4661 = vmin.f32 %v4660, 1.0
    %v4662 = vmax.f32 %v4661, -1.0
    %v4663 = vmul.f32 %v4101, %v4101
    %v4664 = vmin.f32 16.0, %v4663
    %v4665 = vmul.f32 %v4664, 2.1237322e-06
    %v4666 = vadd.f32 %v4665, 0.00028619796
    %v4667 = vmul.f32 %v4664, %v4666
    %v4668 = vadd.f32 %v4667, 0.0036580483
    %v4669 = vmul.f32 %v4664, %v4668
    %v4670 = vadd.f32 %v4669, 0.05243302
    %v4671 = vmul.f32 %v4664, %v4670
    %v4672 = vadd.f32 %v4671, 0.18741608
    %v4673 = vmul.f32 %v4664, %v4672
    %v4674 = vadd.f32 %v4673, 1.1283791
    %v4675 = vmul.f32 %v4101, %v4674
    %v4676 = vmul.f32 %v4664, 3.8918573e-05
    %v4677 = vadd.f32 %v4676, 0.001143296
    %v4678 = vmul.f32 %v4664, %v4677
    %v4679 = vadd.f32 %v4678, 0.014752088
    %v4680 = vmul.f32 %v4664, %v4679
    %v4681 = vadd.f32 %v4680, 0.112945676
    %v4682 = vmul.f32 %v4664, %v4681
    %v4683 = vadd.f32 %v4682, 0.4994258
    %v4684 = vmul.f32 %v4664, %v4683
    %v4685 = vadd.f32 %v4684, 1.0
    %v4686 = vrcp.pop %v4685
    %v4687 = vmul.f32 %v4685, %v4686
    %v4688 = vsub.f32 1.0, %v4687
    %v4689 = vmul.f32 %v4686, %v4688
    %v4690 = vadd.f32 %v4686, %v4689
    %vm4691 = vweird.f32 %v4685
    %vm4692 = vweird.f32 %v4686
    %vm4693 = vmor %vm4691, %vm4692
    %v4694 = vsel %vm4693, %v4686, %v4690
    %v4695 = vand.u32 2147483647, %v4685
    %vm4696 = vcmp.eq.f32.partialorder %v4695, 8.507059e+37
    %v4697 = vand.u32 %v4685, 2147483648
    %v4698 = vor.u32 1.1754944e-38, %v4697
    %v4699 = vsel %vm4696, %v4698, %v4694
    %v4700 = vmul.f32 %v4675, %v4699
    %v4701 = vmin.f32 %v4700, 1.0
    %v4702 = vmax.f32 %v4701, -1.0
    %v4703 = vmul.f32 %v4102, %v4102
    %v4704 = vmin.f32 16.0, %v4703
    %v4705 = vmul.f32 %v4704, 2.1237322e-06
    %v4706 = vadd.f32 %v4705, 0.00028619796
    %v4707 = vmul.f32 %v4704, %v4706
    %v4708 = vadd.f32 %v4707, 0.0036580483
    %v4709 = vmul.f32 %v4704, %v4708
    %v4710 = vadd.f32 %v4709, 0.05243302
    %v4711 = vmul.f32 %v4704, %v4710
    %v4712 = vadd.f32 %v4711, 0.18741608
    %v4713 = vmul.f32 %v4704, %v4712
    %v4714 = vadd.f32 %v4713, 1.1283791
    %v4715 = vmul.f32 %v4102, %v4714
    %v4716 = vmul.f32 %v4704, 3.8918573e-05
    %v4717 = vadd.f32 %v4716, 0.001143296
    %v4718 = vmul.f32 %v4704, %v4717
    %v4719 = vadd.f32 %v4718, 0.014752088
    %v4720 = vmul.f32 %v4704, %v4719
    %v4721 = vadd.f32 %v4720, 0.112945676
    %v4722 = vmul.f32 %v4704, %v4721
    %v4723 = vadd.f32 %v4722, 0.4994258
    %v4724 = vmul.f32 %v4704, %v4723
    %v4725 = vadd.f32 %v4724, 1.0
    %v4726 = vrcp.pop %v4725
    %v4727 = vmul.f32 %v4725, %v4726
    %v4728 = vsub.f32 1.0, %v4727
    %v4729 = vmul.f32 %v4726, %v4728
    %v4730 = vadd.f32 %v4726, %v4729
    %vm4731 = vweird.f32 %v4725
    %vm4732 = vweird.f32 %v4726
    %vm4733 = vmor %vm4731, %vm4732
    %v4734 = vsel %vm4733, %v4726, %v4730
    %v4735 = vand.u32 2147483647, %v4725
    %vm4736 = vcmp.eq.f32.partialorder %v4735, 8.507059e+37
    %v4737 = vand.u32 %v4725, 2147483648
    %v4738 = vor.u32 1.1754944e-38, %v4737
    %v4739 = vsel %vm4736, %v4738, %v4734
    %v4740 = vmul.f32 %v4715, %v4739
    %v4741 = vmin.f32 %v4740, 1.0
    %v4742 = vmax.f32 %v4741, -1.0
    %v4743 = vadd.f32 %v4142, 1.0
    %v4744 = vadd.f32 %v4182, 1.0
    %v4745 = vadd.f32 %v4222, 1.0
    %v4746 = vadd.f32 %v4262, 1.0
    %v4747 = vadd.f32 %v4302, 1.0
    %v4748 = vadd.f32 %v4342, 1.0
    %v4749 = vadd.f32 %v4382, 1.0
    %v4750 = vadd.f32 %v4422, 1.0
    %v4751 = vadd.f32 %v4462, 1.0
    %v4752 = vadd.f32 %v4502, 1.0
    %v4753 = vadd.f32 %v4542, 1.0
    %v4754 = vadd.f32 %v4582, 1.0
    %v4755 = vadd.f32 %v4622, 1.0
    %v4756 = vadd.f32 %v4662, 1.0
    %v4757 = vadd.f32 %v4702, 1.0
    %v4758 = vadd.f32 %v4742, 1.0
    %v4759 = vmul.f32 %v4071, %v4743
    %v4760 = vmul.f32 %v4072, %v4744
    %v4761 = vmul.f32 %v4073, %v4745
    %v4762 = vmul.f32 %v4074, %v4746
    %v4763 = vmul.f32 %v4075, %v4747
    %v4764 = vmul.f32 %v4076, %v4748
    %v4765 = vmul.f32 %v4077, %v4749
    %v4766 = vmul.f32 %v4078, %v4750
    %v4767 = vmul.f32 %v4079, %v4751
    %v4768 = vmul.f32 %v4080, %v4752
    %v4769 = vmul.f32 %v4081, %v4753
    %v4770 = vmul.f32 %v4082, %v4754
    %v4771 = vmul.f32 %v4083, %v4755
    %v4772 = vmul.f32 %v4084, %v4756
    %v4773 = vmul.f32 %v4085, %v4757
    %v4774 = vmul.f32 %v4086, %v4758
    %v4775 = vpack.c.bf16 %v4759, %v4759
    %v4776 = vpack.c.bf16 %v4760, %v4760
    %v4777 = vpack.c.bf16 %v4761, %v4761
    %v4778 = vpack.c.bf16 %v4762, %v4762
    %v4779 = vpack.c.bf16 %v4763, %v4763
    %v4780 = vpack.c.bf16 %v4764, %v4764
    %v4781 = vpack.c.bf16 %v4765, %v4765
    %v4782 = vpack.c.bf16 %v4766, %v4766
    %v4783 = vpack.c.bf16 %v4767, %v4767
    %v4784 = vpack.c.bf16 %v4768, %v4768
    %v4785 = vpack.c.bf16 %v4769, %v4769
    %v4786 = vpack.c.bf16 %v4770, %v4770
    %v4787 = vpack.c.bf16 %v4771, %v4771
    %v4788 = vpack.c.bf16 %v4772, %v4772
    %v4789 = vpack.c.bf16 %v4773, %v4773
    %v4790 = vpack.c.bf16 %v4774, %v4774
    %s4791 = scalar_lea.vmem [#allocation8], 512
    %v4792 = vld [vmem:[%s4791] sm:$0xff]
    %v4793 = vld [vmem:[%s4791 + $0x8] sm:$0xff]
    %v4794 = vld [vmem:[%s4791 + $0x10] sm:$0xff]
    %v4795 = vld [vmem:[%s4791 + $0x18] sm:$0xff]
    %v4796 = vld [vmem:[%s4791 + $0x20] sm:$0xff]
    %v4797 = vld [vmem:[%s4791 + $0x28] sm:$0xff]
    %v4798 = vld [vmem:[%s4791 + $0x30] sm:$0xff]
    %v4799 = vld [vmem:[%s4791 + $0x38] sm:$0xff]
    %v4800 = vld [vmem:[%s4791 + $0x40] sm:$0xff]
    %v4801 = vld [vmem:[%s4791 + $0x48] sm:$0xff]
    %v4802 = vld [vmem:[%s4791 + $0x50] sm:$0xff]
    %v4803 = vld [vmem:[%s4791 + $0x58] sm:$0xff]
    %v4804 = vld [vmem:[%s4791 + $0x60] sm:$0xff]
    %v4805 = vld [vmem:[%s4791 + $0x68] sm:$0xff]
    %v4806 = vld [vmem:[%s4791 + $0x70] sm:$0xff]
    %v4807 = vld [vmem:[%s4791 + $0x78] sm:$0xff]
    %v4808 = vld [vmem:[%s4791 + $0x80] sm:$0xff]
    %v4809 = vld [vmem:[%s4791 + $0x88] sm:$0xff]
    %v4810 = vld [vmem:[%s4791 + $0x90] sm:$0xff]
    %v4811 = vld [vmem:[%s4791 + $0x98] sm:$0xff]
    %v4812 = vld [vmem:[%s4791 + $0xa0] sm:$0xff]
    %v4813 = vld [vmem:[%s4791 + $0xa8] sm:$0xff]
    %v4814 = vld [vmem:[%s4791 + $0xb0] sm:$0xff]
    %v4815 = vld [vmem:[%s4791 + $0xb8] sm:$0xff]
    %v4816 = vld [vmem:[%s4791 + $0xc0] sm:$0xff]
    %v4817 = vld [vmem:[%s4791 + $0xc8] sm:$0xff]
    %v4818 = vld [vmem:[%s4791 + $0xd0] sm:$0xff]
    %v4819 = vld [vmem:[%s4791 + $0xd8] sm:$0xff]
    %v4820 = vld [vmem:[%s4791 + $0xe0] sm:$0xff]
    %v4821 = vld [vmem:[%s4791 + $0xe8] sm:$0xff]
    %v4822 = vld [vmem:[%s4791 + $0xf0] sm:$0xff]
    %v4823 = vld [vmem:[%s4791 + $0xf8] sm:$0xff]
    %v4824 = vperm.slane %v3570, 3
    %v4857 = vunpack.c.l.b16 %v4792
    %v4858 = vunpack.c.h.b16 %v4792
    %v4859 = vunpack.c.l.b16 %v4793
    %v4860 = vunpack.c.h.b16 %v4793
    %v4861 = vunpack.c.l.b16 %v4794
    %v4862 = vunpack.c.h.b16 %v4794
    %v4863 = vunpack.c.l.b16 %v4795
    %v4864 = vunpack.c.h.b16 %v4795
    %v4865 = vunpack.c.l.b16 %v4796
    %v4866 = vunpack.c.h.b16 %v4796
    %v4867 = vunpack.c.l.b16 %v4797
    %v4868 = vunpack.c.h.b16 %v4797
    %v4869 = vunpack.c.l.b16 %v4798
    %v4870 = vunpack.c.h.b16 %v4798
    %v4871 = vunpack.c.l.b16 %v4799
    %v4872 = vunpack.c.h.b16 %v4799
    %v4873 = vunpack.c.l.b16 %v4800
    %v4874 = vunpack.c.h.b16 %v4800
    %v4875 = vunpack.c.l.b16 %v4801
    %v4876 = vunpack.c.h.b16 %v4801
    %v4877 = vunpack.c.l.b16 %v4802
    %v4878 = vunpack.c.h.b16 %v4802
    %v4879 = vunpack.c.l.b16 %v4803
    %v4880 = vunpack.c.h.b16 %v4803
    %v4881 = vunpack.c.l.b16 %v4804
    %v4882 = vunpack.c.h.b16 %v4804
    %v4883 = vunpack.c.l.b16 %v4805
    %v4884 = vunpack.c.h.b16 %v4805
    %v4885 = vunpack.c.l.b16 %v4806
    %v4886 = vunpack.c.h.b16 %v4806
    %v4887 = vunpack.c.l.b16 %v4807
    %v4888 = vunpack.c.h.b16 %v4807
    %v4889 = vunpack.c.l.b16 %v4808
    %v4890 = vunpack.c.h.b16 %v4808
    %v4891 = vunpack.c.l.b16 %v4809
    %v4892 = vunpack.c.h.b16 %v4809
    %v4893 = vunpack.c.l.b16 %v4810
    %v4894 = vunpack.c.h.b16 %v4810
    %v4895 = vunpack.c.l.b16 %v4811
    %v4896 = vunpack.c.h.b16 %v4811
    %v4897 = vunpack.c.l.b16 %v4812
    %v4898 = vunpack.c.h.b16 %v4812
    %v4899 = vunpack.c.l.b16 %v4813
    %v4900 = vunpack.c.h.b16 %v4813
    %v4901 = vunpack.c.l.b16 %v4814
    %v4902 = vunpack.c.h.b16 %v4814
    %v4903 = vunpack.c.l.b16 %v4815
    %v4904 = vunpack.c.h.b16 %v4815
    %v4905 = vunpack.c.l.b16 %v4816
    %v4906 = vunpack.c.h.b16 %v4816
    %v4907 = vunpack.c.l.b16 %v4817
    %v4908 = vunpack.c.h.b16 %v4817
    %v4909 = vunpack.c.l.b16 %v4818
    %v4910 = vunpack.c.h.b16 %v4818
    %v4911 = vunpack.c.l.b16 %v4819
    %v4912 = vunpack.c.h.b16 %v4819
    %v4913 = vunpack.c.l.b16 %v4820
    %v4914 = vunpack.c.h.b16 %v4820
    %v4915 = vunpack.c.l.b16 %v4821
    %v4916 = vunpack.c.h.b16 %v4821
    %v4917 = vunpack.c.l.b16 %v4822
    %v4918 = vunpack.c.h.b16 %v4822
    %v4919 = vunpack.c.l.b16 %v4823
    %v4920 = vunpack.c.h.b16 %v4823
    %v4921 = vpack.c.b16 %v4873, %v4857
    %v4922 = vpack.c.b16 %v4874, %v4858
    %v4923 = vpack.c.b16 %v4875, %v4859
    %v4924 = vpack.c.b16 %v4876, %v4860
    %v4925 = vpack.c.b16 %v4877, %v4861
    %v4926 = vpack.c.b16 %v4878, %v4862
    %v4927 = vpack.c.b16 %v4879, %v4863
    %v4928 = vpack.c.b16 %v4880, %v4864
    %v4929 = vpack.c.b16 %v4881, %v4865
    %v4930 = vpack.c.b16 %v4882, %v4866
    %v4931 = vpack.c.b16 %v4883, %v4867
    %v4932 = vpack.c.b16 %v4884, %v4868
    %v4933 = vpack.c.b16 %v4885, %v4869
    %v4934 = vpack.c.b16 %v4886, %v4870
    %v4935 = vpack.c.b16 %v4887, %v4871
    %v4936 = vpack.c.b16 %v4888, %v4872
    %v4937 = vpack.c.b16 %v4905, %v4889
    %v4938 = vpack.c.b16 %v4906, %v4890
    %v4939 = vpack.c.b16 %v4907, %v4891
    %v4940 = vpack.c.b16 %v4908, %v4892
    %v4941 = vpack.c.b16 %v4909, %v4893
    %v4942 = vpack.c.b16 %v4910, %v4894
    %v4943 = vpack.c.b16 %v4911, %v4895
    %v4944 = vpack.c.b16 %v4912, %v4896
    %v4945 = vpack.c.b16 %v4913, %v4897
    %v4946 = vpack.c.b16 %v4914, %v4898
    %v4947 = vpack.c.b16 %v4915, %v4899
    %v4948 = vpack.c.b16 %v4916, %v4900
    %v4949 = vpack.c.b16 %v4917, %v4901
    %v4950 = vpack.c.b16 %v4918, %v4902
    %v4951 = vpack.c.b16 %v4919, %v4903
    %v4952 = vpack.c.b16 %v4920, %v4904
    %4985 = vmatpush.bf16.xpose.msra.mxu0 0
    %4986 = vmatpush.bf16.xpose.msra.mxu0 0
    %4987 = vmatpush.bf16.xpose.msra.mxu0 0
    %4988 = vmatpush.bf16.xpose.msra.mxu0 0
    %4989 = vmatpush.bf16.xpose.msra.mxu0 0
    %4990 = vmatpush.bf16.xpose.msra.mxu0 0
    %4991 = vmatpush.bf16.xpose.msra.mxu0 %v4937
    %4992 = vmatpush.bf16.xpose.msra.mxu0 %v4921
    %4993 = vmatmul.bf16.gmra.mxu0 %v4775
    %v4994 = vpop.f32.mrf.mxu0
    %v4995 = vadd.f32 %v4824, %v4994
    %v4996 = vpop.f32.mrf.mxu0
    %4997 = vdwg.mxu0
    %4998 = vmatpush.bf16.xpose.msra.mxu0 0
    %4999 = vmatpush.bf16.xpose.msra.mxu0 0
    %5000 = vmatpush.bf16.xpose.msra.mxu0 0
    %5001 = vmatpush.bf16.xpose.msra.mxu0 0
    %5002 = vmatpush.bf16.xpose.msra.mxu0 0
    %5003 = vmatpush.bf16.xpose.msra.mxu0 0
    %5004 = vmatpush.bf16.xpose.msra.mxu0 %v4938
    %5005 = vmatpush.bf16.xpose.msra.mxu0 %v4922
    %5006 = vmatmul.bf16.gmra.mxu0 %v4776
    %v5007 = vpop.f32.mrf.mxu0
    %v5008 = vadd.f32 %v4995, %v5007
    %v5009 = vpop.f32.mrf.mxu0
    %5010 = vdwg.mxu0
    %5011 = vmatpush.bf16.xpose.msra.mxu0 0
    %5012 = vmatpush.bf16.xpose.msra.mxu0 0
    %5013 = vmatpush.bf16.xpose.msra.mxu0 0
    %5014 = vmatpush.bf16.xpose.msra.mxu0 0
    %5015 = vmatpush.bf16.xpose.msra.mxu0 0
    %5016 = vmatpush.bf16.xpose.msra.mxu0 0
    %5017 = vmatpush.bf16.xpose.msra.mxu0 %v4939
    %5018 = vmatpush.bf16.xpose.msra.mxu0 %v4923
    %5019 = vmatmul.bf16.gmra.mxu0 %v4777
    %v5020 = vpop.f32.mrf.mxu0
    %v5021 = vadd.f32 %v5008, %v5020
    %v5022 = vpop.f32.mrf.mxu0
    %5023 = vdwg.mxu0
    %5024 = vmatpush.bf16.xpose.msra.mxu0 0
    %5025 = vmatpush.bf16.xpose.msra.mxu0 0
    %5026 = vmatpush.bf16.xpose.msra.mxu0 0
    %5027 = vmatpush.bf16.xpose.msra.mxu0 0
    %5028 = vmatpush.bf16.xpose.msra.mxu0 0
    %5029 = vmatpush.bf16.xpose.msra.mxu0 0
    %5030 = vmatpush.bf16.xpose.msra.mxu0 %v4940
    %5031 = vmatpush.bf16.xpose.msra.mxu0 %v4924
    %5032 = vmatmul.bf16.gmra.mxu0 %v4778
    %v5033 = vpop.f32.mrf.mxu0
    %v5034 = vadd.f32 %v5021, %v5033
    %v5035 = vpop.f32.mrf.mxu0
    %5036 = vdwg.mxu0
    %5037 = vmatpush.bf16.xpose.msra.mxu0 0
    %5038 = vmatpush.bf16.xpose.msra.mxu0 0
    %5039 = vmatpush.bf16.xpose.msra.mxu0 0
    %5040 = vmatpush.bf16.xpose.msra.mxu0 0
    %5041 = vmatpush.bf16.xpose.msra.mxu0 0
    %5042 = vmatpush.bf16.xpose.msra.mxu0 0
    %5043 = vmatpush.bf16.xpose.msra.mxu0 %v4941
    %5044 = vmatpush.bf16.xpose.msra.mxu0 %v4925
    %5045 = vmatmul.bf16.gmra.mxu0 %v4779
    %v5046 = vpop.f32.mrf.mxu0
    %v5047 = vadd.f32 %v5034, %v5046
    %v5048 = vpop.f32.mrf.mxu0
    %5049 = vdwg.mxu0
    %5050 = vmatpush.bf16.xpose.msra.mxu0 0
    %5051 = vmatpush.bf16.xpose.msra.mxu0 0
    %5052 = vmatpush.bf16.xpose.msra.mxu0 0
    %5053 = vmatpush.bf16.xpose.msra.mxu0 0
    %5054 = vmatpush.bf16.xpose.msra.mxu0 0
    %5055 = vmatpush.bf16.xpose.msra.mxu0 0
    %5056 = vmatpush.bf16.xpose.msra.mxu0 %v4942
    %5057 = vmatpush.bf16.xpose.msra.mxu0 %v4926
    %5058 = vmatmul.bf16.gmra.mxu0 %v4780
    %v5059 = vpop.f32.mrf.mxu0
    %v5060 = vadd.f32 %v5047, %v5059
    %v5061 = vpop.f32.mrf.mxu0
    %5062 = vdwg.mxu0
    %5063 = vmatpush.bf16.xpose.msra.mxu0 0
    %5064 = vmatpush.bf16.xpose.msra.mxu0 0
    %5065 = vmatpush.bf16.xpose.msra.mxu0 0
    %5066 = vmatpush.bf16.xpose.msra.mxu0 0
    %5067 = vmatpush.bf16.xpose.msra.mxu0 0
    %5068 = vmatpush.bf16.xpose.msra.mxu0 0
    %5069 = vmatpush.bf16.xpose.msra.mxu0 %v4943
    %5070 = vmatpush.bf16.xpose.msra.mxu0 %v4927
    %5071 = vmatmul.bf16.gmra.mxu0 %v4781
    %v5072 = vpop.f32.mrf.mxu0
    %v5073 = vadd.f32 %v5060, %v5072
    %v5074 = vpop.f32.mrf.mxu0
    %5075 = vdwg.mxu0
    %5076 = vmatpush.bf16.xpose.msra.mxu0 0
    %5077 = vmatpush.bf16.xpose.msra.mxu0 0
    %5078 = vmatpush.bf16.xpose.msra.mxu0 0
    %5079 = vmatpush.bf16.xpose.msra.mxu0 0
    %5080 = vmatpush.bf16.xpose.msra.mxu0 0
    %5081 = vmatpush.bf16.xpose.msra.mxu0 0
    %5082 = vmatpush.bf16.xpose.msra.mxu0 %v4944
    %5083 = vmatpush.bf16.xpose.msra.mxu0 %v4928
    %5084 = vmatmul.bf16.gmra.mxu0 %v4782
    %v5085 = vpop.f32.mrf.mxu0
    %v5086 = vadd.f32 %v5073, %v5085
    %v5087 = vpop.f32.mrf.mxu0
    %5088 = vdwg.mxu0
    %5089 = vmatpush.bf16.xpose.msra.mxu0 0
    %5090 = vmatpush.bf16.xpose.msra.mxu0 0
    %5091 = vmatpush.bf16.xpose.msra.mxu0 0
    %5092 = vmatpush.bf16.xpose.msra.mxu0 0
    %5093 = vmatpush.bf16.xpose.msra.mxu0 0
    %5094 = vmatpush.bf16.xpose.msra.mxu0 0
    %5095 = vmatpush.bf16.xpose.msra.mxu0 %v4945
    %5096 = vmatpush.bf16.xpose.msra.mxu0 %v4929
    %5097 = vmatmul.bf16.gmra.mxu0 %v4783
    %v5098 = vpop.f32.mrf.mxu0
    %v5099 = vadd.f32 %v5086, %v5098
    %v5100 = vpop.f32.mrf.mxu0
    %5101 = vdwg.mxu0
    %5102 = vmatpush.bf16.xpose.msra.mxu0 0
    %5103 = vmatpush.bf16.xpose.msra.mxu0 0
    %5104 = vmatpush.bf16.xpose.msra.mxu0 0
    %5105 = vmatpush.bf16.xpose.msra.mxu0 0
    %5106 = vmatpush.bf16.xpose.msra.mxu0 0
    %5107 = vmatpush.bf16.xpose.msra.mxu0 0
    %5108 = vmatpush.bf16.xpose.msra.mxu0 %v4946
    %5109 = vmatpush.bf16.xpose.msra.mxu0 %v4930
    %5110 = vmatmul.bf16.gmra.mxu0 %v4784
    %v5111 = vpop.f32.mrf.mxu0
    %v5112 = vadd.f32 %v5099, %v5111
    %v5113 = vpop.f32.mrf.mxu0
    %5114 = vdwg.mxu0
    %5115 = vmatpush.bf16.xpose.msra.mxu0 0
    %5116 = vmatpush.bf16.xpose.msra.mxu0 0
    %5117 = vmatpush.bf16.xpose.msra.mxu0 0
    %5118 = vmatpush.bf16.xpose.msra.mxu0 0
    %5119 = vmatpush.bf16.xpose.msra.mxu0 0
    %5120 = vmatpush.bf16.xpose.msra.mxu0 0
    %5121 = vmatpush.bf16.xpose.msra.mxu0 %v4947
    %5122 = vmatpush.bf16.xpose.msra.mxu0 %v4931
    %5123 = vmatmul.bf16.gmra.mxu0 %v4785
    %v5124 = vpop.f32.mrf.mxu0
    %v5125 = vadd.f32 %v5112, %v5124
    %v5126 = vpop.f32.mrf.mxu0
    %5127 = vdwg.mxu0
    %5128 = vmatpush.bf16.xpose.msra.mxu0 0
    %5129 = vmatpush.bf16.xpose.msra.mxu0 0
    %5130 = vmatpush.bf16.xpose.msra.mxu0 0
    %5131 = vmatpush.bf16.xpose.msra.mxu0 0
    %5132 = vmatpush.bf16.xpose.msra.mxu0 0
    %5133 = vmatpush.bf16.xpose.msra.mxu0 0
    %5134 = vmatpush.bf16.xpose.msra.mxu0 %v4948
    %5135 = vmatpush.bf16.xpose.msra.mxu0 %v4932
    %5136 = vmatmul.bf16.gmra.mxu0 %v4786
    %v5137 = vpop.f32.mrf.mxu0
    %v5138 = vadd.f32 %v5125, %v5137
    %v5139 = vpop.f32.mrf.mxu0
    %5140 = vdwg.mxu0
    %5141 = vmatpush.bf16.xpose.msra.mxu0 0
    %5142 = vmatpush.bf16.xpose.msra.mxu0 0
    %5143 = vmatpush.bf16.xpose.msra.mxu0 0
    %5144 = vmatpush.bf16.xpose.msra.mxu0 0
    %5145 = vmatpush.bf16.xpose.msra.mxu0 0
    %5146 = vmatpush.bf16.xpose.msra.mxu0 0
    %5147 = vmatpush.bf16.xpose.msra.mxu0 %v4949
    %5148 = vmatpush.bf16.xpose.msra.mxu0 %v4933
    %5149 = vmatmul.bf16.gmra.mxu0 %v4787
    %v5150 = vpop.f32.mrf.mxu0
    %v5151 = vadd.f32 %v5138, %v5150
    %v5152 = vpop.f32.mrf.mxu0
    %5153 = vdwg.mxu0
    %5154 = vmatpush.bf16.xpose.msra.mxu0 0
    %5155 = vmatpush.bf16.xpose.msra.mxu0 0
    %5156 = vmatpush.bf16.xpose.msra.mxu0 0
    %5157 = vmatpush.bf16.xpose.msra.mxu0 0
    %5158 = vmatpush.bf16.xpose.msra.mxu0 0
    %5159 = vmatpush.bf16.xpose.msra.mxu0 0
    %5160 = vmatpush.bf16.xpose.msra.mxu0 %v4950
    %5161 = vmatpush.bf16.xpose.msra.mxu0 %v4934
    %5162 = vmatmul.bf16.gmra.mxu0 %v4788
    %v5163 = vpop.f32.mrf.mxu0
    %v5164 = vadd.f32 %v5151, %v5163
    %v5165 = vpop.f32.mrf.mxu0
    %5166 = vdwg.mxu0
    %5167 = vmatpush.bf16.xpose.msra.mxu0 0
    %5168 = vmatpush.bf16.xpose.msra.mxu0 0
    %5169 = vmatpush.bf16.xpose.msra.mxu0 0
    %5170 = vmatpush.bf16.xpose.msra.mxu0 0
    %5171 = vmatpush.bf16.xpose.msra.mxu0 0
    %5172 = vmatpush.bf16.xpose.msra.mxu0 0
    %5173 = vmatpush.bf16.xpose.msra.mxu0 %v4951
    %5174 = vmatpush.bf16.xpose.msra.mxu0 %v4935
    %5175 = vmatmul.bf16.gmra.mxu0 %v4789
    %v5176 = vpop.f32.mrf.mxu0
    %v5177 = vadd.f32 %v5164, %v5176
    %v5178 = vpop.f32.mrf.mxu0
    %5179 = vdwg.mxu0
    %5180 = vmatpush.bf16.xpose.msra.mxu0 0
    %5181 = vmatpush.bf16.xpose.msra.mxu0 0
    %5182 = vmatpush.bf16.xpose.msra.mxu0 0
    %5183 = vmatpush.bf16.xpose.msra.mxu0 0
    %5184 = vmatpush.bf16.xpose.msra.mxu0 0
    %5185 = vmatpush.bf16.xpose.msra.mxu0 0
    %5186 = vmatpush.bf16.xpose.msra.mxu0 %v4952
    %5187 = vmatpush.bf16.xpose.msra.mxu0 %v4936
    %5188 = vmatmul.bf16.gmra.mxu0 %v4790
    %v5189 = vpop.f32.mrf.mxu0
    %v5190 = vadd.f32 %v5177, %v5189
    %v5191 = vpop.f32.mrf.mxu0
    %5192 = vdwg.mxu0
    %v5193 = vsel %vm169, %v5190, 0.0
    %5194 = vadd.xlane.f32.xlu0 %v5193
    %v5195 = vpop.xlane.xlu0 %5194
    %v5196 = vmul.f32 %v5195, %v195
    %v5197 = vsub.f32 %v5190, %v5196
    %v5198 = vmul.f32 %v5197, %v5197
    %v5199 = vsel %vm169, %v5198, 0.0
    %5200 = vadd.xlane.f32.xlu0 %v5199
    %v5201 = vpop.xlane.xlu0 %5200
    %v5202 = vmul.f32 %v5201, %v195
    %v5203 = vadd.f32 %v5202, 1e-05
    %v5204 = vrsqrt.pop %v5203
    %v5205 = vmul.f32 %v5204, %v5203
    %v5206 = vmul.f32 %v5205, %v5204
    %v5207 = vmul.f32 0.5, %v5206
    %v5208 = vsub.f32 1.5, %v5207
    %v5209 = vmul.f32 %v5204, %v5208
    %vm5210 = vweird.f32 %v5203
    %vm5211 = vweird.f32 %v5204
    %vm5212 = vmor %vm5210, %vm5211
    %v5213 = vsel %vm5212, %v5204, %v5209
    %v5214 = vmul.f32 %v5197, %v5213
    %v5215 = vperm.slane %v3570, 4
    %v5216 = vmul.f32 %v5214, %v5215
    %v5217 = vperm.slane %v3570, 5
    %v5218 = vadd.f32 %v5216, %v5217
    %v5219 = vmul.f32 %v5218, 0.5
    %v5220 = vmul.f32 %v5218, 0.70710677
    %v5221 = vmul.f32 %v5220, %v5220
    %v5222 = vmin.f32 16.0, %v5221
    %v5223 = vmul.f32 %v5222, 2.1237322e-06
    %v5224 = vadd.f32 %v5223, 0.00028619796
    %v5225 = vmul.f32 %v5222, %v5224
    %v5226 = vadd.f32 %v5225, 0.0036580483
    %v5227 = vmul.f32 %v5222, %v5226
    %v5228 = vadd.f32 %v5227, 0.05243302
    %v5229 = vmul.f32 %v5222, %v5228
    %v5230 = vadd.f32 %v5229, 0.18741608
    %v5231 = vmul.f32 %v5222, %v5230
    %v5232 = vadd.f32 %v5231, 1.1283791
    %v5233 = vmul.f32 %v5220, %v5232
    %v5234 = vmul.f32 %v5222, 3.8918573e-05
    %v5235 = vadd.f32 %v5234, 0.001143296
    %v5236 = vmul.f32 %v5222, %v5235
    %v5237 = vadd.f32 %v5236, 0.014752088
    %v5238 = vmul.f32 %v5222, %v5237
    %v5239 = vadd.f32 %v5238, 0.112945676
    %v5240 = vmul.f32 %v5222, %v5239
    %v5241 = vadd.f32 %v5240, 0.4994258
    %v5242 = vmul.f32 %v5222, %v5241
    %v5243 = vadd.f32 %v5242, 1.0
    %v5244 = vrcp.pop %v5243
    %v5245 = vmul.f32 %v5243, %v5244
    %v5246 = vsub.f32 1.0, %v5245
    %v5247 = vmul.f32 %v5244, %v5246
    %v5248 = vadd.f32 %v5244, %v5247
    %vm5249 = vweird.f32 %v5243
    %vm5250 = vweird.f32 %v5244
    %vm5251 = vmor %vm5249, %vm5250
    %v5252 = vsel %vm5251, %v5244, %v5248
    %v5253 = vand.u32 2147483647, %v5243
    %vm5254 = vcmp.eq.f32.partialorder %v5253, 8.507059e+37
    %v5255 = vand.u32 %v5243, 2147483648
    %v5256 = vor.u32 1.1754944e-38, %v5255
    %v5257 = vsel %vm5254, %v5256, %v5252
    %v5258 = vmul.f32 %v5233, %v5257
    %v5259 = vmin.f32 %v5258, 1.0
    %v5260 = vmax.f32 %v5259, -1.0
    %v5261 = vadd.f32 %v5260, 1.0
    %v5262 = vmul.f32 %v5219, %v5261
    %v5263 = vadd.f32 %v3627, %v5262
    %v5264 = vmul.f32 %v5263, 0.5
    %v5265 = vadd.f32 %v5264, %v3599
    %v5266 = vmul.f32 %v5265, 0.5
    %v5267 = vperm.slane %v3570, 6
    %v5268 = vmul.f32 %v5266, %v5267
    %v5269 = vsel %vm169, %v5268, 0.0
    %5270 = vadd.xlane.f32.xlu0 %v5269
    %v5271 = vpop.xlane.xlu0 %5270
    %s5272 = sld [smem:[#allocation13 + $0x100]]
    %v5273 = vstv %s5272
    %v5274 = vadd.f32 %v5271, %v5273
    %v5276 = vlaneseq
    %v5277 = vand.u32 %v5276, 127
    %v5278 = vperm.slane %v1862, %v5277
    %v5281 = vperm.slane %v3568, %v5277
    %v5284 = vperm.slane %v5274, %v5277
    %vm5286 = vcmask 1040384
    %v5287 = vsel %vm5286, %v5278, %v5281
    %vm5288 = vcmask 1041408
    %v5289 = vsel %vm5288, %v5287, %v5284
    %vm5290 = vcmask 59392
    %5291 = vst.msk [vmem:[%s7] sm:$0x7] %vm5290, %v5289
    // Predicated region
    $region58: #{multitask_mlp_forward.1} parent=1 // pred_check
      _
    $region59: #{multitask_mlp_forward.1} parent=1 // pred_check_branch
      %5293 = sbr.rel (0) target = $region61
    $region60: #{multitask_mlp_forward.1} parent=1 // pred_region
      _
    $region61: #{multitask_mlp_forward.1} parent=1 // pred_fallthru
      _
    // Predicated region
    $region62: #{multitask_mlp_forward.1} parent=1 // pred_check
      _
    $region63: #{multitask_mlp_forward.1} parent=1 // pred_check_branch
      %5295 = sbr.rel (0) target = $region65
    $region64: #{multitask_mlp_forward.1} parent=1 // pred_region
      _
    $region65: #{multitask_mlp_forward.1} parent=1 // pred_fallthru
      _
    %5296 = vsyncpa [#allocation3], 1
    %5297 = vsyncpa [#allocation6], 1
    %5298 = vsyncpa [#allocation9], 1
    %5299 = vsyncpa [#allocation12], 1
    %5300 = vsyncpa [#allocation4], 1

</llo_original>
